<compile_context>
chip_gen: v5e
topology: v5e:2x2
jax: 0.10.0
libtpu: 0.0.40
codegen_flags: <defaults>
</compile_context>

<pallas_src>
import jax
import jax.numpy as jnp
from jax import lax
from jax.experimental import pallas as pl
from jax.experimental.pallas import tpu as pltpu

KSIZE = 3    # 3x3 convs
STRIDE = 2   # stride-2 downsampling
PAD = 1


# ---------------------------------------------------------------------------
# Wrapper-side layout prep (single fused XLA pass, ~1x input bytes)
# ---------------------------------------------------------------------------
def _phase_split(x):
    """(B,H,W,C) NHWC -> (B,4,H//2+1,W//2+1,C)  stride-2 phase decomposition.

    Zero-pads spatially by 1 and splits the padded map into its 4 stride-2
    phases, so that tap (i,j) of a 3x3/stride-2 conv is the *contiguous* slice
        phases[:, (i%2)*2 + (j%2), i//2:i//2+Ho, j//2:j//2+Wo, :]
    inside the kernel (no strided loads, no 9x-inflated im2col in HBM).
    """
    B, H, W, C = x.shape
    xp = jnp.pad(x, ((0, 0), (PAD, PAD), (PAD, PAD), (0, 0)))
    Hh, Wh = (H + 2 * PAD) // 2, (W + 2 * PAD) // 2          # == Ho+1, Wo+1
    xr = xp.reshape(B, Hh, 2, Wh, 2, C)
    return jnp.transpose(xr, (0, 2, 4, 1, 3, 5)).reshape(B, 4, Hh, Wh, C)


# ---------------------------------------------------------------------------
# In-kernel 9-tap conv accumulation (bf16 MXU operands, f32 VMEM accumulator)
# ---------------------------------------------------------------------------
def _accum_conv_taps(xph_ref, w_ref, acc_ref, Ho, Wo):
    first = True
    for i in range(KSIZE):
        for j in range(KSIZE):
            ph = (i % 2) * 2 + (j % 2)
            tap = xph_ref[0, ph, pl.ds(i // 2, Ho), pl.ds(j // 2, Wo), :]
            tap = tap.reshape(Ho * Wo, tap.shape[-1]).astype(jnp.bfloat16)
            contrib = jnp.dot(tap, w_ref[i, j], preferred_element_type=jnp.float32)
            if first:
                acc_ref[...] = contrib
                first = False
            else:
                acc_ref[...] += contrib


# ---------------------------------------------------------------------------
# Kernel 1: conv(3x3, s=2, p=1) + bias + ReLU   (one batch element per step)
# ---------------------------------------------------------------------------
def conv_relu_kernel(xph_ref, w_ref, b_ref, o_ref, acc_ref):
    # xph_ref: (1,4,Hh,Wh,Cin) f32   w_ref: (3,3,Cin,Cout) bf16   b_ref: (1,Cout) f32
    # o_ref:   (1,Ho,Wo,Cout) f32    acc_ref: (Ho*Wo,Cout) f32 VMEM scratch
    _, Ho, Wo, Cout = o_ref.shape
    _accum_conv_taps(xph_ref, w_ref, acc_ref, Ho, Wo)
    y = jnp.maximum(acc_ref[...] + b_ref[...], 0.0)
    o_ref[...] = y.reshape(1, Ho, Wo, Cout).astype(o_ref.dtype)


# ---------------------------------------------------------------------------
# Kernel 2 (fused): conv2 + ReLU + global avg pool + Linear/ReLU/Linear + L2 norm
# ---------------------------------------------------------------------------
def conv_head_kernel(xph_ref, wc_ref, bc_ref, w1_ref, b1_ref, w2_ref, b2_ref,
                     o_ref, acc_ref):
    Ho = xph_ref.shape[2] - 1
    Wo = xph_ref.shape[3] - 1
    _accum_conv_taps(xph_ref, wc_ref, acc_ref, Ho, Wo)
    feat = jnp.maximum(acc_ref[...] + bc_ref[...], 0.0)          # (Ho*Wo, C2) f32
    pooled = jnp.mean(feat, axis=0, keepdims=True)               # (1, C2) global avg pool
    h = jnp.maximum(
        jnp.dot(pooled, w1_ref[...], preferred_element_type=jnp.float32) + b1_ref[...],
        0.0)
    z = jnp.dot(h, w2_ref[...], preferred_element_type=jnp.float32) + b2_ref[...]
    # F.normalize(z, dim=1): z / max(||z||_2, 1e-12)
    norm = jnp.sqrt(jnp.sum(z * z, axis=1, keepdims=True))
    inv = pl.reciprocal(jnp.maximum(norm, 1e-12))                # exact reciprocal
    o_ref[...] = (z * inv).reshape(1, 1, -1).astype(o_ref.dtype)


# ---------------------------------------------------------------------------
# pallas_call wrappers
# ---------------------------------------------------------------------------
def conv2d_relu(x, w, b):
    """x: (B,H,W,Cin) f32, w: (3,3,Cin,Cout) bf16, b: (Cout,) f32 -> (B,Ho,Wo,Cout) f32."""
    B, H, W, Cin = x.shape
    Cout = w.shape[-1]
    Ho = (H + 2 * PAD - KSIZE) // STRIDE + 1
    Wo = (W + 2 * PAD - KSIZE) // STRIDE + 1
    xph = _phase_split(x)                                        # (B,4,Ho+1,Wo+1,Cin)
    Hh, Wh = Ho + 1, Wo + 1
    flops = 2 * B * Ho * Wo * (KSIZE * KSIZE * Cin) * Cout
    bytes_accessed = xph.size * 4 + w.size * 2 + b.size * 4 + B * Ho * Wo * Cout * 4
    return pl.pallas_call(
        conv_relu_kernel,
        out_shape=jax.ShapeDtypeStruct((B, Ho, Wo, Cout), jnp.float32),
        grid_spec=pltpu.PrefetchScalarGridSpec(
            num_scalar_prefetch=0,
            grid=(B,),
            in_specs=[
                pl.BlockSpec((1, 4, Hh, Wh, Cin), lambda bb: (bb, 0, 0, 0, 0)),
                pl.BlockSpec((KSIZE, KSIZE, Cin, Cout), lambda bb: (0, 0, 0, 0)),
                pl.BlockSpec((1, Cout), lambda bb: (0, 0)),
            ],
            out_specs=pl.BlockSpec((1, Ho, Wo, Cout), lambda bb: (bb, 0, 0, 0)),
            scratch_shapes=[pltpu.VMEM((Ho * Wo, Cout), jnp.float32)],
        ),
        compiler_params=pltpu.CompilerParams(dimension_semantics=("parallel",)),
        cost_estimate=pl.CostEstimate(flops=int(flops), transcendentals=0,
                                      bytes_accessed=int(bytes_accessed)),
    )(xph, w, b.reshape(1, Cout))


def conv2_and_head(x, wc, bc, w1, b1, w2, b2):
    """Fused backbone stage 2 + projection head + L2 normalize -> (B, Dproj) f32."""
    B, H, W, Cin = x.shape
    C2 = wc.shape[-1]
    Dh = w1.shape[-1]
    Dp = w2.shape[-1]
    Ho = (H + 2 * PAD - KSIZE) // STRIDE + 1
    Wo = (W + 2 * PAD - KSIZE) // STRIDE + 1
    xph = _phase_split(x)                                        # (B,4,Ho+1,Wo+1,Cin)
    Hh, Wh = Ho + 1, Wo + 1
    flops = 2 * B * Ho * Wo * (KSIZE * KSIZE * Cin) * C2 + 2 * B * (Cin * 0 + C2 * Dh + Dh * Dp)
    bytes_accessed = (xph.size * 4 + wc.size * 2 + (w1.size + w2.size) * 4
                      + (bc.size + b1.size + b2.size) * 4 + B * Dp * 4)
    out = pl.pallas_call(
        conv_head_kernel,
        out_shape=jax.ShapeDtypeStruct((B, 1, Dp), jnp.float32),
        grid_spec=pltpu.PrefetchScalarGridSpec(
            num_scalar_prefetch=0,
            grid=(B,),
            in_specs=[
                pl.BlockSpec((1, 4, Hh, Wh, Cin), lambda bb: (bb, 0, 0, 0, 0)),
                pl.BlockSpec((KSIZE, KSIZE, Cin, C2), lambda bb: (0, 0, 0, 0)),
                pl.BlockSpec((1, C2), lambda bb: (0, 0)),
                pl.BlockSpec((C2, Dh), lambda bb: (0, 0)),
                pl.BlockSpec((1, Dh), lambda bb: (0, 0)),
                pl.BlockSpec((Dh, Dp), lambda bb: (0, 0)),
                pl.BlockSpec((1, Dp), lambda bb: (0, 0)),
            ],
            out_specs=pl.BlockSpec((1, 1, Dp), lambda bb: (bb, 0, 0)),
            scratch_shapes=[pltpu.VMEM((Ho * Wo, C2), jnp.float32)],
        ),
        compiler_params=pltpu.CompilerParams(dimension_semantics=("parallel",)),
        cost_estimate=pl.CostEstimate(flops=int(flops), transcendentals=0,
                                      bytes_accessed=int(bytes_accessed)),
    )(xph, wc, bc.reshape(1, C2), w1, b1.reshape(1, Dh), w2, b2.reshape(1, Dp))
    return out.reshape(B, Dp)


# ---------------------------------------------------------------------------
# Full forward
# ---------------------------------------------------------------------------
@jax.jit
def contrastive_encoder_forward(x_nchw, params):
    # NCHW (PyTorch) -> NHWC; the transpose fuses with the pad + phase-split for conv1.
    x = jnp.transpose(x_nchw, (0, 2, 3, 1)).astype(jnp.float32)
    f1 = conv2d_relu(x, params["w_conv1"], params["b_conv1"])            # backbone stage 1
    z = conv2_and_head(f1, params["w_conv2"], params["b_conv2"],         # backbone stage 2 (== [-1])
                       params["w1"], params["b1"],                       #  + avg-pool + MLP head
                       params["w2"], params["b2"])                       #  + F.normalize(dim=1)
    return z                                                             # (B, projection_dim)


if __name__ == "__main__":
    # Small shapes consistent with the module.  Spatial 32 keeps every conv
    # output width a multiple of 8 (sublane-aligned); channel widths are kept
    # at 128 so every matmul output is lane-dense (as a real backbone would be).
    B, Cin, H, W = 2, 4, 32, 32
    C1, C2 = 128, 128                 # backbone channels; backbone_out_channels[-1] = C2
    Dproj = 128                       # projection_dim default; hidden = C2 (use_mlp=True)

    key = jax.random.PRNGKey(0)
    ks = jax.random.split(key, 7)
    x_nchw = jax.random.normal(ks[0], (B, Cin, H, W), jnp.float32)

    w_conv1 = jax.random.normal(ks[1], (KSIZE, KSIZE, Cin, C1), jnp.float32) * 0.10
    w_conv2 = jax.random.normal(ks[2], (KSIZE, KSIZE, C1, C2), jnp.float32) * 0.02
    params = {
        "w_conv1": w_conv1.astype(jnp.bfloat16),   # bf16 MXU operands, f32 accumulation
        "b_conv1": jnp.zeros((C1,), jnp.float32),
        "w_conv2": w_conv2.astype(jnp.bfloat16),
        "b_conv2": jnp.zeros((C2,), jnp.float32),
        "w1": jax.random.normal(ks[3], (C2, C2), jnp.float32) * 0.05,
        "b1": jax.random.normal(ks[4], (C2,), jnp.float32) * 0.01,
        "w2": jax.random.normal(ks[5], (C2, Dproj), jnp.float32) * 0.05,
        "b2": jax.random.normal(ks[6], (Dproj,), jnp.float32) * 0.01,
    }

    z = jax.block_until_ready(contrastive_encoder_forward(x_nchw, params))
    assert z.shape == (B, Dproj), z.shape
    norms = jnp.linalg.norm(z, axis=1)
    assert bool(jnp.all(jnp.abs(norms - 1.0) < 1e-4)), norms

    # Pure-JAX f32 reference (XLA convs); loose tolerance covers the bf16 MXU operands.
    def ref_forward(xin):
        xr = jnp.transpose(xin, (0, 2, 3, 1))

        def conv(a, w, b):
            y = lax.conv_general_dilated(a, w, (STRIDE, STRIDE),
                                         ((PAD, PAD), (PAD, PAD)),
                                         dimension_numbers=("NHWC", "HWIO", "NHWC"))
            return jnp.maximum(y + b, 0.0)

        f = conv(conv(xr, w_conv1, params["b_conv1"]), w_conv2, params["b_conv2"])
        pooled = jnp.mean(f, axis=(1, 2))
        h = jnp.maximum(pooled @ params["w1"] + params["b1"], 0.0)
        zz = h @ params["w2"] + params["b2"]
        return zz / jnp.maximum(jnp.linalg.norm(zz, axis=1, keepdims=True), 1e-12)

    z_ref = ref_forward(x_nchw)
    max_err = float(jnp.max(jnp.abs(z - z_ref)))
    assert max_err < 5e-2, max_err

    print("KERNEL_OK")
</pallas_src>

<mosaic_0001>
module attributes {stable_mosaic.version = 11 : i64} {
  func.func @conv_relu_kernel(%arg0: i32, %arg1: memref<1x4x17x17x4xf32, #tpu.memory_space<vmem>>, %arg2: memref<3x3x4x128xbf16, #tpu.memory_space<vmem>>, %arg3: memref<1x128xf32, #tpu.memory_space<vmem>>, %arg4: memref<1x16x16x128xf32, #tpu.memory_space<vmem>>, %arg5: memref<256x128xf32, #tpu.memory_space<vmem>>) attributes {dimension_semantics = [#tpu.dimension_semantics<parallel>], iteration_bounds = array<i64: 2>, scalar_prefetch = 0 : i64, scratch_operands = 1 : i64, tpu.core_type = #tpu.core_type<tc>, window_params = [{transform_indices = @transform_0, window_bounds = array<i64: 1, 4, 17, 17, 4>}, {pipeline_mode = #tpu.pipeline_mode<synchronous>, transform_indices = @transform_1, window_bounds = array<i64: 3, 3, 4, 128>}, {pipeline_mode = #tpu.pipeline_mode<synchronous>, transform_indices = @transform_2, window_bounds = array<i64: 1, 128>}, {transform_indices = @transform_3, window_bounds = array<i64: 1, 16, 16, 128>}]} {
    %c0 = arith.constant 0 : index
    %c0_0 = arith.constant 0 : index
    %c0_1 = arith.constant 0 : index
    %c0_2 = arith.constant 0 : index
    %c0_3 = arith.constant 0 : index
    %0 = vector.load %arg1[%c0, %c0_0, %c0_1, %c0_2, %c0_3] : memref<1x4x17x17x4xf32, #tpu.memory_space<vmem>>, vector<1x1x16x16x4xf32>
    %1 = vector.shape_cast %0 : vector<1x1x16x16x4xf32> to vector<16x16x4xf32>
    %2 = vector.shape_cast %1 : vector<16x16x4xf32> to vector<256x4xf32>
    %3 = arith.truncf %2 : vector<256x4xf32> to vector<256x4xbf16>
    %c0_4 = arith.constant 0 : index
    %c0_5 = arith.constant 0 : index
    %c0_6 = arith.constant 0 : index
    %c0_7 = arith.constant 0 : index
    %4 = vector.load %arg2[%c0_4, %c0_5, %c0_6, %c0_7] : memref<3x3x4x128xbf16, #tpu.memory_space<vmem>>, vector<1x1x4x128xbf16>
    %5 = vector.shape_cast %4 : vector<1x1x4x128xbf16> to vector<4x128xbf16>
    %cst = arith.constant dense<0.000000e+00> : vector<256x128xf32>
    %6 = tpu.matmul %3, %5, %cst {dimension_numbers = #tpu.dot_dimension_numbers<[1], [0], [0], [1], [0, 0, 1, 1], [], []>} : vector<256x4xbf16>, vector<4x128xbf16>, vector<256x128xf32> -> vector<256x128xf32>
    %c0_8 = arith.constant 0 : index
    %c0_9 = arith.constant 0 : index
    %7 = vector.load %arg5[%c0_8, %c0_9] : memref<256x128xf32, #tpu.memory_space<vmem>>, vector<256x128xf32>
    tpu.vector_store %arg5[%c0_8, %c0_9], %6 {strides = array<i32>} : memref<256x128xf32, #tpu.memory_space<vmem>>, vector<256x128xf32>,
    %c0_10 = arith.constant 0 : index
    %c1 = arith.constant 1 : index
    %c0_11 = arith.constant 0 : index
    %c0_12 = arith.constant 0 : index
    %c0_13 = arith.constant 0 : index
    %8 = vector.load %arg1[%c0_10, %c1, %c0_11, %c0_12, %c0_13] : memref<1x4x17x17x4xf32, #tpu.memory_space<vmem>>, vector<1x1x16x16x4xf32>
    %9 = vector.shape_cast %8 : vector<1x1x16x16x4xf32> to vector<16x16x4xf32>
    %10 = vector.shape_cast %9 : vector<16x16x4xf32> to vector<256x4xf32>
    %11 = arith.truncf %10 : vector<256x4xf32> to vector<256x4xbf16>
    %c0_14 = arith.constant 0 : index
    %c1_15 = arith.constant 1 : index
    %c0_16 = arith.constant 0 : index
    %c0_17 = arith.constant 0 : index
    %12 = vector.load %arg2[%c0_14, %c1_15, %c0_16, %c0_17] : memref<3x3x4x128xbf16, #tpu.memory_space<vmem>>, vector<1x1x4x128xbf16>
    %13 = vector.shape_cast %12 : vector<1x1x4x128xbf16> to vector<4x128xbf16>
    %cst_18 = arith.constant dense<0.000000e+00> : vector<256x128xf32>
    %14 = tpu.matmul %11, %13, %cst_18 {dimension_numbers = #tpu.dot_dimension_numbers<[1], [0], [0], [1], [0, 0, 1, 1], [], []>} : vector<256x4xbf16>, vector<4x128xbf16>, vector<256x128xf32> -> vector<256x128xf32>
    %c0_19 = arith.constant 0 : index
    %c0_20 = arith.constant 0 : index
    %15 = vector.load %arg5[%c0_19, %c0_20] : memref<256x128xf32, #tpu.memory_space<vmem>>, vector<256x128xf32>
    %16 = arith.addf %15, %14 : vector<256x128xf32>
    %c0_21 = arith.constant 0 : index
    %c0_22 = arith.constant 0 : index
    %17 = vector.load %arg5[%c0_21, %c0_22] : memref<256x128xf32, #tpu.memory_space<vmem>>, vector<256x128xf32>
    tpu.vector_store %arg5[%c0_21, %c0_22], %16 {strides = array<i32>} : memref<256x128xf32, #tpu.memory_space<vmem>>, vector<256x128xf32>,
    %c0_23 = arith.constant 0 : index
    %c0_24 = arith.constant 0 : index
    %c0_25 = arith.constant 0 : index
    %c1_26 = arith.constant 1 : index
    %c0_27 = arith.constant 0 : index
    %18 = vector.load %arg1[%c0_23, %c0_24, %c0_25, %c1_26, %c0_27] : memref<1x4x17x17x4xf32, #tpu.memory_space<vmem>>, vector<1x1x16x16x4xf32>
    %19 = vector.shape_cast %18 : vector<1x1x16x16x4xf32> to vector<16x16x4xf32>
    %20 = vector.shape_cast %19 : vector<16x16x4xf32> to vector<256x4xf32>
    %21 = arith.truncf %20 : vector<256x4xf32> to vector<256x4xbf16>
    %c0_28 = arith.constant 0 : index
    %c2 = arith.constant 2 : index
    %c0_29 = arith.constant 0 : index
    %c0_30 = arith.constant 0 : index
    %22 = vector.load %arg2[%c0_28, %c2, %c0_29, %c0_30] : memref<3x3x4x128xbf16, #tpu.memory_space<vmem>>, vector<1x1x4x128xbf16>
    %23 = vector.shape_cast %22 : vector<1x1x4x128xbf16> to vector<4x128xbf16>
    %cst_31 = arith.constant dense<0.000000e+00> : vector<256x128xf32>
    %24 = tpu.matmul %21, %23, %cst_31 {dimension_numbers = #tpu.dot_dimension_numbers<[1], [0], [0], [1], [0, 0, 1, 1], [], []>} : vector<256x4xbf16>, vector<4x128xbf16>, vector<256x128xf32> -> vector<256x128xf32>
    %c0_32 = arith.constant 0 : index
    %c0_33 = arith.constant 0 : index
    %25 = vector.load %arg5[%c0_32, %c0_33] : memref<256x128xf32, #tpu.memory_space<vmem>>, vector<256x128xf32>
    %26 = arith.addf %25, %24 : vector<256x128xf32>
    %c0_34 = arith.constant 0 : index
    %c0_35 = arith.constant 0 : index
    %27 = vector.load %arg5[%c0_34, %c0_35] : memref<256x128xf32, #tpu.memory_space<vmem>>, vector<256x128xf32>
    tpu.vector_store %arg5[%c0_34, %c0_35], %26 {strides = array<i32>} : memref<256x128xf32, #tpu.memory_space<vmem>>, vector<256x128xf32>,
    %c0_36 = arith.constant 0 : index
    %c2_37 = arith.constant 2 : index
    %c0_38 = arith.constant 0 : index
    %c0_39 = arith.constant 0 : index
    %c0_40 = arith.constant 0 : index
    %28 = vector.load %arg1[%c0_36, %c2_37, %c0_38, %c0_39, %c0_40] : memref<1x4x17x17x4xf32, #tpu.memory_space<vmem>>, vector<1x1x16x16x4xf32>
    %29 = vector.shape_cast %28 : vector<1x1x16x16x4xf32> to vector<16x16x4xf32>
    %30 = vector.shape_cast %29 : vector<16x16x4xf32> to vector<256x4xf32>
    %31 = arith.truncf %30 : vector<256x4xf32> to vector<256x4xbf16>
    %c1_41 = arith.constant 1 : index
    %c0_42 = arith.constant 0 : index
    %c0_43 = arith.constant 0 : index
    %c0_44 = arith.constant 0 : index
    %32 = vector.load %arg2[%c1_41, %c0_42, %c0_43, %c0_44] : memref<3x3x4x128xbf16, #tpu.memory_space<vmem>>, vector<1x1x4x128xbf16>
    %33 = vector.shape_cast %32 : vector<1x1x4x128xbf16> to vector<4x128xbf16>
    %cst_45 = arith.constant dense<0.000000e+00> : vector<256x128xf32>
    %34 = tpu.matmul %31, %33, %cst_45 {dimension_numbers = #tpu.dot_dimension_numbers<[1], [0], [0], [1], [0, 0, 1, 1], [], []>} : vector<256x4xbf16>, vector<4x128xbf16>, vector<256x128xf32> -> vector<256x128xf32>
    %c0_46 = arith.constant 0 : index
    %c0_47 = arith.constant 0 : index
    %35 = vector.load %arg5[%c0_46, %c0_47] : memref<256x128xf32, #tpu.memory_space<vmem>>, vector<256x128xf32>
    %36 = arith.addf %35, %34 : vector<256x128xf32>
    %c0_48 = arith.constant 0 : index
    %c0_49 = arith.constant 0 : index
    %37 = vector.load %arg5[%c0_48, %c0_49] : memref<256x128xf32, #tpu.memory_space<vmem>>, vector<256x128xf32>
    tpu.vector_store %arg5[%c0_48, %c0_49], %36 {strides = array<i32>} : memref<256x128xf32, #tpu.memory_space<vmem>>, vector<256x128xf32>,
    %c0_50 = arith.constant 0 : index
    %c3 = arith.constant 3 : index
    %c0_51 = arith.constant 0 : index
    %c0_52 = arith.constant 0 : index
    %c0_53 = arith.constant 0 : index
    %38 = vector.load %arg1[%c0_50, %c3, %c0_51, %c0_52, %c0_53] : memref<1x4x17x17x4xf32, #tpu.memory_space<vmem>>, vector<1x1x16x16x4xf32>
    %39 = vector.shape_cast %38 : vector<1x1x16x16x4xf32> to vector<16x16x4xf32>
    %40 = vector.shape_cast %39 : vector<16x16x4xf32> to vector<256x4xf32>
    %41 = arith.truncf %40 : vector<256x4xf32> to vector<256x4xbf16>
    %c1_54 = arith.constant 1 : index
    %c1_55 = arith.constant 1 : index
    %c0_56 = arith.constant 0 : index
    %c0_57 = arith.constant 0 : index
    %42 = vector.load %arg2[%c1_54, %c1_55, %c0_56, %c0_57] : memref<3x3x4x128xbf16, #tpu.memory_space<vmem>>, vector<1x1x4x128xbf16>
    %43 = vector.shape_cast %42 : vector<1x1x4x128xbf16> to vector<4x128xbf16>
    %cst_58 = arith.constant dense<0.000000e+00> : vector<256x128xf32>
    %44 = tpu.matmul %41, %43, %cst_58 {dimension_numbers = #tpu.dot_dimension_numbers<[1], [0], [0], [1], [0, 0, 1, 1], [], []>} : vector<256x4xbf16>, vector<4x128xbf16>, vector<256x128xf32> -> vector<256x128xf32>
    %c0_59 = arith.constant 0 : index
    %c0_60 = arith.constant 0 : index
    %45 = vector.load %arg5[%c0_59, %c0_60] : memref<256x128xf32, #tpu.memory_space<vmem>>, vector<256x128xf32>
    %46 = arith.addf %45, %44 : vector<256x128xf32>
    %c0_61 = arith.constant 0 : index
    %c0_62 = arith.constant 0 : index
    %47 = vector.load %arg5[%c0_61, %c0_62] : memref<256x128xf32, #tpu.memory_space<vmem>>, vector<256x128xf32>
    tpu.vector_store %arg5[%c0_61, %c0_62], %46 {strides = array<i32>} : memref<256x128xf32, #tpu.memory_space<vmem>>, vector<256x128xf32>,
    %c0_63 = arith.constant 0 : index
    %c2_64 = arith.constant 2 : index
    %c0_65 = arith.constant 0 : index
    %c1_66 = arith.constant 1 : index
    %c0_67 = arith.constant 0 : index
    %48 = vector.load %arg1[%c0_63, %c2_64, %c0_65, %c1_66, %c0_67] : memref<1x4x17x17x4xf32, #tpu.memory_space<vmem>>, vector<1x1x16x16x4xf32>
    %49 = vector.shape_cast %48 : vector<1x1x16x16x4xf32> to vector<16x16x4xf32>
    %50 = vector.shape_cast %49 : vector<16x16x4xf32> to vector<256x4xf32>
    %51 = arith.truncf %50 : vector<256x4xf32> to vector<256x4xbf16>
    %c1_68 = arith.constant 1 : index
    %c2_69 = arith.constant 2 : index
    %c0_70 = arith.constant 0 : index
    %c0_71 = arith.constant 0 : index
    %52 = vector.load %arg2[%c1_68, %c2_69, %c0_70, %c0_71] : memref<3x3x4x128xbf16, #tpu.memory_space<vmem>>, vector<1x1x4x128xbf16>
    %53 = vector.shape_cast %52 : vector<1x1x4x128xbf16> to vector<4x128xbf16>
    %cst_72 = arith.constant dense<0.000000e+00> : vector<256x128xf32>
    %54 = tpu.matmul %51, %53, %cst_72 {dimension_numbers = #tpu.dot_dimension_numbers<[1], [0], [0], [1], [0, 0, 1, 1], [], []>} : vector<256x4xbf16>, vector<4x128xbf16>, vector<256x128xf32> -> vector<256x128xf32>
    %c0_73 = arith.constant 0 : index
    %c0_74 = arith.constant 0 : index
    %55 = vector.load %arg5[%c0_73, %c0_74] : memref<256x128xf32, #tpu.memory_space<vmem>>, vector<256x128xf32>
    %56 = arith.addf %55, %54 : vector<256x128xf32>
    %c0_75 = arith.constant 0 : index
    %c0_76 = arith.constant 0 : index
    %57 = vector.load %arg5[%c0_75, %c0_76] : memref<256x128xf32, #tpu.memory_space<vmem>>, vector<256x128xf32>
    tpu.vector_store %arg5[%c0_75, %c0_76], %56 {strides = array<i32>} : memref<256x128xf32, #tpu.memory_space<vmem>>, vector<256x128xf32>,
    %c0_77 = arith.constant 0 : index
    %c0_78 = arith.constant 0 : index
    %c1_79 = arith.constant 1 : index
    %c0_80 = arith.constant 0 : index
    %c0_81 = arith.constant 0 : index
    %58 = vector.load %arg1[%c0_77, %c0_78, %c1_79, %c0_80, %c0_81] : memref<1x4x17x17x4xf32, #tpu.memory_space<vmem>>, vector<1x1x16x16x4xf32>
    %59 = vector.shape_cast %58 : vector<1x1x16x16x4xf32> to vector<16x16x4xf32>
    %60 = vector.shape_cast %59 : vector<16x16x4xf32> to vector<256x4xf32>
    %61 = arith.truncf %60 : vector<256x4xf32> to vector<256x4xbf16>
    %c2_82 = arith.constant 2 : index
    %c0_83 = arith.constant 0 : index
    %c0_84 = arith.constant 0 : index
    %c0_85 = arith.constant 0 : index
    %62 = vector.load %arg2[%c2_82, %c0_83, %c0_84, %c0_85] : memref<3x3x4x128xbf16, #tpu.memory_space<vmem>>, vector<1x1x4x128xbf16>
    %63 = vector.shape_cast %62 : vector<1x1x4x128xbf16> to vector<4x128xbf16>
    %cst_86 = arith.constant dense<0.000000e+00> : vector<256x128xf32>
    %64 = tpu.matmul %61, %63, %cst_86 {dimension_numbers = #tpu.dot_dimension_numbers<[1], [0], [0], [1], [0, 0, 1, 1], [], []>} : vector<256x4xbf16>, vector<4x128xbf16>, vector<256x128xf32> -> vector<256x128xf32>
    %c0_87 = arith.constant 0 : index
    %c0_88 = arith.constant 0 : index
    %65 = vector.load %arg5[%c0_87, %c0_88] : memref<256x128xf32, #tpu.memory_space<vmem>>, vector<256x128xf32>
    %66 = arith.addf %65, %64 : vector<256x128xf32>
    %c0_89 = arith.constant 0 : index
    %c0_90 = arith.constant 0 : index
    %67 = vector.load %arg5[%c0_89, %c0_90] : memref<256x128xf32, #tpu.memory_space<vmem>>, vector<256x128xf32>
    tpu.vector_store %arg5[%c0_89, %c0_90], %66 {strides = array<i32>} : memref<256x128xf32, #tpu.memory_space<vmem>>, vector<256x128xf32>,
    %c0_91 = arith.constant 0 : index
    %c1_92 = arith.constant 1 : index
    %c1_93 = arith.constant 1 : index
    %c0_94 = arith.constant 0 : index
    %c0_95 = arith.constant 0 : index
    %68 = vector.load %arg1[%c0_91, %c1_92, %c1_93, %c0_94, %c0_95] : memref<1x4x17x17x4xf32, #tpu.memory_space<vmem>>, vector<1x1x16x16x4xf32>
    %69 = vector.shape_cast %68 : vector<1x1x16x16x4xf32> to vector<16x16x4xf32>
    %70 = vector.shape_cast %69 : vector<16x16x4xf32> to vector<256x4xf32>
    %71 = arith.truncf %70 : vector<256x4xf32> to vector<256x4xbf16>
    %c2_96 = arith.constant 2 : index
    %c1_97 = arith.constant 1 : index
    %c0_98 = arith.constant 0 : index
    %c0_99 = arith.constant 0 : index
    %72 = vector.load %arg2[%c2_96, %c1_97, %c0_98, %c0_99] : memref<3x3x4x128xbf16, #tpu.memory_space<vmem>>, vector<1x1x4x128xbf16>
    %73 = vector.shape_cast %72 : vector<1x1x4x128xbf16> to vector<4x128xbf16>
    %cst_100 = arith.constant dense<0.000000e+00> : vector<256x128xf32>
    %74 = tpu.matmul %71, %73, %cst_100 {dimension_numbers = #tpu.dot_dimension_numbers<[1], [0], [0], [1], [0, 0, 1, 1], [], []>} : vector<256x4xbf16>, vector<4x128xbf16>, vector<256x128xf32> -> vector<256x128xf32>
    %c0_101 = arith.constant 0 : index
    %c0_102 = arith.constant 0 : index
    %75 = vector.load %arg5[%c0_101, %c0_102] : memref<256x128xf32, #tpu.memory_space<vmem>>, vector<256x128xf32>
    %76 = arith.addf %75, %74 : vector<256x128xf32>
    %c0_103 = arith.constant 0 : index
    %c0_104 = arith.constant 0 : index
    %77 = vector.load %arg5[%c0_103, %c0_104] : memref<256x128xf32, #tpu.memory_space<vmem>>, vector<256x128xf32>
    tpu.vector_store %arg5[%c0_103, %c0_104], %76 {strides = array<i32>} : memref<256x128xf32, #tpu.memory_space<vmem>>, vector<256x128xf32>,
    %c0_105 = arith.constant 0 : index
    %c0_106 = arith.constant 0 : index
    %c1_107 = arith.constant 1 : index
    %c1_108 = arith.constant 1 : index
    %c0_109 = arith.constant 0 : index
    %78 = vector.load %arg1[%c0_105, %c0_106, %c1_107, %c1_108, %c0_109] : memref<1x4x17x17x4xf32, #tpu.memory_space<vmem>>, vector<1x1x16x16x4xf32>
    %79 = vector.shape_cast %78 : vector<1x1x16x16x4xf32> to vector<16x16x4xf32>
    %80 = vector.shape_cast %79 : vector<16x16x4xf32> to vector<256x4xf32>
    %81 = arith.truncf %80 : vector<256x4xf32> to vector<256x4xbf16>
    %c2_110 = arith.constant 2 : index
    %c2_111 = arith.constant 2 : index
    %c0_112 = arith.constant 0 : index
    %c0_113 = arith.constant 0 : index
    %82 = vector.load %arg2[%c2_110, %c2_111, %c0_112, %c0_113] : memref<3x3x4x128xbf16, #tpu.memory_space<vmem>>, vector<1x1x4x128xbf16>
    %83 = vector.shape_cast %82 : vector<1x1x4x128xbf16> to vector<4x128xbf16>
    %cst_114 = arith.constant dense<0.000000e+00> : vector<256x128xf32>
    %84 = tpu.matmul %81, %83, %cst_114 {dimension_numbers = #tpu.dot_dimension_numbers<[1], [0], [0], [1], [0, 0, 1, 1], [], []>} : vector<256x4xbf16>, vector<4x128xbf16>, vector<256x128xf32> -> vector<256x128xf32>
    %c0_115 = arith.constant 0 : index
    %c0_116 = arith.constant 0 : index
    %85 = vector.load %arg5[%c0_115, %c0_116] : memref<256x128xf32, #tpu.memory_space<vmem>>, vector<256x128xf32>
    %86 = arith.addf %85, %84 : vector<256x128xf32>
    %c0_117 = arith.constant 0 : index
    %c0_118 = arith.constant 0 : index
    %87 = vector.load %arg5[%c0_117, %c0_118] : memref<256x128xf32, #tpu.memory_space<vmem>>, vector<256x128xf32>
    tpu.vector_store %arg5[%c0_117, %c0_118], %86 {strides = array<i32>} : memref<256x128xf32, #tpu.memory_space<vmem>>, vector<256x128xf32>,
    %c0_119 = arith.constant 0 : index
    %c0_120 = arith.constant 0 : index
    %88 = vector.load %arg5[%c0_119, %c0_120] : memref<256x128xf32, #tpu.memory_space<vmem>>, vector<256x128xf32>
    %c0_121 = arith.constant 0 : index
    %c0_122 = arith.constant 0 : index
    %89 = vector.load %arg3[%c0_121, %c0_122] : memref<1x128xf32, #tpu.memory_space<vmem>>, vector<1x128xf32>
    %90 = vector.broadcast %89 : vector<1x128xf32> to vector<256x128xf32>
    %91 = arith.addf %88, %90 : vector<256x128xf32>
    %cst_123 = arith.constant 0.000000e+00 : f32
    %92 = vector.broadcast %cst_123 : f32 to vector<256x128xf32>
    %93 = arith.maximumf %91, %92 : vector<256x128xf32>
    %94 = vector.shape_cast %93 : vector<256x128xf32> to vector<1x16x16x128xf32>
    %c0_124 = arith.constant 0 : index
    %c0_125 = arith.constant 0 : index
    %c0_126 = arith.constant 0 : index
    %c0_127 = arith.constant 0 : index
    %95 = vector.load %arg4[%c0_124, %c0_125, %c0_126, %c0_127] : memref<1x16x16x128xf32, #tpu.memory_space<vmem>>, vector<1x16x16x128xf32>
    tpu.vector_store %arg4[%c0_124, %c0_125, %c0_126, %c0_127], %94 {strides = array<i32>} : memref<1x16x16x128xf32, #tpu.memory_space<vmem>>, vector<1x16x16x128xf32>,
    return
  }
  func.func @transform_0(%arg0: i32) -> (i32, i32, i32, i32, i32) {
    %c0_i32 = arith.constant 0 : i32
    %c0_i32_0 = arith.constant 0 : i32
    %c0_i32_1 = arith.constant 0 : i32
    %c0_i32_2 = arith.constant 0 : i32
    %c0_i32_3 = arith.constant 0 : i32
    return %arg0, %c0_i32, %c0_i32_0, %c0_i32_1, %c0_i32_2 : i32, i32, i32, i32, i32
  }
  func.func @transform_1(%arg0: i32) -> (i32, i32, i32, i32) {
    %c0_i32 = arith.constant 0 : i32
    %c0_i32_0 = arith.constant 0 : i32
    %c0_i32_1 = arith.constant 0 : i32
    %c0_i32_2 = arith.constant 0 : i32
    %c0_i32_3 = arith.constant 0 : i32
    return %c0_i32, %c0_i32_0, %c0_i32_1, %c0_i32_2 : i32, i32, i32, i32
  }
  func.func @transform_2(%arg0: i32) -> (i32, i32) {
    %c0_i32 = arith.constant 0 : i32
    %c0_i32_0 = arith.constant 0 : i32
    %c0_i32_1 = arith.constant 0 : i32
    return %c0_i32, %c0_i32_0 : i32, i32
  }
  func.func @transform_3(%arg0: i32) -> (i32, i32, i32, i32) {
    %c0_i32 = arith.constant 0 : i32
    %c0_i32_0 = arith.constant 0 : i32
    %c0_i32_1 = arith.constant 0 : i32
    %c0_i32_2 = arith.constant 0 : i32
    return %arg0, %c0_i32, %c0_i32_0, %c0_i32_1 : i32, i32, i32, i32
  }
}

module attributes {stable_mosaic.version = 11 : i64} {
  func.func @conv_head_kernel(%arg0: i32, %arg1: memref<1x4x9x9x128xf32, #tpu.memory_space<vmem>>, %arg2: memref<3x3x128x128xbf16, #tpu.memory_space<vmem>>, %arg3: memref<1x128xf32, #tpu.memory_space<vmem>>, %arg4: memref<128x128xf32, #tpu.memory_space<vmem>>, %arg5: memref<1x128xf32, #tpu.memory_space<vmem>>, %arg6: memref<128x128xf32, #tpu.memory_space<vmem>>, %arg7: memref<1x128xf32, #tpu.memory_space<vmem>>, %arg8: memref<1x1x128xf32, #tpu.memory_space<vmem>>, %arg9: memref<64x128xf32, #tpu.memory_space<vmem>>) attributes {dimension_semantics = [#tpu.dimension_semantics<parallel>], iteration_bounds = array<i64: 2>, scalar_prefetch = 0 : i64, scratch_operands = 1 : i64, tpu.core_type = #tpu.core_type<tc>, window_params = [{transform_indices = @transform_0, window_bounds = array<i64: 1, 4, 9, 9, 128>}, {pipeline_mode = #tpu.pipeline_mode<synchronous>, transform_indices = @transform_1, window_bounds = array<i64: 3, 3, 128, 128>}, {pipeline_mode = #tpu.pipeline_mode<synchronous>, transform_indices = @transform_2, window_bounds = array<i64: 1, 128>}, {pipeline_mode = #tpu.pipeline_mode<synchronous>, transform_indices = @transform_3, window_bounds = array<i64: 128, 128>}, {pipeline_mode = #tpu.pipeline_mode<synchronous>, transform_indices = @transform_4, window_bounds = array<i64: 1, 128>}, {pipeline_mode = #tpu.pipeline_mode<synchronous>, transform_indices = @transform_5, window_bounds = array<i64: 128, 128>}, {pipeline_mode = #tpu.pipeline_mode<synchronous>, transform_indices = @transform_6, window_bounds = array<i64: 1, 128>}, {transform_indices = @transform_7, window_bounds = array<i64: 1, 1, 128>}]} {
    %c0 = arith.constant 0 : index
    %c0_0 = arith.constant 0 : index
    %c0_1 = arith.constant 0 : index
    %c0_2 = arith.constant 0 : index
    %c0_3 = arith.constant 0 : index
    %0 = vector.load %arg1[%c0, %c0_0, %c0_1, %c0_2, %c0_3] : memref<1x4x9x9x128xf32, #tpu.memory_space<vmem>>, vector<1x1x8x8x128xf32>
    %1 = vector.shape_cast %0 : vector<1x1x8x8x128xf32> to vector<8x8x128xf32>
    %2 = vector.shape_cast %1 : vector<8x8x128xf32> to vector<64x128xf32>
    %3 = arith.truncf %2 : vector<64x128xf32> to vector<64x128xbf16>
    %c0_4 = arith.constant 0 : index
    %c0_5 = arith.constant 0 : index
    %c0_6 = arith.constant 0 : index
    %c0_7 = arith.constant 0 : index
    %4 = vector.load %arg2[%c0_4, %c0_5, %c0_6, %c0_7] : memref<3x3x128x128xbf16, #tpu.memory_space<vmem>>, vector<1x1x128x128xbf16>
    %5 = vector.shape_cast %4 : vector<1x1x128x128xbf16> to vector<128x128xbf16>
    %cst = arith.constant dense<0.000000e+00> : vector<64x128xf32>
    %6 = tpu.matmul %3, %5, %cst {dimension_numbers = #tpu.dot_dimension_numbers<[1], [0], [0], [1], [0, 0, 1, 1], [], []>} : vector<64x128xbf16>, vector<128x128xbf16>, vector<64x128xf32> -> vector<64x128xf32>
    %c0_8 = arith.constant 0 : index
    %c0_9 = arith.constant 0 : index
    %7 = vector.load %arg9[%c0_8, %c0_9] : memref<64x128xf32, #tpu.memory_space<vmem>>, vector<64x128xf32>
    tpu.vector_store %arg9[%c0_8, %c0_9], %6 {strides = array<i32>} : memref<64x128xf32, #tpu.memory_space<vmem>>, vector<64x128xf32>,
    %c0_10 = arith.constant 0 : index
    %c1 = arith.constant 1 : index
    %c0_11 = arith.constant 0 : index
    %c0_12 = arith.constant 0 : index
    %c0_13 = arith.constant 0 : index
    %8 = vector.load %arg1[%c0_10, %c1, %c0_11, %c0_12, %c0_13] : memref<1x4x9x9x128xf32, #tpu.memory_space<vmem>>, vector<1x1x8x8x128xf32>
    %9 = vector.shape_cast %8 : vector<1x1x8x8x128xf32> to vector<8x8x128xf32>
    %10 = vector.shape_cast %9 : vector<8x8x128xf32> to vector<64x128xf32>
    %11 = arith.truncf %10 : vector<64x128xf32> to vector<64x128xbf16>
    %c0_14 = arith.constant 0 : index
    %c1_15 = arith.constant 1 : index
    %c0_16 = arith.constant 0 : index
    %c0_17 = arith.constant 0 : index
    %12 = vector.load %arg2[%c0_14, %c1_15, %c0_16, %c0_17] : memref<3x3x128x128xbf16, #tpu.memory_space<vmem>>, vector<1x1x128x128xbf16>
    %13 = vector.shape_cast %12 : vector<1x1x128x128xbf16> to vector<128x128xbf16>
    %cst_18 = arith.constant dense<0.000000e+00> : vector<64x128xf32>
    %14 = tpu.matmul %11, %13, %cst_18 {dimension_numbers = #tpu.dot_dimension_numbers<[1], [0], [0], [1], [0, 0, 1, 1], [], []>} : vector<64x128xbf16>, vector<128x128xbf16>, vector<64x128xf32> -> vector<64x128xf32>
    %c0_19 = arith.constant 0 : index
    %c0_20 = arith.constant 0 : index
    %15 = vector.load %arg9[%c0_19, %c0_20] : memref<64x128xf32, #tpu.memory_space<vmem>>, vector<64x128xf32>
    %16 = arith.addf %15, %14 : vector<64x128xf32>
    %c0_21 = arith.constant 0 : index
    %c0_22 = arith.constant 0 : index
    %17 = vector.load %arg9[%c0_21, %c0_22] : memref<64x128xf32, #tpu.memory_space<vmem>>, vector<64x128xf32>
    tpu.vector_store %arg9[%c0_21, %c0_22], %16 {strides = array<i32>} : memref<64x128xf32, #tpu.memory_space<vmem>>, vector<64x128xf32>,
    %c0_23 = arith.constant 0 : index
    %c0_24 = arith.constant 0 : index
    %c0_25 = arith.constant 0 : index
    %c1_26 = arith.constant 1 : index
    %c0_27 = arith.constant 0 : index
    %18 = vector.load %arg1[%c0_23, %c0_24, %c0_25, %c1_26, %c0_27] : memref<1x4x9x9x128xf32, #tpu.memory_space<vmem>>, vector<1x1x8x8x128xf32>
    %19 = vector.shape_cast %18 : vector<1x1x8x8x128xf32> to vector<8x8x128xf32>
    %20 = vector.shape_cast %19 : vector<8x8x128xf32> to vector<64x128xf32>
    %21 = arith.truncf %20 : vector<64x128xf32> to vector<64x128xbf16>
    %c0_28 = arith.constant 0 : index
    %c2 = arith.constant 2 : index
    %c0_29 = arith.constant 0 : index
    %c0_30 = arith.constant 0 : index
    %22 = vector.load %arg2[%c0_28, %c2, %c0_29, %c0_30] : memref<3x3x128x128xbf16, #tpu.memory_space<vmem>>, vector<1x1x128x128xbf16>
    %23 = vector.shape_cast %22 : vector<1x1x128x128xbf16> to vector<128x128xbf16>
    %cst_31 = arith.constant dense<0.000000e+00> : vector<64x128xf32>
    %24 = tpu.matmul %21, %23, %cst_31 {dimension_numbers = #tpu.dot_dimension_numbers<[1], [0], [0], [1], [0, 0, 1, 1], [], []>} : vector<64x128xbf16>, vector<128x128xbf16>, vector<64x128xf32> -> vector<64x128xf32>
    %c0_32 = arith.constant 0 : index
    %c0_33 = arith.constant 0 : index
    %25 = vector.load %arg9[%c0_32, %c0_33] : memref<64x128xf32, #tpu.memory_space<vmem>>, vector<64x128xf32>
    %26 = arith.addf %25, %24 : vector<64x128xf32>
    %c0_34 = arith.constant 0 : index
    %c0_35 = arith.constant 0 : index
    %27 = vector.load %arg9[%c0_34, %c0_35] : memref<64x128xf32, #tpu.memory_space<vmem>>, vector<64x128xf32>
    tpu.vector_store %arg9[%c0_34, %c0_35], %26 {strides = array<i32>} : memref<64x128xf32, #tpu.memory_space<vmem>>, vector<64x128xf32>,
    %c0_36 = arith.constant 0 : index
    %c2_37 = arith.constant 2 : index
    %c0_38 = arith.constant 0 : index
    %c0_39 = arith.constant 0 : index
    %c0_40 = arith.constant 0 : index
    %28 = vector.load %arg1[%c0_36, %c2_37, %c0_38, %c0_39, %c0_40] : memref<1x4x9x9x128xf32, #tpu.memory_space<vmem>>, vector<1x1x8x8x128xf32>
    %29 = vector.shape_cast %28 : vector<1x1x8x8x128xf32> to vector<8x8x128xf32>
    %30 = vector.shape_cast %29 : vector<8x8x128xf32> to vector<64x128xf32>
    %31 = arith.truncf %30 : vector<64x128xf32> to vector<64x128xbf16>
    %c1_41 = arith.constant 1 : index
    %c0_42 = arith.constant 0 : index
    %c0_43 = arith.constant 0 : index
    %c0_44 = arith.constant 0 : index
    %32 = vector.load %arg2[%c1_41, %c0_42, %c0_43, %c0_44] : memref<3x3x128x128xbf16, #tpu.memory_space<vmem>>, vector<1x1x128x128xbf16>
    %33 = vector.shape_cast %32 : vector<1x1x128x128xbf16> to vector<128x128xbf16>
    %cst_45 = arith.constant dense<0.000000e+00> : vector<64x128xf32>
    %34 = tpu.matmul %31, %33, %cst_45 {dimension_numbers = #tpu.dot_dimension_numbers<[1], [0], [0], [1], [0, 0, 1, 1], [], []>} : vector<64x128xbf16>, vector<128x128xbf16>, vector<64x128xf32> -> vector<64x128xf32>
    %c0_46 = arith.constant 0 : index
    %c0_47 = arith.constant 0 : index
    %35 = vector.load %arg9[%c0_46, %c0_47] : memref<64x128xf32, #tpu.memory_space<vmem>>, vector<64x128xf32>
    %36 = arith.addf %35, %34 : vector<64x128xf32>
    %c0_48 = arith.constant 0 : index
    %c0_49 = arith.constant 0 : index
    %37 = vector.load %arg9[%c0_48, %c0_49] : memref<64x128xf32, #tpu.memory_space<vmem>>, vector<64x128xf32>
    tpu.vector_store %arg9[%c0_48, %c0_49], %36 {strides = array<i32>} : memref<64x128xf32, #tpu.memory_space<vmem>>, vector<64x128xf32>,
    %c0_50 = arith.constant 0 : index
    %c3 = arith.constant 3 : index
    %c0_51 = arith.constant 0 : index
    %c0_52 = arith.constant 0 : index
    %c0_53 = arith.constant 0 : index
    %38 = vector.load %arg1[%c0_50, %c3, %c0_51, %c0_52, %c0_53] : memref<1x4x9x9x128xf32, #tpu.memory_space<vmem>>, vector<1x1x8x8x128xf32>
    %39 = vector.shape_cast %38 : vector<1x1x8x8x128xf32> to vector<8x8x128xf32>
    %40 = vector.shape_cast %39 : vector<8x8x128xf32> to vector<64x128xf32>
    %41 = arith.truncf %40 : vector<64x128xf32> to vector<64x128xbf16>
    %c1_54 = arith.constant 1 : index
    %c1_55 = arith.constant 1 : index
    %c0_56 = arith.constant 0 : index
    %c0_57 = arith.constant 0 : index
    %42 = vector.load %arg2[%c1_54, %c1_55, %c0_56, %c0_57] : memref<3x3x128x128xbf16, #tpu.memory_space<vmem>>, vector<1x1x128x128xbf16>
    %43 = vector.shape_cast %42 : vector<1x1x128x128xbf16> to vector<128x128xbf16>
    %cst_58 = arith.constant dense<0.000000e+00> : vector<64x128xf32>
    %44 = tpu.matmul %41, %43, %cst_58 {dimension_numbers = #tpu.dot_dimension_numbers<[1], [0], [0], [1], [0, 0, 1, 1], [], []>} : vector<64x128xbf16>, vector<128x128xbf16>, vector<64x128xf32> -> vector<64x128xf32>
    %c0_59 = arith.constant 0 : index
    %c0_60 = arith.constant 0 : index
    %45 = vector.load %arg9[%c0_59, %c0_60] : memref<64x128xf32, #tpu.memory_space<vmem>>, vector<64x128xf32>
    %46 = arith.addf %45, %44 : vector<64x128xf32>
    %c0_61 = arith.constant 0 : index
    %c0_62 = arith.constant 0 : index
    %47 = vector.load %arg9[%c0_61, %c0_62] : memref<64x128xf32, #tpu.memory_space<vmem>>, vector<64x128xf32>
    tpu.vector_store %arg9[%c0_61, %c0_62], %46 {strides = array<i32>} : memref<64x128xf32, #tpu.memory_space<vmem>>, vector<64x128xf32>,
    %c0_63 = arith.constant 0 : index
    %c2_64 = arith.constant 2 : index
    %c0_65 = arith.constant 0 : index
    %c1_66 = arith.constant 1 : index
    %c0_67 = arith.constant 0 : index
    %48 = vector.load %arg1[%c0_63, %c2_64, %c0_65, %c1_66, %c0_67] : memref<1x4x9x9x128xf32, #tpu.memory_space<vmem>>, vector<1x1x8x8x128xf32>
    %49 = vector.shape_cast %48 : vector<1x1x8x8x128xf32> to vector<8x8x128xf32>
    %50 = vector.shape_cast %49 : vector<8x8x128xf32> to vector<64x128xf32>
    %51 = arith.truncf %50 : vector<64x128xf32> to vector<64x128xbf16>
    %c1_68 = arith.constant 1 : index
    %c2_69 = arith.constant 2 : index
    %c0_70 = arith.constant 0 : index
    %c0_71 = arith.constant 0 : index
    %52 = vector.load %arg2[%c1_68, %c2_69, %c0_70, %c0_71] : memref<3x3x128x128xbf16, #tpu.memory_space<vmem>>, vector<1x1x128x128xbf16>
    %53 = vector.shape_cast %52 : vector<1x1x128x128xbf16> to vector<128x128xbf16>
    %cst_72 = arith.constant dense<0.000000e+00> : vector<64x128xf32>
    %54 = tpu.matmul %51, %53, %cst_72 {dimension_numbers = #tpu.dot_dimension_numbers<[1], [0], [0], [1], [0, 0, 1, 1], [], []>} : vector<64x128xbf16>, vector<128x128xbf16>, vector<64x128xf32> -> vector<64x128xf32>
    %c0_73 = arith.constant 0 : index
    %c0_74 = arith.constant 0 : index
    %55 = vector.load %arg9[%c0_73, %c0_74] : memref<64x128xf32, #tpu.memory_space<vmem>>, vector<64x128xf32>
    %56 = arith.addf %55, %54 : vector<64x128xf32>
    %c0_75 = arith.constant 0 : index
    %c0_76 = arith.constant 0 : index
    %57 = vector.load %arg9[%c0_75, %c0_76] : memref<64x128xf32, #tpu.memory_space<vmem>>, vector<64x128xf32>
    tpu.vector_store %arg9[%c0_75, %c0_76], %56 {strides = array<i32>} : memref<64x128xf32, #tpu.memory_space<vmem>>, vector<64x128xf32>,
    %c0_77 = arith.constant 0 : index
    %c0_78 = arith.constant 0 : index
    %c1_79 = arith.constant 1 : index
    %c0_80 = arith.constant 0 : index
    %c0_81 = arith.constant 0 : index
    %58 = vector.load %arg1[%c0_77, %c0_78, %c1_79, %c0_80, %c0_81] : memref<1x4x9x9x128xf32, #tpu.memory_space<vmem>>, vector<1x1x8x8x128xf32>
    %59 = vector.shape_cast %58 : vector<1x1x8x8x128xf32> to vector<8x8x128xf32>
    %60 = vector.shape_cast %59 : vector<8x8x128xf32> to vector<64x128xf32>
    %61 = arith.truncf %60 : vector<64x128xf32> to vector<64x128xbf16>
    %c2_82 = arith.constant 2 : index
    %c0_83 = arith.constant 0 : index
    %c0_84 = arith.constant 0 : index
    %c0_85 = arith.constant 0 : index
    %62 = vector.load %arg2[%c2_82, %c0_83, %c0_84, %c0_85] : memref<3x3x128x128xbf16, #tpu.memory_space<vmem>>, vector<1x1x128x128xbf16>
    %63 = vector.shape_cast %62 : vector<1x1x128x128xbf16> to vector<128x128xbf16>
    %cst_86 = arith.constant dense<0.000000e+00> : vector<64x128xf32>
    %64 = tpu.matmul %61, %63, %cst_86 {dimension_numbers = #tpu.dot_dimension_numbers<[1], [0], [0], [1], [0, 0, 1, 1], [], []>} : vector<64x128xbf16>, vector<128x128xbf16>, vector<64x128xf32> -> vector<64x128xf32>
    %c0_87 = arith.constant 0 : index
    %c0_88 = arith.constant 0 : index
    %65 = vector.load %arg9[%c0_87, %c0_88] : memref<64x128xf32, #tpu.memory_space<vmem>>, vector<64x128xf32>
    %66 = arith.addf %65, %64 : vector<64x128xf32>
    %c0_89 = arith.constant 0 : index
    %c0_90 = arith.constant 0 : index
    %67 = vector.load %arg9[%c0_89, %c0_90] : memref<64x128xf32, #tpu.memory_space<vmem>>, vector<64x128xf32>
    tpu.vector_store %arg9[%c0_89, %c0_90], %66 {strides = array<i32>} : memref<64x128xf32, #tpu.memory_space<vmem>>, vector<64x128xf32>,
    %c0_91 = arith.constant 0 : index
    %c1_92 = arith.constant 1 : index
    %c1_93 = arith.constant 1 : index
    %c0_94 = arith.constant 0 : index
    %c0_95 = arith.constant 0 : index
    %68 = vector.load %arg1[%c0_91, %c1_92, %c1_93, %c0_94, %c0_95] : memref<1x4x9x9x128xf32, #tpu.memory_space<vmem>>, vector<1x1x8x8x128xf32>
    %69 = vector.shape_cast %68 : vector<1x1x8x8x128xf32> to vector<8x8x128xf32>
    %70 = vector.shape_cast %69 : vector<8x8x128xf32> to vector<64x128xf32>
    %71 = arith.truncf %70 : vector<64x128xf32> to vector<64x128xbf16>
    %c2_96 = arith.constant 2 : index
    %c1_97 = arith.constant 1 : index
    %c0_98 = arith.constant 0 : index
    %c0_99 = arith.constant 0 : index
    %72 = vector.load %arg2[%c2_96, %c1_97, %c0_98, %c0_99] : memref<3x3x128x128xbf16, #tpu.memory_space<vmem>>, vector<1x1x128x128xbf16>
    %73 = vector.shape_cast %72 : vector<1x1x128x128xbf16> to vector<128x128xbf16>
    %cst_100 = arith.constant dense<0.000000e+00> : vector<64x128xf32>
    %74 = tpu.matmul %71, %73, %cst_100 {dimension_numbers = #tpu.dot_dimension_numbers<[1], [0], [0], [1], [0, 0, 1, 1], [], []>} : vector<64x128xbf16>, vector<128x128xbf16>, vector<64x128xf32> -> vector<64x128xf32>
    %c0_101 = arith.constant 0 : index
    %c0_102 = arith.constant 0 : index
    %75 = vector.load %arg9[%c0_101, %c0_102] : memref<64x128xf32, #tpu.memory_space<vmem>>, vector<64x128xf32>
    %76 = arith.addf %75, %74 : vector<64x128xf32>
    %c0_103 = arith.constant 0 : index
    %c0_104 = arith.constant 0 : index
    %77 = vector.load %arg9[%c0_103, %c0_104] : memref<64x128xf32, #tpu.memory_space<vmem>>, vector<64x128xf32>
    tpu.vector_store %arg9[%c0_103, %c0_104], %76 {strides = array<i32>} : memref<64x128xf32, #tpu.memory_space<vmem>>, vector<64x128xf32>,
    %c0_105 = arith.constant 0 : index
    %c0_106 = arith.constant 0 : index
    %c1_107 = arith.constant 1 : index
    %c1_108 = arith.constant 1 : index
    %c0_109 = arith.constant 0 : index
    %78 = vector.load %arg1[%c0_105, %c0_106, %c1_107, %c1_108, %c0_109] : memref<1x4x9x9x128xf32, #tpu.memory_space<vmem>>, vector<1x1x8x8x128xf32>
    %79 = vector.shape_cast %78 : vector<1x1x8x8x128xf32> to vector<8x8x128xf32>
    %80 = vector.shape_cast %79 : vector<8x8x128xf32> to vector<64x128xf32>
    %81 = arith.truncf %80 : vector<64x128xf32> to vector<64x128xbf16>
    %c2_110 = arith.constant 2 : index
    %c2_111 = arith.constant 2 : index
    %c0_112 = arith.constant 0 : index
    %c0_113 = arith.constant 0 : index
    %82 = vector.load %arg2[%c2_110, %c2_111, %c0_112, %c0_113] : memref<3x3x128x128xbf16, #tpu.memory_space<vmem>>, vector<1x1x128x128xbf16>
    %83 = vector.shape_cast %82 : vector<1x1x128x128xbf16> to vector<128x128xbf16>
    %cst_114 = arith.constant dense<0.000000e+00> : vector<64x128xf32>
    %84 = tpu.matmul %81, %83, %cst_114 {dimension_numbers = #tpu.dot_dimension_numbers<[1], [0], [0], [1], [0, 0, 1, 1], [], []>} : vector<64x128xbf16>, vector<128x128xbf16>, vector<64x128xf32> -> vector<64x128xf32>
    %c0_115 = arith.constant 0 : index
    %c0_116 = arith.constant 0 : index
    %85 = vector.load %arg9[%c0_115, %c0_116] : memref<64x128xf32, #tpu.memory_space<vmem>>, vector<64x128xf32>
    %86 = arith.addf %85, %84 : vector<64x128xf32>
    %c0_117 = arith.constant 0 : index
    %c0_118 = arith.constant 0 : index
    %87 = vector.load %arg9[%c0_117, %c0_118] : memref<64x128xf32, #tpu.memory_space<vmem>>, vector<64x128xf32>
    tpu.vector_store %arg9[%c0_117, %c0_118], %86 {strides = array<i32>} : memref<64x128xf32, #tpu.memory_space<vmem>>, vector<64x128xf32>,
    %c0_119 = arith.constant 0 : index
    %c0_120 = arith.constant 0 : index
    %88 = vector.load %arg9[%c0_119, %c0_120] : memref<64x128xf32, #tpu.memory_space<vmem>>, vector<64x128xf32>
    %c0_121 = arith.constant 0 : index
    %c0_122 = arith.constant 0 : index
    %89 = vector.load %arg3[%c0_121, %c0_122] : memref<1x128xf32, #tpu.memory_space<vmem>>, vector<1x128xf32>
    %90 = vector.broadcast %89 : vector<1x128xf32> to vector<64x128xf32>
    %91 = arith.addf %88, %90 : vector<64x128xf32>
    %cst_123 = arith.constant 0.000000e+00 : f32
    %92 = vector.broadcast %cst_123 : f32 to vector<64x128xf32>
    %93 = arith.maximumf %91, %92 : vector<64x128xf32>
    %cst_124 = arith.constant dense<0.000000e+00> : vector<128xf32>
    %94 = vector.multi_reduction <add>, %93, %cst_124 [0] : vector<64x128xf32> to vector<128xf32>
    %95 = vector.shape_cast %94 : vector<128xf32> to vector<1x128xf32>
    %cst_125 = arith.constant 6.400000e+01 : f32
    %96 = vector.broadcast %cst_125 : f32 to vector<1x128xf32>
    %97 = arith.divf %95, %96 : vector<1x128xf32>
    %c0_126 = arith.constant 0 : index
    %c0_127 = arith.constant 0 : index
    %98 = vector.load %arg4[%c0_126, %c0_127] : memref<128x128xf32, #tpu.memory_space<vmem>>, vector<128x128xf32>
    %cst_128 = arith.constant dense<0.000000e+00> : vector<1x128xf32>
    %99 = tpu.matmul %97, %98, %cst_128 {dimension_numbers = #tpu.dot_dimension_numbers<[1], [0], [0], [1], [0, 0, 1, 1], [], []>} : vector<1x128xf32>, vector<128x128xf32>, vector<1x128xf32> -> vector<1x128xf32>
    %c0_129 = arith.constant 0 : index
    %c0_130 = arith.constant 0 : index
    %100 = vector.load %arg5[%c0_129, %c0_130] : memref<1x128xf32, #tpu.memory_space<vmem>>, vector<1x128xf32>
    %101 = arith.addf %99, %100 : vector<1x128xf32>
    %cst_131 = arith.constant 0.000000e+00 : f32
    %102 = vector.broadcast %cst_131 : f32 to vector<1x128xf32>
    %103 = arith.maximumf %101, %102 : vector<1x128xf32>
    %c0_132 = arith.constant 0 : index
    %c0_133 = arith.constant 0 : index
    %104 = vector.load %arg6[%c0_132, %c0_133] : memref<128x128xf32, #tpu.memory_space<vmem>>, vector<128x128xf32>
    %cst_134 = arith.constant dense<0.000000e+00> : vector<1x128xf32>
    %105 = tpu.matmul %103, %104, %cst_134 {dimension_numbers = #tpu.dot_dimension_numbers<[1], [0], [0], [1], [0, 0, 1, 1], [], []>} : vector<1x128xf32>, vector<128x128xf32>, vector<1x128xf32> -> vector<1x128xf32>
    %c0_135 = arith.constant 0 : index
    %c0_136 = arith.constant 0 : index
    %106 = vector.load %arg7[%c0_135, %c0_136] : memref<1x128xf32, #tpu.memory_space<vmem>>, vector<1x128xf32>
    %107 = arith.addf %105, %106 : vector<1x128xf32>
    %108 = arith.mulf %107, %107 : vector<1x128xf32>
    %cst_137 = arith.constant dense<0.000000e+00> : vector<1xf32>
    %109 = vector.multi_reduction <add>, %108, %cst_137 [1] : vector<1x128xf32> to vector<1xf32>
    %110 = vector.shape_cast %109 : vector<1xf32> to vector<1x1xf32>
    %111 = math.sqrt %110 : vector<1x1xf32>
    %cst_138 = arith.constant 9.99999996E-13 : f32
    %112 = vector.broadcast %cst_138 : f32 to vector<1x1xf32>
    %113 = arith.maximumf %111, %112 : vector<1x1xf32>
    %114 = tpu.reciprocal %113 : vector<1x1xf32> -> vector<1x1xf32>
    %115 = vector.broadcast %114 : vector<1x1xf32> to vector<1x128xf32>
    %116 = arith.mulf %107, %115 : vector<1x128xf32>
    %117 = vector.shape_cast %116 : vector<1x128xf32> to vector<1x1x128xf32>
    %c0_139 = arith.constant 0 : index
    %c0_140 = arith.constant 0 : index
    %c0_141 = arith.constant 0 : index
    %118 = vector.load %arg8[%c0_139, %c0_140, %c0_141] : memref<1x1x128xf32, #tpu.memory_space<vmem>>, vector<1x1x128xf32>
    tpu.vector_store %arg8[%c0_139, %c0_140, %c0_141], %117 {strides = array<i32>} : memref<1x1x128xf32, #tpu.memory_space<vmem>>, vector<1x1x128xf32>,
    return
  }
  func.func @transform_0(%arg0: i32) -> (i32, i32, i32, i32, i32) {
    %c0_i32 = arith.constant 0 : i32
    %c0_i32_0 = arith.constant 0 : i32
    %c0_i32_1 = arith.constant 0 : i32
    %c0_i32_2 = arith.constant 0 : i32
    %c0_i32_3 = arith.constant 0 : i32
    return %arg0, %c0_i32, %c0_i32_0, %c0_i32_1, %c0_i32_2 : i32, i32, i32, i32, i32
  }
  func.func @transform_1(%arg0: i32) -> (i32, i32, i32, i32) {
    %c0_i32 = arith.constant 0 : i32
    %c0_i32_0 = arith.constant 0 : i32
    %c0_i32_1 = arith.constant 0 : i32
    %c0_i32_2 = arith.constant 0 : i32
    %c0_i32_3 = arith.constant 0 : i32
    return %c0_i32, %c0_i32_0, %c0_i32_1, %c0_i32_2 : i32, i32, i32, i32
  }
  func.func @transform_2(%arg0: i32) -> (i32, i32) {
    %c0_i32 = arith.constant 0 : i32
    %c0_i32_0 = arith.constant 0 : i32
    %c0_i32_1 = arith.constant 0 : i32
    return %c0_i32, %c0_i32_0 : i32, i32
  }
  func.func @transform_3(%arg0: i32) -> (i32, i32) {
    %c0_i32 = arith.constant 0 : i32
    %c0_i32_0 = arith.constant 0 : i32
    %c0_i32_1 = arith.constant 0 : i32
    return %c0_i32, %c0_i32_0 : i32, i32
  }
  func.func @transform_4(%arg0: i32) -> (i32, i32) {
    %c0_i32 = arith.constant 0 : i32
    %c0_i32_0 = arith.constant 0 : i32
    %c0_i32_1 = arith.constant 0 : i32
    return %c0_i32, %c0_i32_0 : i32, i32
  }
  func.func @transform_5(%arg0: i32) -> (i32, i32) {
    %c0_i32 = arith.constant 0 : i32
    %c0_i32_0 = arith.constant 0 : i32
    %c0_i32_1 = arith.constant 0 : i32
    return %c0_i32, %c0_i32_0 : i32, i32
  }
  func.func @transform_6(%arg0: i32) -> (i32, i32) {
    %c0_i32 = arith.constant 0 : i32
    %c0_i32_0 = arith.constant 0 : i32
    %c0_i32_1 = arith.constant 0 : i32
    return %c0_i32, %c0_i32_0 : i32, i32
  }
  func.func @transform_7(%arg0: i32) -> (i32, i32, i32) {
    %c0_i32 = arith.constant 0 : i32
    %c0_i32_0 = arith.constant 0 : i32
    %c0_i32_1 = arith.constant 0 : i32
    return %arg0, %c0_i32, %c0_i32_0 : i32, i32, i32
  }
}

</mosaic_0001>

<llo_original>
// kernel: contrastive_encoder_forward.2
$region0: #{contrastive_encoder_forward.2}
  #allocation0 [shape = 'u32[]', space=smem, size = 0x4, offset = 0x4, fixed_abs, tag = 'smem constant byte address 0x4 - core index']
  #allocation1 [shape = 'u32[72,128]{1,0:T(1,128)}', space=vmem, size = 0x9000, scoped, tag = 'internal scratch']
  #allocation2 [shape = 'f32[256,128]{1,0:T(8,128)}', space=vmem, size = 0x20000, scoped, tag = 'scratch operand']
  %s0 = inlined_call_operand.vmem [shape: f32[2,4,17,17,4], index: 0, kind: input, shape index: {}]
  %s1 = inlined_call_operand.vmem [shape: bf16[3,3,4,128], index: 1, kind: input, shape index: {}]
  %s2 = inlined_call_operand.vmem [shape: f32[1,128], index: 2, kind: input, shape index: {}]
  %s3 = inlined_call_operand.vmem [shape: f32[2,16,16,128], index: 3, kind: output, shape index: {}]
  %s4 = sld [smem:[#allocation0]]
  $region45: #{contrastive_encoder_forward.2} parent=0
    _
  %s6 = ssub.s32 1, %s4
  %s7 = scalar_select 0, %s6, %s4
  loop: start=0, step=1, limit=4
  $region2: #{contrastive_encoder_forward.2} parent=0 // loop_pre_header
    _
  $region3: #{contrastive_encoder_forward.2} parent=0 // loop_header
    %s9 = sphi 0, %s13
    %p10 = scmp.ge.s32.totalorder %s9, 4
    %s19 = sphi 0, %s21
    %s22 = sphi 0, %s19
    %s23 = sphi 0, %s22
    %s39 = sphi 0, %s23
    %s43 = sphi 0, %s43
    %s45 = sphi 0, %s43
    %s46 = sphi 0, %s45
    %s60 = sphi 0, %s46
    %s64 = sphi 0, %s64
    %s66 = sphi 0, %s64
    %s67 = sphi 0, %s66
    %s81 = sphi 0, %s67
    %s87 = sphi 0, %s89
    %s90 = sphi 0, %s87
    %s91 = sphi 0, %s90
    %s107 = sphi 0, %s91
  $region4: #{contrastive_encoder_forward.2} parent=0 // loop_header_branch
    %12 = sbr.rel (%p10) target = $region8
  $region5: #{contrastive_encoder_forward.2} parent=0 // loop_body
    %s14 = ssub.s32 %s9, 1
    %s15 = ssub.s32 %s9, 2
    %s16 = sadd.s32 %s9, 1
    %s17 = ssub.s32 %s9, %s16
    %p18 = scmp.eq.s32.totalorder %s17, 0
    %s20 = sadd.s32 %s19, 1
    %s21 = scalar_select %p18, %s19, %s20
    %p24 = pneg %p18
    %p25 = scmp.eq.s32.totalorder %s9, 1
    %p26 = por %p24, %p25
    %p27 = scmp.ne.s32.totalorder %s19, %s22
    %p28 = scmp.eq.s32.totalorder %s9, 0
    %p29 = por %p27, %p28
    %p30 = scmp.ne.s32.totalorder %s19, %s22
    %p31 = scmp.eq.s32.totalorder %s14, 1
    %p32 = por %p30, %p31
    %p33 = scmp.ne.s32.totalorder %s22, %s23
    %p34 = scmp.eq.s32.totalorder %s14, 0
    %p35 = por %p33, %p34
    %p36 = scmp.ne.s32.totalorder %s22, %s23
    %p37 = scmp.eq.s32.totalorder %s15, 1
    %p38 = por %p36, %p37
    %p40 = scmp.ne.s32.totalorder %s23, %s39
    %p41 = scmp.eq.s32.totalorder %s15, 0
    %p42 = por %p40, %p41
    %s44 = sadd.s32 %s43, 1
    %p47 = scmp.eq.s32.totalorder %s9, 1
    %p48 = scmp.ne.s32.totalorder %s43, %s45
    %p49 = scmp.eq.s32.totalorder %s9, 0
    %p50 = por %p48, %p49
    %p51 = scmp.ne.s32.totalorder %s43, %s45
    %p52 = scmp.eq.s32.totalorder %s14, 1
    %p53 = por %p51, %p52
    %p54 = scmp.ne.s32.totalorder %s45, %s46
    %p55 = scmp.eq.s32.totalorder %s14, 0
    %p56 = por %p54, %p55
    %p57 = scmp.ne.s32.totalorder %s45, %s46
    %p58 = scmp.eq.s32.totalorder %s15, 1
    %p59 = por %p57, %p58
    %p61 = scmp.ne.s32.totalorder %s46, %s60
    %p62 = scmp.eq.s32.totalorder %s15, 0
    %p63 = por %p61, %p62
    %s65 = sadd.s32 %s64, 1
    %p68 = scmp.eq.s32.totalorder %s9, 1
    %p69 = scmp.ne.s32.totalorder %s64, %s66
    %p70 = scmp.eq.s32.totalorder %s9, 0
    %p71 = por %p69, %p70
    %p72 = scmp.ne.s32.totalorder %s64, %s66
    %p73 = scmp.eq.s32.totalorder %s14, 1
    %p74 = por %p72, %p73
    %p75 = scmp.ne.s32.totalorder %s66, %s67
    %p76 = scmp.eq.s32.totalorder %s14, 0
    %p77 = por %p75, %p76
    %p78 = scmp.ne.s32.totalorder %s66, %s67
    %p79 = scmp.eq.s32.totalorder %s15, 1
    %p80 = por %p78, %p79
    %p82 = scmp.ne.s32.totalorder %s67, %s81
    %p83 = scmp.eq.s32.totalorder %s15, 0
    %p84 = por %p82, %p83
    %s85 = ssub.s32 %s9, %s16
    %p86 = scmp.eq.s32.totalorder %s85, 0
    %s88 = sadd.s32 %s87, 1
    %s89 = scalar_select %p86, %s87, %s88
    %p92 = pneg %p86
    %p93 = scmp.eq.s32.totalorder %s9, 1
    %p94 = por %p92, %p93
    %p95 = scmp.ne.s32.totalorder %s87, %s90
    %p96 = scmp.eq.s32.totalorder %s9, 0
    %p97 = por %p95, %p96
    %p98 = scmp.ne.s32.totalorder %s87, %s90
    %p99 = scmp.eq.s32.totalorder %s14, 1
    %p100 = por %p98, %p99
    %p101 = scmp.ne.s32.totalorder %s90, %s91
    %p102 = scmp.eq.s32.totalorder %s14, 0
    %p103 = por %p101, %p102
    %p104 = scmp.ne.s32.totalorder %s90, %s91
    %p105 = scmp.eq.s32.totalorder %s15, 1
    %p106 = por %p104, %p105
    %p108 = scmp.ne.s32.totalorder %s91, %s107
    %p109 = scmp.eq.s32.totalorder %s15, 0
    %p110 = por %p108, %p109
    %p111 = scmp.le.s32.totalorder 1, %s9
    %p112 = scmp.lt.s32.totalorder %s9, 3
    %p113 = pnand %p111, %p112
    %p114 = pneg %p113
    // Predicated region
    $region9: #{contrastive_encoder_forward.2} parent=5 // pred_check
      _
    $region10: #{contrastive_encoder_forward.2} parent=5 // pred_check_branch
      %116 = sbr.rel (%p113) target = $region12
    $region11: #{contrastive_encoder_forward.2} parent=5 // pred_region
      %s117 = ssub.s32 %s9, 1
      // Predicated region
      $region13: #{contrastive_encoder_forward.2} parent=11 // pred_check
        %p118 = pneg %p56
      $region14: #{contrastive_encoder_forward.2} parent=11 // pred_check_branch
        %120 = sbr.rel (%p118) target = $region16
      $region15: #{contrastive_encoder_forward.2} parent=11 // pred_region
        _
      $region16: #{contrastive_encoder_forward.2} parent=11 // pred_fallthru
        _
      // Predicated region
      $region17: #{contrastive_encoder_forward.2} parent=11 // pred_check
        %p121 = pneg %p77
      $region18: #{contrastive_encoder_forward.2} parent=11 // pred_check_branch
        %123 = sbr.rel (%p121) target = $region20
      $region19: #{contrastive_encoder_forward.2} parent=11 // pred_region
        _
      $region20: #{contrastive_encoder_forward.2} parent=11 // pred_fallthru
        _
    $region12: #{contrastive_encoder_forward.2} parent=5 // pred_fallthru
      _
    %p124 = scmp.lt.s32.totalorder %s9, 2
    // Predicated region
    $region21: #{contrastive_encoder_forward.2} parent=5 // pred_check
      %p125 = pneg %p124
    $region22: #{contrastive_encoder_forward.2} parent=5 // pred_check_branch
      %127 = sbr.rel (%p125) target = $region24
    $region23: #{contrastive_encoder_forward.2} parent=5 // pred_region
      // Predicated region
      $region25: #{contrastive_encoder_forward.2} parent=23 // pred_check
        %p128 = pneg %p29
      $region26: #{contrastive_encoder_forward.2} parent=23 // pred_check_branch
        %130 = sbr.rel (%p128) target = $region28
      $region27: #{contrastive_encoder_forward.2} parent=23 // pred_region
        %p131 = scmp.lt.s32.totalorder %s9, 1
        %s132 = scalar_select %p131, %s9, 1
        %s133 = smul.addr %s132, 204
        %s134 = smul.addr %s133, 8
        %s135 = scalar_lea.vmem %s0, %s134
      $region28: #{contrastive_encoder_forward.2} parent=23 // pred_fallthru
        _
    $region24: #{contrastive_encoder_forward.2} parent=5 // pred_fallthru
      _
    %p136 = scmp.le.s32.totalorder 1, %s9
    %p137 = scmp.lt.s32.totalorder %s9, 3
    %p138 = pnand %p136, %p137
    %p139 = pneg %p138
    // Predicated region
    $region29: #{contrastive_encoder_forward.2} parent=5 // pred_check
      _
    $region30: #{contrastive_encoder_forward.2} parent=5 // pred_check_branch
      %141 = sbr.rel (%p138) target = $region32
    $region31: #{contrastive_encoder_forward.2} parent=5 // pred_region
      %s142 = ssub.s32 %s9, 1
      %p143 = scmp.lt.s32.totalorder %s14, 1
      %s144 = scalar_select %p143, %s14, 1
      %s145 = smul.addr %s144, 204
      %s146 = smul.addr %s145, 8
      %s147 = scalar_lea.vmem %s0, %s146
      %p148 = pneg %p35
      %p149 = pneg %p32
      %p150 = pneg %p56
      %p151 = pneg %p53
      %p152 = pneg %p77
      %p153 = pneg %p74
      %p154 = pneg %p103
      %p155 = pneg %p100
      %p156 = scmp.lt.s32.totalorder %s14, 1
      %s157 = scalar_select %p156, %s14, 1
      %s158 = smul.addr %s157, 32
      %s159 = smul.addr %s158, 8
      %s160 = scalar_lea.vmem %s3, %s159
      %p161 = scmp.lt.s32.totalorder %s14, 1
      %s162 = scalar_select %p161, %s14, 1
      %s163 = smul.addr %s162, 204
      %s164 = smul.addr %s163, 8
      %s165 = scalar_lea.vmem %s0, %s164
      %p166 = scmp.lt.s32.totalorder %s14, 1
      %s167 = scalar_select %p166, %s14, 1
      %s168 = smul.addr %s167, 32
      %s169 = smul.addr %s168, 8
      %s170 = scalar_lea.vmem %s3, %s169
      %v172 = vld [vmem:[%s165] sm:$0xff]
      %v173 = vld [vmem:[%s165 + $0x8] sm:$0xff]
      %v174 = vld [vmem:[%s165 + $0x18] sm:$0xff]
      %v175 = vld [vmem:[%s165 + $0x20] sm:$0xff]
      %v176 = vld [vmem:[%s165 + $0x30] sm:$0xff]
      %v177 = vld [vmem:[%s165 + $0x38] sm:$0xff]
      %v178 = vld [vmem:[%s165 + $0x48] sm:$0xff]
      %v179 = vld [vmem:[%s165 + $0x50] sm:$0xff]
      %v180 = vld [vmem:[%s165 + $0x60] sm:$0xff]
      %v181 = vld [vmem:[%s165 + $0x68] sm:$0xff]
      %v182 = vld [vmem:[%s165 + $0x78] sm:$0xff]
      %v183 = vld [vmem:[%s165 + $0x80] sm:$0xff]
      %v184 = vld [vmem:[%s165 + $0x90] sm:$0xff]
      %v185 = vld [vmem:[%s165 + $0x98] sm:$0xff]
      %v186 = vld [vmem:[%s165 + $0xa8] sm:$0xff]
      %v187 = vld [vmem:[%s165 + $0xb0] sm:$0xff]
      %v188 = vld [vmem:[%s165 + $0xc0] sm:$0xff]
      %v189 = vld [vmem:[%s165 + $0xc8] sm:$0xff]
      %v190 = vld [vmem:[%s165 + $0xd8] sm:$0xff]
      %v191 = vld [vmem:[%s165 + $0xe0] sm:$0xff]
      %v192 = vld [vmem:[%s165 + $0xf0] sm:$0xff]
      %v193 = vld [vmem:[%s165 + $0xf8] sm:$0xff]
      %v194 = vld [vmem:[%s165 + $0x108] sm:$0xff]
      %v195 = vld [vmem:[%s165 + $0x110] sm:$0xff]
      %v196 = vld [vmem:[%s165 + $0x120] sm:$0xff]
      %v197 = vld [vmem:[%s165 + $0x128] sm:$0xff]
      %v198 = vld [vmem:[%s165 + $0x138] sm:$0xff]
      %v199 = vld [vmem:[%s165 + $0x140] sm:$0xff]
      %v200 = vld [vmem:[%s165 + $0x150] sm:$0xff]
      %v201 = vld [vmem:[%s165 + $0x158] sm:$0xff]
      %v202 = vld [vmem:[%s165 + $0x168] sm:$0xff]
      %v203 = vld [vmem:[%s165 + $0x170] sm:$0xff]
      %v204 = vpack.c.bf16 %v173, %v172
      %v205 = vpack.c.bf16 %v175, %v174
      %v206 = vpack.c.bf16 %v177, %v176
      %v207 = vpack.c.bf16 %v179, %v178
      %v208 = vpack.c.bf16 %v181, %v180
      %v209 = vpack.c.bf16 %v183, %v182
      %v210 = vpack.c.bf16 %v185, %v184
      %v211 = vpack.c.bf16 %v187, %v186
      %v212 = vpack.c.bf16 %v189, %v188
      %v213 = vpack.c.bf16 %v191, %v190
      %v214 = vpack.c.bf16 %v193, %v192
      %v215 = vpack.c.bf16 %v195, %v194
      %v216 = vpack.c.bf16 %v197, %v196
      %v217 = vpack.c.bf16 %v199, %v198
      %v218 = vpack.c.bf16 %v201, %v200
      %v219 = vpack.c.bf16 %v203, %v202
      %v220 = vld [vmem:[%s1] sm:$0x3]
      %vm221 = vcmask 31744
      %v223 = vsel %vm221, %v204, 0
      %v226 = vsel %vm221, %v205, 0
      %v229 = vsel %vm221, %v206, 0
      %v232 = vsel %vm221, %v207, 0
      %v235 = vsel %vm221, %v208, 0
      %v238 = vsel %vm221, %v209, 0
      %v241 = vsel %vm221, %v210, 0
      %v244 = vsel %vm221, %v211, 0
      %v247 = vsel %vm221, %v212, 0
      %v250 = vsel %vm221, %v213, 0
      %v253 = vsel %vm221, %v214, 0
      %v256 = vsel %vm221, %v215, 0
      %v259 = vsel %vm221, %v216, 0
      %v262 = vsel %vm221, %v217, 0
      %v265 = vsel %vm221, %v218, 0
      %v268 = vsel %vm221, %v219, 0
      %vm270 = vcmask 1041408
      %v272 = vsel %vm270, %v220, 0
      %274 = vmatpush.bf16.msra.mxu0 0
      %275 = vmatpush.bf16.msra.mxu0 0
      %276 = vmatpush.bf16.msra.mxu0 0
      %277 = vmatpush.bf16.msra.mxu0 0
      %278 = vmatpush.bf16.msra.mxu0 0
      %279 = vmatpush.bf16.msra.mxu0 0
      %280 = vmatpush.bf16.msra.mxu0 0
      %281 = vmatpush.bf16.msra.mxu0 %v272
      %282 = vmatmul.bf16.gmra.mxu0 %v223
      %v283 = vpop.f32.mrf.mxu0
      %v284 = vadd.f32 0.0, %v283
      %v285 = vpop.f32.mrf.mxu0
      %v286 = vadd.f32 0.0, %v285
      %287 = vmatmul.bf16.gmra.mxu0 %v226
      %v288 = vpop.f32.mrf.mxu0
      %v289 = vadd.f32 0.0, %v288
      %v290 = vpop.f32.mrf.mxu0
      %v291 = vadd.f32 0.0, %v290
      %292 = vmatmul.bf16.gmra.mxu0 %v229
      %v293 = vpop.f32.mrf.mxu0
      %v294 = vadd.f32 0.0, %v293
      %v295 = vpop.f32.mrf.mxu0
      %v296 = vadd.f32 0.0, %v295
      %297 = vmatmul.bf16.gmra.mxu0 %v232
      %v298 = vpop.f32.mrf.mxu0
      %v299 = vadd.f32 0.0, %v298
      %v300 = vpop.f32.mrf.mxu0
      %v301 = vadd.f32 0.0, %v300
      %302 = vmatmul.bf16.gmra.mxu0 %v235
      %v303 = vpop.f32.mrf.mxu0
      %v304 = vadd.f32 0.0, %v303
      %v305 = vpop.f32.mrf.mxu0
      %v306 = vadd.f32 0.0, %v305
      %307 = vmatmul.bf16.gmra.mxu0 %v238
      %v308 = vpop.f32.mrf.mxu0
      %v309 = vadd.f32 0.0, %v308
      %v310 = vpop.f32.mrf.mxu0
      %v311 = vadd.f32 0.0, %v310
      %312 = vmatmul.bf16.gmra.mxu0 %v241
      %v313 = vpop.f32.mrf.mxu0
      %v314 = vadd.f32 0.0, %v313
      %v315 = vpop.f32.mrf.mxu0
      %v316 = vadd.f32 0.0, %v315
      %317 = vmatmul.bf16.gmra.mxu0 %v244
      %v318 = vpop.f32.mrf.mxu0
      %v319 = vadd.f32 0.0, %v318
      %v320 = vpop.f32.mrf.mxu0
      %v321 = vadd.f32 0.0, %v320
      %322 = vmatmul.bf16.gmra.mxu0 %v247
      %v323 = vpop.f32.mrf.mxu0
      %v324 = vadd.f32 0.0, %v323
      %v325 = vpop.f32.mrf.mxu0
      %v326 = vadd.f32 0.0, %v325
      %327 = vmatmul.bf16.gmra.mxu0 %v250
      %v328 = vpop.f32.mrf.mxu0
      %v329 = vadd.f32 0.0, %v328
      %v330 = vpop.f32.mrf.mxu0
      %v331 = vadd.f32 0.0, %v330
      %332 = vmatmul.bf16.gmra.mxu0 %v253
      %v333 = vpop.f32.mrf.mxu0
      %v334 = vadd.f32 0.0, %v333
      %v335 = vpop.f32.mrf.mxu0
      %v336 = vadd.f32 0.0, %v335
      %337 = vmatmul.bf16.gmra.mxu0 %v256
      %v338 = vpop.f32.mrf.mxu0
      %v339 = vadd.f32 0.0, %v338
      %v340 = vpop.f32.mrf.mxu0
      %v341 = vadd.f32 0.0, %v340
      %342 = vmatmul.bf16.gmra.mxu0 %v259
      %v343 = vpop.f32.mrf.mxu0
      %v344 = vadd.f32 0.0, %v343
      %v345 = vpop.f32.mrf.mxu0
      %v346 = vadd.f32 0.0, %v345
      %347 = vmatmul.bf16.gmra.mxu0 %v262
      %v348 = vpop.f32.mrf.mxu0
      %v349 = vadd.f32 0.0, %v348
      %v350 = vpop.f32.mrf.mxu0
      %v351 = vadd.f32 0.0, %v350
      %352 = vmatmul.bf16.gmra.mxu0 %v265
      %v353 = vpop.f32.mrf.mxu0
      %v354 = vadd.f32 0.0, %v353
      %v355 = vpop.f32.mrf.mxu0
      %v356 = vadd.f32 0.0, %v355
      %357 = vmatmul.bf16.gmra.mxu0 %v268
      %v358 = vpop.f32.mrf.mxu0
      %v359 = vadd.f32 0.0, %v358
      %v360 = vpop.f32.mrf.mxu0
      %v361 = vadd.f32 0.0, %v360
      %362 = vdwg.mxu0
      %363 = vst [vmem:[#allocation2] sm:$0xff] %v284
      %364 = vst [vmem:[#allocation2 + $0x8] sm:$0xff] %v286
      %365 = vst [vmem:[#allocation2 + $0x10] sm:$0xff] %v289
      %366 = vst [vmem:[#allocation2 + $0x18] sm:$0xff] %v291
      %367 = vst [vmem:[#allocation2 + $0x20] sm:$0xff] %v294
      %368 = vst [vmem:[#allocation2 + $0x28] sm:$0xff] %v296
      %369 = vst [vmem:[#allocation2 + $0x30] sm:$0xff] %v299
      %370 = vst [vmem:[#allocation2 + $0x38] sm:$0xff] %v301
      %371 = vst [vmem:[#allocation2 + $0x40] sm:$0xff] %v304
      %372 = vst [vmem:[#allocation2 + $0x48] sm:$0xff] %v306
      %373 = vst [vmem:[#allocation2 + $0x50] sm:$0xff] %v309
      %374 = vst [vmem:[#allocation2 + $0x58] sm:$0xff] %v311
      %375 = vst [vmem:[#allocation2 + $0x60] sm:$0xff] %v314
      %376 = vst [vmem:[#allocation2 + $0x68] sm:$0xff] %v316
      %377 = vst [vmem:[#allocation2 + $0x70] sm:$0xff] %v319
      %378 = vst [vmem:[#allocation2 + $0x78] sm:$0xff] %v321
      %379 = vst [vmem:[#allocation2 + $0x80] sm:$0xff] %v324
      %380 = vst [vmem:[#allocation2 + $0x88] sm:$0xff] %v326
      %381 = vst [vmem:[#allocation2 + $0x90] sm:$0xff] %v329
      %382 = vst [vmem:[#allocation2 + $0x98] sm:$0xff] %v331
      %383 = vst [vmem:[#allocation2 + $0xa0] sm:$0xff] %v334
      %384 = vst [vmem:[#allocation2 + $0xa8] sm:$0xff] %v336
      %385 = vst [vmem:[#allocation2 + $0xb0] sm:$0xff] %v339
      %386 = vst [vmem:[#allocation2 + $0xb8] sm:$0xff] %v341
      %387 = vst [vmem:[#allocation2 + $0xc0] sm:$0xff] %v344
      %388 = vst [vmem:[#allocation2 + $0xc8] sm:$0xff] %v346
      %389 = vst [vmem:[#allocation2 + $0xd0] sm:$0xff] %v349
      %390 = vst [vmem:[#allocation2 + $0xd8] sm:$0xff] %v351
      %391 = vst [vmem:[#allocation2 + $0xe0] sm:$0xff] %v354
      %392 = vst [vmem:[#allocation2 + $0xe8] sm:$0xff] %v356
      %393 = vst [vmem:[#allocation2 + $0xf0] sm:$0xff] %v359
      %394 = vst [vmem:[#allocation2 + $0xf8] sm:$0xff] %v361
      %s395 = scalar_lea.vmem %s165, 408
      %v396 = vld [vmem:[%s395] sm:$0xff]
      %v397 = vld [vmem:[%s395 + $0x8] sm:$0xff]
      %v398 = vld [vmem:[%s395 + $0x18] sm:$0xff]
      %v399 = vld [vmem:[%s395 + $0x20] sm:$0xff]
      %v400 = vld [vmem:[%s395 + $0x30] sm:$0xff]
      %v401 = vld [vmem:[%s395 + $0x38] sm:$0xff]
      %v402 = vld [vmem:[%s395 + $0x48] sm:$0xff]
      %v403 = vld [vmem:[%s395 + $0x50] sm:$0xff]
      %v404 = vld [vmem:[%s395 + $0x60] sm:$0xff]
      %v405 = vld [vmem:[%s395 + $0x68] sm:$0xff]
      %v406 = vld [vmem:[%s395 + $0x78] sm:$0xff]
      %v407 = vld [vmem:[%s395 + $0x80] sm:$0xff]
      %v408 = vld [vmem:[%s395 + $0x90] sm:$0xff]
      %v409 = vld [vmem:[%s395 + $0x98] sm:$0xff]
      %v410 = vld [vmem:[%s395 + $0xa8] sm:$0xff]
      %v411 = vld [vmem:[%s395 + $0xb0] sm:$0xff]
      %v412 = vld [vmem:[%s395 + $0xc0] sm:$0xff]
      %v413 = vld [vmem:[%s395 + $0xc8] sm:$0xff]
      %v414 = vld [vmem:[%s395 + $0xd8] sm:$0xff]
      %v415 = vld [vmem:[%s395 + $0xe0] sm:$0xff]
      %v416 = vld [vmem:[%s395 + $0xf0] sm:$0xff]
      %v417 = vld [vmem:[%s395 + $0xf8] sm:$0xff]
      %v418 = vld [vmem:[%s395 + $0x108] sm:$0xff]
      %v419 = vld [vmem:[%s395 + $0x110] sm:$0xff]
      %v420 = vld [vmem:[%s395 + $0x120] sm:$0xff]
      %v421 = vld [vmem:[%s395 + $0x128] sm:$0xff]
      %v422 = vld [vmem:[%s395 + $0x138] sm:$0xff]
      %v423 = vld [vmem:[%s395 + $0x140] sm:$0xff]
      %v424 = vld [vmem:[%s395 + $0x150] sm:$0xff]
      %v425 = vld [vmem:[%s395 + $0x158] sm:$0xff]
      %v426 = vld [vmem:[%s395 + $0x168] sm:$0xff]
      %v427 = vld [vmem:[%s395 + $0x170] sm:$0xff]
      %v428 = vpack.c.bf16 %v397, %v396
      %v429 = vpack.c.bf16 %v399, %v398
      %v430 = vpack.c.bf16 %v401, %v400
      %v431 = vpack.c.bf16 %v403, %v402
      %v432 = vpack.c.bf16 %v405, %v404
      %v433 = vpack.c.bf16 %v407, %v406
      %v434 = vpack.c.bf16 %v409, %v408
      %v435 = vpack.c.bf16 %v411, %v410
      %v436 = vpack.c.bf16 %v413, %v412
      %v437 = vpack.c.bf16 %v415, %v414
      %v438 = vpack.c.bf16 %v417, %v416
      %v439 = vpack.c.bf16 %v419, %v418
      %v440 = vpack.c.bf16 %v421, %v420
      %v441 = vpack.c.bf16 %v423, %v422
      %v442 = vpack.c.bf16 %v425, %v424
      %v443 = vpack.c.bf16 %v427, %v426
      %s444 = scalar_lea.vmem %s1, 2
      %v445 = vld [vmem:[%s444] sm:$0x3]
      %v447 = vsel %vm221, %v428, 0
      %v450 = vsel %vm221, %v429, 0
      %v453 = vsel %vm221, %v430, 0
      %v456 = vsel %vm221, %v431, 0
      %v459 = vsel %vm221, %v432, 0
      %v462 = vsel %vm221, %v433, 0
      %v465 = vsel %vm221, %v434, 0
      %v468 = vsel %vm221, %v435, 0
      %v471 = vsel %vm221, %v436, 0
      %v474 = vsel %vm221, %v437, 0
      %v477 = vsel %vm221, %v438, 0
      %v480 = vsel %vm221, %v439, 0
      %v483 = vsel %vm221, %v440, 0
      %v486 = vsel %vm221, %v441, 0
      %v489 = vsel %vm221, %v442, 0
      %v492 = vsel %vm221, %v443, 0
      %v495 = vsel %vm270, %v445, 0
      %497 = vmatpush.bf16.msra.mxu0 0
      %498 = vmatpush.bf16.msra.mxu0 0
      %499 = vmatpush.bf16.msra.mxu0 0
      %500 = vmatpush.bf16.msra.mxu0 0
      %501 = vmatpush.bf16.msra.mxu0 0
      %502 = vmatpush.bf16.msra.mxu0 0
      %503 = vmatpush.bf16.msra.mxu0 0
      %504 = vmatpush.bf16.msra.mxu0 %v495
      %505 = vmatmul.bf16.gmra.mxu0 %v447
      %v506 = vpop.f32.mrf.mxu0
      %v507 = vadd.f32 0.0, %v506
      %v508 = vpop.f32.mrf.mxu0
      %v509 = vadd.f32 0.0, %v508
      %510 = vmatmul.bf16.gmra.mxu0 %v450
      %v511 = vpop.f32.mrf.mxu0
      %v512 = vadd.f32 0.0, %v511
      %v513 = vpop.f32.mrf.mxu0
      %v514 = vadd.f32 0.0, %v513
      %515 = vmatmul.bf16.gmra.mxu0 %v453
      %v516 = vpop.f32.mrf.mxu0
      %v517 = vadd.f32 0.0, %v516
      %v518 = vpop.f32.mrf.mxu0
      %v519 = vadd.f32 0.0, %v518
      %520 = vmatmul.bf16.gmra.mxu0 %v456
      %v521 = vpop.f32.mrf.mxu0
      %v522 = vadd.f32 0.0, %v521
      %v523 = vpop.f32.mrf.mxu0
      %v524 = vadd.f32 0.0, %v523
      %525 = vmatmul.bf16.gmra.mxu0 %v459
      %v526 = vpop.f32.mrf.mxu0
      %v527 = vadd.f32 0.0, %v526
      %v528 = vpop.f32.mrf.mxu0
      %v529 = vadd.f32 0.0, %v528
      %530 = vmatmul.bf16.gmra.mxu0 %v462
      %v531 = vpop.f32.mrf.mxu0
      %v532 = vadd.f32 0.0, %v531
      %v533 = vpop.f32.mrf.mxu0
      %v534 = vadd.f32 0.0, %v533
      %535 = vmatmul.bf16.gmra.mxu0 %v465
      %v536 = vpop.f32.mrf.mxu0
      %v537 = vadd.f32 0.0, %v536
      %v538 = vpop.f32.mrf.mxu0
      %v539 = vadd.f32 0.0, %v538
      %540 = vmatmul.bf16.gmra.mxu0 %v468
      %v541 = vpop.f32.mrf.mxu0
      %v542 = vadd.f32 0.0, %v541
      %v543 = vpop.f32.mrf.mxu0
      %v544 = vadd.f32 0.0, %v543
      %545 = vmatmul.bf16.gmra.mxu0 %v471
      %v546 = vpop.f32.mrf.mxu0
      %v547 = vadd.f32 0.0, %v546
      %v548 = vpop.f32.mrf.mxu0
      %v549 = vadd.f32 0.0, %v548
      %550 = vmatmul.bf16.gmra.mxu0 %v474
      %v551 = vpop.f32.mrf.mxu0
      %v552 = vadd.f32 0.0, %v551
      %v553 = vpop.f32.mrf.mxu0
      %v554 = vadd.f32 0.0, %v553
      %555 = vmatmul.bf16.gmra.mxu0 %v477
      %v556 = vpop.f32.mrf.mxu0
      %v557 = vadd.f32 0.0, %v556
      %v558 = vpop.f32.mrf.mxu0
      %v559 = vadd.f32 0.0, %v558
      %560 = vmatmul.bf16.gmra.mxu0 %v480
      %v561 = vpop.f32.mrf.mxu0
      %v562 = vadd.f32 0.0, %v561
      %v563 = vpop.f32.mrf.mxu0
      %v564 = vadd.f32 0.0, %v563
      %565 = vmatmul.bf16.gmra.mxu0 %v483
      %v566 = vpop.f32.mrf.mxu0
      %v567 = vadd.f32 0.0, %v566
      %v568 = vpop.f32.mrf.mxu0
      %v569 = vadd.f32 0.0, %v568
      %570 = vmatmul.bf16.gmra.mxu0 %v486
      %v571 = vpop.f32.mrf.mxu0
      %v572 = vadd.f32 0.0, %v571
      %v573 = vpop.f32.mrf.mxu0
      %v574 = vadd.f32 0.0, %v573
      %575 = vmatmul.bf16.gmra.mxu0 %v489
      %v576 = vpop.f32.mrf.mxu0
      %v577 = vadd.f32 0.0, %v576
      %v578 = vpop.f32.mrf.mxu0
      %v579 = vadd.f32 0.0, %v578
      %580 = vmatmul.bf16.gmra.mxu0 %v492
      %v581 = vpop.f32.mrf.mxu0
      %v582 = vadd.f32 0.0, %v581
      %v583 = vpop.f32.mrf.mxu0
      %v584 = vadd.f32 0.0, %v583
      %585 = vdwg.mxu0
      %v586 = vld [vmem:[#allocation2] sm:$0xff]
      %v587 = vld [vmem:[#allocation2 + $0x8] sm:$0xff]
      %v588 = vld [vmem:[#allocation2 + $0x10] sm:$0xff]
      %v589 = vld [vmem:[#allocation2 + $0x18] sm:$0xff]
      %v590 = vld [vmem:[#allocation2 + $0x20] sm:$0xff]
      %v591 = vld [vmem:[#allocation2 + $0x28] sm:$0xff]
      %v592 = vld [vmem:[#allocation2 + $0x30] sm:$0xff]
      %v593 = vld [vmem:[#allocation2 + $0x38] sm:$0xff]
      %v594 = vld [vmem:[#allocation2 + $0x40] sm:$0xff]
      %v595 = vld [vmem:[#allocation2 + $0x48] sm:$0xff]
      %v596 = vld [vmem:[#allocation2 + $0x50] sm:$0xff]
      %v597 = vld [vmem:[#allocation2 + $0x58] sm:$0xff]
      %v598 = vld [vmem:[#allocation2 + $0x60] sm:$0xff]
      %v599 = vld [vmem:[#allocation2 + $0x68] sm:$0xff]
      %v600 = vld [vmem:[#allocation2 + $0x70] sm:$0xff]
      %v601 = vld [vmem:[#allocation2 + $0x78] sm:$0xff]
      %v602 = vld [vmem:[#allocation2 + $0x80] sm:$0xff]
      %v603 = vld [vmem:[#allocation2 + $0x88] sm:$0xff]
      %v604 = vld [vmem:[#allocation2 + $0x90] sm:$0xff]
      %v605 = vld [vmem:[#allocation2 + $0x98] sm:$0xff]
      %v606 = vld [vmem:[#allocation2 + $0xa0] sm:$0xff]
      %v607 = vld [vmem:[#allocation2 + $0xa8] sm:$0xff]
      %v608 = vld [vmem:[#allocation2 + $0xb0] sm:$0xff]
      %v609 = vld [vmem:[#allocation2 + $0xb8] sm:$0xff]
      %v610 = vld [vmem:[#allocation2 + $0xc0] sm:$0xff]
      %v611 = vld [vmem:[#allocation2 + $0xc8] sm:$0xff]
      %v612 = vld [vmem:[#allocation2 + $0xd0] sm:$0xff]
      %v613 = vld [vmem:[#allocation2 + $0xd8] sm:$0xff]
      %v614 = vld [vmem:[#allocation2 + $0xe0] sm:$0xff]
      %v615 = vld [vmem:[#allocation2 + $0xe8] sm:$0xff]
      %v616 = vld [vmem:[#allocation2 + $0xf0] sm:$0xff]
      %v617 = vld [vmem:[#allocation2 + $0xf8] sm:$0xff]
      %v618 = vadd.f32 %v586, %v507
      %v619 = vadd.f32 %v587, %v509
      %v620 = vadd.f32 %v588, %v512
      %v621 = vadd.f32 %v589, %v514
      %v622 = vadd.f32 %v590, %v517
      %v623 = vadd.f32 %v591, %v519
      %v624 = vadd.f32 %v592, %v522
      %v625 = vadd.f32 %v593, %v524
      %v626 = vadd.f32 %v594, %v527
      %v627 = vadd.f32 %v595, %v529
      %v628 = vadd.f32 %v596, %v532
      %v629 = vadd.f32 %v597, %v534
      %v630 = vadd.f32 %v598, %v537
      %v631 = vadd.f32 %v599, %v539
      %v632 = vadd.f32 %v600, %v542
      %v633 = vadd.f32 %v601, %v544
      %v634 = vadd.f32 %v602, %v547
      %v635 = vadd.f32 %v603, %v549
      %v636 = vadd.f32 %v604, %v552
      %v637 = vadd.f32 %v605, %v554
      %v638 = vadd.f32 %v606, %v557
      %v639 = vadd.f32 %v607, %v559
      %v640 = vadd.f32 %v608, %v562
      %v641 = vadd.f32 %v609, %v564
      %v642 = vadd.f32 %v610, %v567
      %v643 = vadd.f32 %v611, %v569
      %v644 = vadd.f32 %v612, %v572
      %v645 = vadd.f32 %v613, %v574
      %v646 = vadd.f32 %v614, %v577
      %v647 = vadd.f32 %v615, %v579
      %v648 = vadd.f32 %v616, %v582
      %v649 = vadd.f32 %v617, %v584
      %650 = vst [vmem:[#allocation2] sm:$0xff] %v618
      %651 = vst [vmem:[#allocation2 + $0x8] sm:$0xff] %v619
      %652 = vst [vmem:[#allocation2 + $0x10] sm:$0xff] %v620
      %653 = vst [vmem:[#allocation2 + $0x18] sm:$0xff] %v621
      %654 = vst [vmem:[#allocation2 + $0x20] sm:$0xff] %v622
      %655 = vst [vmem:[#allocation2 + $0x28] sm:$0xff] %v623
      %656 = vst [vmem:[#allocation2 + $0x30] sm:$0xff] %v624
      %657 = vst [vmem:[#allocation2 + $0x38] sm:$0xff] %v625
      %658 = vst [vmem:[#allocation2 + $0x40] sm:$0xff] %v626
      %659 = vst [vmem:[#allocation2 + $0x48] sm:$0xff] %v627
      %660 = vst [vmem:[#allocation2 + $0x50] sm:$0xff] %v628
      %661 = vst [vmem:[#allocation2 + $0x58] sm:$0xff] %v629
      %662 = vst [vmem:[#allocation2 + $0x60] sm:$0xff] %v630
      %663 = vst [vmem:[#allocation2 + $0x68] sm:$0xff] %v631
      %664 = vst [vmem:[#allocation2 + $0x70] sm:$0xff] %v632
      %665 = vst [vmem:[#allocation2 + $0x78] sm:$0xff] %v633
      %666 = vst [vmem:[#allocation2 + $0x80] sm:$0xff] %v634
      %667 = vst [vmem:[#allocation2 + $0x88] sm:$0xff] %v635
      %668 = vst [vmem:[#allocation2 + $0x90] sm:$0xff] %v636
      %669 = vst [vmem:[#allocation2 + $0x98] sm:$0xff] %v637
      %670 = vst [vmem:[#allocation2 + $0xa0] sm:$0xff] %v638
      %671 = vst [vmem:[#allocation2 + $0xa8] sm:$0xff] %v639
      %672 = vst [vmem:[#allocation2 + $0xb0] sm:$0xff] %v640
      %673 = vst [vmem:[#allocation2 + $0xb8] sm:$0xff] %v641
      %674 = vst [vmem:[#allocation2 + $0xc0] sm:$0xff] %v642
      %675 = vst [vmem:[#allocation2 + $0xc8] sm:$0xff] %v643
      %676 = vst [vmem:[#allocation2 + $0xd0] sm:$0xff] %v644
      %677 = vst [vmem:[#allocation2 + $0xd8] sm:$0xff] %v645
      %678 = vst [vmem:[#allocation2 + $0xe0] sm:$0xff] %v646
      %679 = vst [vmem:[#allocation2 + $0xe8] sm:$0xff] %v647
      %680 = vst [vmem:[#allocation2 + $0xf0] sm:$0xff] %v648
      %681 = vst [vmem:[#allocation2 + $0xf8] sm:$0xff] %v649
      %v682 = vld [vmem:[%s165 + $0x1] sm:$0xff]
      %v683 = vld [vmem:[%s165 + $0x9] sm:$0xff]
      %v684 = vld [vmem:[%s165 + $0x19] sm:$0xff]
      %v685 = vld [vmem:[%s165 + $0x21] sm:$0xff]
      %v686 = vld [vmem:[%s165 + $0x31] sm:$0xff]
      %v687 = vld [vmem:[%s165 + $0x39] sm:$0xff]
      %v688 = vld [vmem:[%s165 + $0x49] sm:$0xff]
      %v689 = vld [vmem:[%s165 + $0x51] sm:$0xff]
      %v690 = vld [vmem:[%s165 + $0x61] sm:$0xff]
      %v691 = vld [vmem:[%s165 + $0x69] sm:$0xff]
      %v692 = vld [vmem:[%s165 + $0x79] sm:$0xff]
      %v693 = vld [vmem:[%s165 + $0x81] sm:$0xff]
      %v694 = vld [vmem:[%s165 + $0x91] sm:$0xff]
      %v695 = vld [vmem:[%s165 + $0x99] sm:$0xff]
      %v696 = vld [vmem:[%s165 + $0xa9] sm:$0xff]
      %v697 = vld [vmem:[%s165 + $0xb1] sm:$0xff]
      %v698 = vld [vmem:[%s165 + $0xc1] sm:$0xff]
      %v699 = vld [vmem:[%s165 + $0xc9] sm:$0xff]
      %v700 = vld [vmem:[%s165 + $0xd9] sm:$0xff]
      %v701 = vld [vmem:[%s165 + $0xe1] sm:$0xff]
      %v702 = vld [vmem:[%s165 + $0xf1] sm:$0xff]
      %v703 = vld [vmem:[%s165 + $0xf9] sm:$0xff]
      %v704 = vld [vmem:[%s165 + $0x109] sm:$0xff]
      %v705 = vld [vmem:[%s165 + $0x111] sm:$0xff]
      %v706 = vld [vmem:[%s165 + $0x121] sm:$0xff]
      %v707 = vld [vmem:[%s165 + $0x129] sm:$0xff]
      %v708 = vld [vmem:[%s165 + $0x139] sm:$0xff]
      %v709 = vld [vmem:[%s165 + $0x141] sm:$0xff]
      %v710 = vld [vmem:[%s165 + $0x151] sm:$0xff]
      %v711 = vld [vmem:[%s165 + $0x159] sm:$0xff]
      %v712 = vld [vmem:[%s165 + $0x169] sm:$0xff]
      %v713 = vld [vmem:[%s165 + $0x171] sm:$0xff]
      %v714 = vpack.c.bf16 %v683, %v682
      %v715 = vpack.c.bf16 %v685, %v684
      %v716 = vpack.c.bf16 %v687, %v686
      %v717 = vpack.c.bf16 %v689, %v688
      %v718 = vpack.c.bf16 %v691, %v690
      %v719 = vpack.c.bf16 %v693, %v692
      %v720 = vpack.c.bf16 %v695, %v694
      %v721 = vpack.c.bf16 %v697, %v696
      %v722 = vpack.c.bf16 %v699, %v698
      %v723 = vpack.c.bf16 %v701, %v700
      %v724 = vpack.c.bf16 %v703, %v702
      %v725 = vpack.c.bf16 %v705, %v704
      %v726 = vpack.c.bf16 %v707, %v706
      %v727 = vpack.c.bf16 %v709, %v708
      %v728 = vpack.c.bf16 %v711, %v710
      %v729 = vpack.c.bf16 %v713, %v712
      %s730 = scalar_lea.vmem %s1, 4
      %v731 = vld [vmem:[%s730] sm:$0x3]
      %v733 = vsel %vm221, %v714, 0
      %v736 = vsel %vm221, %v715, 0
      %v739 = vsel %vm221, %v716, 0
      %v742 = vsel %vm221, %v717, 0
      %v745 = vsel %vm221, %v718, 0
      %v748 = vsel %vm221, %v719, 0
      %v751 = vsel %vm221, %v720, 0
      %v754 = vsel %vm221, %v721, 0
      %v757 = vsel %vm221, %v722, 0
      %v760 = vsel %vm221, %v723, 0
      %v763 = vsel %vm221, %v724, 0
      %v766 = vsel %vm221, %v725, 0
      %v769 = vsel %vm221, %v726, 0
      %v772 = vsel %vm221, %v727, 0
      %v775 = vsel %vm221, %v728, 0
      %v778 = vsel %vm221, %v729, 0
      %v781 = vsel %vm270, %v731, 0
      %783 = vmatpush.bf16.msra.mxu0 0
      %784 = vmatpush.bf16.msra.mxu0 0
      %785 = vmatpush.bf16.msra.mxu0 0
      %786 = vmatpush.bf16.msra.mxu0 0
      %787 = vmatpush.bf16.msra.mxu0 0
      %788 = vmatpush.bf16.msra.mxu0 0
      %789 = vmatpush.bf16.msra.mxu0 0
      %790 = vmatpush.bf16.msra.mxu0 %v781
      %791 = vmatmul.bf16.gmra.mxu0 %v733
      %v792 = vpop.f32.mrf.mxu0
      %v793 = vadd.f32 0.0, %v792
      %v794 = vpop.f32.mrf.mxu0
      %v795 = vadd.f32 0.0, %v794
      %796 = vmatmul.bf16.gmra.mxu0 %v736
      %v797 = vpop.f32.mrf.mxu0
      %v798 = vadd.f32 0.0, %v797
      %v799 = vpop.f32.mrf.mxu0
      %v800 = vadd.f32 0.0, %v799
      %801 = vmatmul.bf16.gmra.mxu0 %v739
      %v802 = vpop.f32.mrf.mxu0
      %v803 = vadd.f32 0.0, %v802
      %v804 = vpop.f32.mrf.mxu0
      %v805 = vadd.f32 0.0, %v804
      %806 = vmatmul.bf16.gmra.mxu0 %v742
      %v807 = vpop.f32.mrf.mxu0
      %v808 = vadd.f32 0.0, %v807
      %v809 = vpop.f32.mrf.mxu0
      %v810 = vadd.f32 0.0, %v809
      %811 = vmatmul.bf16.gmra.mxu0 %v745
      %v812 = vpop.f32.mrf.mxu0
      %v813 = vadd.f32 0.0, %v812
      %v814 = vpop.f32.mrf.mxu0
      %v815 = vadd.f32 0.0, %v814
      %816 = vmatmul.bf16.gmra.mxu0 %v748
      %v817 = vpop.f32.mrf.mxu0
      %v818 = vadd.f32 0.0, %v817
      %v819 = vpop.f32.mrf.mxu0
      %v820 = vadd.f32 0.0, %v819
      %821 = vmatmul.bf16.gmra.mxu0 %v751
      %v822 = vpop.f32.mrf.mxu0
      %v823 = vadd.f32 0.0, %v822
      %v824 = vpop.f32.mrf.mxu0
      %v825 = vadd.f32 0.0, %v824
      %826 = vmatmul.bf16.gmra.mxu0 %v754
      %v827 = vpop.f32.mrf.mxu0
      %v828 = vadd.f32 0.0, %v827
      %v829 = vpop.f32.mrf.mxu0
      %v830 = vadd.f32 0.0, %v829
      %831 = vmatmul.bf16.gmra.mxu0 %v757
      %v832 = vpop.f32.mrf.mxu0
      %v833 = vadd.f32 0.0, %v832
      %v834 = vpop.f32.mrf.mxu0
      %v835 = vadd.f32 0.0, %v834
      %836 = vmatmul.bf16.gmra.mxu0 %v760
      %v837 = vpop.f32.mrf.mxu0
      %v838 = vadd.f32 0.0, %v837
      %v839 = vpop.f32.mrf.mxu0
      %v840 = vadd.f32 0.0, %v839
      %841 = vmatmul.bf16.gmra.mxu0 %v763
      %v842 = vpop.f32.mrf.mxu0
      %v843 = vadd.f32 0.0, %v842
      %v844 = vpop.f32.mrf.mxu0
      %v845 = vadd.f32 0.0, %v844
      %846 = vmatmul.bf16.gmra.mxu0 %v766
      %v847 = vpop.f32.mrf.mxu0
      %v848 = vadd.f32 0.0, %v847
      %v849 = vpop.f32.mrf.mxu0
      %v850 = vadd.f32 0.0, %v849
      %851 = vmatmul.bf16.gmra.mxu0 %v769
      %v852 = vpop.f32.mrf.mxu0
      %v853 = vadd.f32 0.0, %v852
      %v854 = vpop.f32.mrf.mxu0
      %v855 = vadd.f32 0.0, %v854
      %856 = vmatmul.bf16.gmra.mxu0 %v772
      %v857 = vpop.f32.mrf.mxu0
      %v858 = vadd.f32 0.0, %v857
      %v859 = vpop.f32.mrf.mxu0
      %v860 = vadd.f32 0.0, %v859
      %861 = vmatmul.bf16.gmra.mxu0 %v775
      %v862 = vpop.f32.mrf.mxu0
      %v863 = vadd.f32 0.0, %v862
      %v864 = vpop.f32.mrf.mxu0
      %v865 = vadd.f32 0.0, %v864
      %866 = vmatmul.bf16.gmra.mxu0 %v778
      %v867 = vpop.f32.mrf.mxu0
      %v868 = vadd.f32 0.0, %v867
      %v869 = vpop.f32.mrf.mxu0
      %v870 = vadd.f32 0.0, %v869
      %871 = vdwg.mxu0
      %v872 = vld [vmem:[#allocation2] sm:$0xff]
      %v873 = vld [vmem:[#allocation2 + $0x8] sm:$0xff]
      %v874 = vld [vmem:[#allocation2 + $0x10] sm:$0xff]
      %v875 = vld [vmem:[#allocation2 + $0x18] sm:$0xff]
      %v876 = vld [vmem:[#allocation2 + $0x20] sm:$0xff]
      %v877 = vld [vmem:[#allocation2 + $0x28] sm:$0xff]
      %v878 = vld [vmem:[#allocation2 + $0x30] sm:$0xff]
      %v879 = vld [vmem:[#allocation2 + $0x38] sm:$0xff]
      %v880 = vld [vmem:[#allocation2 + $0x40] sm:$0xff]
      %v881 = vld [vmem:[#allocation2 + $0x48] sm:$0xff]
      %v882 = vld [vmem:[#allocation2 + $0x50] sm:$0xff]
      %v883 = vld [vmem:[#allocation2 + $0x58] sm:$0xff]
      %v884 = vld [vmem:[#allocation2 + $0x60] sm:$0xff]
      %v885 = vld [vmem:[#allocation2 + $0x68] sm:$0xff]
      %v886 = vld [vmem:[#allocation2 + $0x70] sm:$0xff]
      %v887 = vld [vmem:[#allocation2 + $0x78] sm:$0xff]
      %v888 = vld [vmem:[#allocation2 + $0x80] sm:$0xff]
      %v889 = vld [vmem:[#allocation2 + $0x88] sm:$0xff]
      %v890 = vld [vmem:[#allocation2 + $0x90] sm:$0xff]
      %v891 = vld [vmem:[#allocation2 + $0x98] sm:$0xff]
      %v892 = vld [vmem:[#allocation2 + $0xa0] sm:$0xff]
      %v893 = vld [vmem:[#allocation2 + $0xa8] sm:$0xff]
      %v894 = vld [vmem:[#allocation2 + $0xb0] sm:$0xff]
      %v895 = vld [vmem:[#allocation2 + $0xb8] sm:$0xff]
      %v896 = vld [vmem:[#allocation2 + $0xc0] sm:$0xff]
      %v897 = vld [vmem:[#allocation2 + $0xc8] sm:$0xff]
      %v898 = vld [vmem:[#allocation2 + $0xd0] sm:$0xff]
      %v899 = vld [vmem:[#allocation2 + $0xd8] sm:$0xff]
      %v900 = vld [vmem:[#allocation2 + $0xe0] sm:$0xff]
      %v901 = vld [vmem:[#allocation2 + $0xe8] sm:$0xff]
      %v902 = vld [vmem:[#allocation2 + $0xf0] sm:$0xff]
      %v903 = vld [vmem:[#allocation2 + $0xf8] sm:$0xff]
      %v904 = vadd.f32 %v872, %v793
      %v905 = vadd.f32 %v873, %v795
      %v906 = vadd.f32 %v874, %v798
      %v907 = vadd.f32 %v875, %v800
      %v908 = vadd.f32 %v876, %v803
      %v909 = vadd.f32 %v877, %v805
      %v910 = vadd.f32 %v878, %v808
      %v911 = vadd.f32 %v879, %v810
      %v912 = vadd.f32 %v880, %v813
      %v913 = vadd.f32 %v881, %v815
      %v914 = vadd.f32 %v882, %v818
      %v915 = vadd.f32 %v883, %v820
      %v916 = vadd.f32 %v884, %v823
      %v917 = vadd.f32 %v885, %v825
      %v918 = vadd.f32 %v886, %v828
      %v919 = vadd.f32 %v887, %v830
      %v920 = vadd.f32 %v888, %v833
      %v921 = vadd.f32 %v889, %v835
      %v922 = vadd.f32 %v890, %v838
      %v923 = vadd.f32 %v891, %v840
      %v924 = vadd.f32 %v892, %v843
      %v925 = vadd.f32 %v893, %v845
      %v926 = vadd.f32 %v894, %v848
      %v927 = vadd.f32 %v895, %v850
      %v928 = vadd.f32 %v896, %v853
      %v929 = vadd.f32 %v897, %v855
      %v930 = vadd.f32 %v898, %v858
      %v931 = vadd.f32 %v899, %v860
      %v932 = vadd.f32 %v900, %v863
      %v933 = vadd.f32 %v901, %v865
      %v934 = vadd.f32 %v902, %v868
      %v935 = vadd.f32 %v903, %v870
      %936 = vst [vmem:[#allocation2] sm:$0xff] %v904
      %937 = vst [vmem:[#allocation2 + $0x8] sm:$0xff] %v905
      %938 = vst [vmem:[#allocation2 + $0x10] sm:$0xff] %v906
      %939 = vst [vmem:[#allocation2 + $0x18] sm:$0xff] %v907
      %940 = vst [vmem:[#allocation2 + $0x20] sm:$0xff] %v908
      %941 = vst [vmem:[#allocation2 + $0x28] sm:$0xff] %v909
      %942 = vst [vmem:[#allocation2 + $0x30] sm:$0xff] %v910
      %943 = vst [vmem:[#allocation2 + $0x38] sm:$0xff] %v911
      %944 = vst [vmem:[#allocation2 + $0x40] sm:$0xff] %v912
      %945 = vst [vmem:[#allocation2 + $0x48] sm:$0xff] %v913
      %946 = vst [vmem:[#allocation2 + $0x50] sm:$0xff] %v914
      %947 = vst [vmem:[#allocation2 + $0x58] sm:$0xff] %v915
      %948 = vst [vmem:[#allocation2 + $0x60] sm:$0xff] %v916
      %949 = vst [vmem:[#allocation2 + $0x68] sm:$0xff] %v917
      %950 = vst [vmem:[#allocation2 + $0x70] sm:$0xff] %v918
      %951 = vst [vmem:[#allocation2 + $0x78] sm:$0xff] %v919
      %952 = vst [vmem:[#allocation2 + $0x80] sm:$0xff] %v920
      %953 = vst [vmem:[#allocation2 + $0x88] sm:$0xff] %v921
      %954 = vst [vmem:[#allocation2 + $0x90] sm:$0xff] %v922
      %955 = vst [vmem:[#allocation2 + $0x98] sm:$0xff] %v923
      %956 = vst [vmem:[#allocation2 + $0xa0] sm:$0xff] %v924
      %957 = vst [vmem:[#allocation2 + $0xa8] sm:$0xff] %v925
      %958 = vst [vmem:[#allocation2 + $0xb0] sm:$0xff] %v926
      %959 = vst [vmem:[#allocation2 + $0xb8] sm:$0xff] %v927
      %960 = vst [vmem:[#allocation2 + $0xc0] sm:$0xff] %v928
      %961 = vst [vmem:[#allocation2 + $0xc8] sm:$0xff] %v929
      %962 = vst [vmem:[#allocation2 + $0xd0] sm:$0xff] %v930
      %963 = vst [vmem:[#allocation2 + $0xd8] sm:$0xff] %v931
      %964 = vst [vmem:[#allocation2 + $0xe0] sm:$0xff] %v932
      %965 = vst [vmem:[#allocation2 + $0xe8] sm:$0xff] %v933
      %966 = vst [vmem:[#allocation2 + $0xf0] sm:$0xff] %v934
      %967 = vst [vmem:[#allocation2 + $0xf8] sm:$0xff] %v935
      %s968 = scalar_lea.vmem %s165, 816
      %v969 = vld [vmem:[%s968] sm:$0xff]
      %v970 = vld [vmem:[%s968 + $0x8] sm:$0xff]
      %v971 = vld [vmem:[%s968 + $0x18] sm:$0xff]
      %v972 = vld [vmem:[%s968 + $0x20] sm:$0xff]
      %v973 = vld [vmem:[%s968 + $0x30] sm:$0xff]
      %v974 = vld [vmem:[%s968 + $0x38] sm:$0xff]
      %v975 = vld [vmem:[%s968 + $0x48] sm:$0xff]
      %v976 = vld [vmem:[%s968 + $0x50] sm:$0xff]
      %v977 = vld [vmem:[%s968 + $0x60] sm:$0xff]
      %v978 = vld [vmem:[%s968 + $0x68] sm:$0xff]
      %v979 = vld [vmem:[%s968 + $0x78] sm:$0xff]
      %v980 = vld [vmem:[%s968 + $0x80] sm:$0xff]
      %v981 = vld [vmem:[%s968 + $0x90] sm:$0xff]
      %v982 = vld [vmem:[%s968 + $0x98] sm:$0xff]
      %v983 = vld [vmem:[%s968 + $0xa8] sm:$0xff]
      %v984 = vld [vmem:[%s968 + $0xb0] sm:$0xff]
      %v985 = vld [vmem:[%s968 + $0xc0] sm:$0xff]
      %v986 = vld [vmem:[%s968 + $0xc8] sm:$0xff]
      %v987 = vld [vmem:[%s968 + $0xd8] sm:$0xff]
      %v988 = vld [vmem:[%s968 + $0xe0] sm:$0xff]
      %v989 = vld [vmem:[%s968 + $0xf0] sm:$0xff]
      %v990 = vld [vmem:[%s968 + $0xf8] sm:$0xff]
      %v991 = vld [vmem:[%s968 + $0x108] sm:$0xff]
      %v992 = vld [vmem:[%s968 + $0x110] sm:$0xff]
      %v993 = vld [vmem:[%s968 + $0x120] sm:$0xff]
      %v994 = vld [vmem:[%s968 + $0x128] sm:$0xff]
      %v995 = vld [vmem:[%s968 + $0x138] sm:$0xff]
      %v996 = vld [vmem:[%s968 + $0x140] sm:$0xff]
      %v997 = vld [vmem:[%s968 + $0x150] sm:$0xff]
      %v998 = vld [vmem:[%s968 + $0x158] sm:$0xff]
      %v999 = vld [vmem:[%s968 + $0x168] sm:$0xff]
      %v1000 = vld [vmem:[%s968 + $0x170] sm:$0xff]
      %v1001 = vpack.c.bf16 %v970, %v969
      %v1002 = vpack.c.bf16 %v972, %v971
      %v1003 = vpack.c.bf16 %v974, %v973
      %v1004 = vpack.c.bf16 %v976, %v975
      %v1005 = vpack.c.bf16 %v978, %v977
      %v1006 = vpack.c.bf16 %v980, %v979
      %v1007 = vpack.c.bf16 %v982, %v981
      %v1008 = vpack.c.bf16 %v984, %v983
      %v1009 = vpack.c.bf16 %v986, %v985
      %v1010 = vpack.c.bf16 %v988, %v987
      %v1011 = vpack.c.bf16 %v990, %v989
      %v1012 = vpack.c.bf16 %v992, %v991
      %v1013 = vpack.c.bf16 %v994, %v993
      %v1014 = vpack.c.bf16 %v996, %v995
      %v1015 = vpack.c.bf16 %v998, %v997
      %v1016 = vpack.c.bf16 %v1000, %v999
      %s1017 = scalar_lea.vmem %s1, 6
      %v1018 = vld [vmem:[%s1017] sm:$0x3]
      %v1020 = vsel %vm221, %v1001, 0
      %v1023 = vsel %vm221, %v1002, 0
      %v1026 = vsel %vm221, %v1003, 0
      %v1029 = vsel %vm221, %v1004, 0
      %v1032 = vsel %vm221, %v1005, 0
      %v1035 = vsel %vm221, %v1006, 0
      %v1038 = vsel %vm221, %v1007, 0
      %v1041 = vsel %vm221, %v1008, 0
      %v1044 = vsel %vm221, %v1009, 0
      %v1047 = vsel %vm221, %v1010, 0
      %v1050 = vsel %vm221, %v1011, 0
      %v1053 = vsel %vm221, %v1012, 0
      %v1056 = vsel %vm221, %v1013, 0
      %v1059 = vsel %vm221, %v1014, 0
      %v1062 = vsel %vm221, %v1015, 0
      %v1065 = vsel %vm221, %v1016, 0
      %v1068 = vsel %vm270, %v1018, 0
      %1070 = vmatpush.bf16.msra.mxu0 0
      %1071 = vmatpush.bf16.msra.mxu0 0
      %1072 = vmatpush.bf16.msra.mxu0 0
      %1073 = vmatpush.bf16.msra.mxu0 0
      %1074 = vmatpush.bf16.msra.mxu0 0
      %1075 = vmatpush.bf16.msra.mxu0 0
      %1076 = vmatpush.bf16.msra.mxu0 0
      %1077 = vmatpush.bf16.msra.mxu0 %v1068
      %1078 = vmatmul.bf16.gmra.mxu0 %v1020
      %v1079 = vpop.f32.mrf.mxu0
      %v1080 = vadd.f32 0.0, %v1079
      %v1081 = vpop.f32.mrf.mxu0
      %v1082 = vadd.f32 0.0, %v1081
      %1083 = vmatmul.bf16.gmra.mxu0 %v1023
      %v1084 = vpop.f32.mrf.mxu0
      %v1085 = vadd.f32 0.0, %v1084
      %v1086 = vpop.f32.mrf.mxu0
      %v1087 = vadd.f32 0.0, %v1086
      %1088 = vmatmul.bf16.gmra.mxu0 %v1026
      %v1089 = vpop.f32.mrf.mxu0
      %v1090 = vadd.f32 0.0, %v1089
      %v1091 = vpop.f32.mrf.mxu0
      %v1092 = vadd.f32 0.0, %v1091
      %1093 = vmatmul.bf16.gmra.mxu0 %v1029
      %v1094 = vpop.f32.mrf.mxu0
      %v1095 = vadd.f32 0.0, %v1094
      %v1096 = vpop.f32.mrf.mxu0
      %v1097 = vadd.f32 0.0, %v1096
      %1098 = vmatmul.bf16.gmra.mxu0 %v1032
      %v1099 = vpop.f32.mrf.mxu0
      %v1100 = vadd.f32 0.0, %v1099
      %v1101 = vpop.f32.mrf.mxu0
      %v1102 = vadd.f32 0.0, %v1101
      %1103 = vmatmul.bf16.gmra.mxu0 %v1035
      %v1104 = vpop.f32.mrf.mxu0
      %v1105 = vadd.f32 0.0, %v1104
      %v1106 = vpop.f32.mrf.mxu0
      %v1107 = vadd.f32 0.0, %v1106
      %1108 = vmatmul.bf16.gmra.mxu0 %v1038
      %v1109 = vpop.f32.mrf.mxu0
      %v1110 = vadd.f32 0.0, %v1109
      %v1111 = vpop.f32.mrf.mxu0
      %v1112 = vadd.f32 0.0, %v1111
      %1113 = vmatmul.bf16.gmra.mxu0 %v1041
      %v1114 = vpop.f32.mrf.mxu0
      %v1115 = vadd.f32 0.0, %v1114
      %v1116 = vpop.f32.mrf.mxu0
      %v1117 = vadd.f32 0.0, %v1116
      %1118 = vmatmul.bf16.gmra.mxu0 %v1044
      %v1119 = vpop.f32.mrf.mxu0
      %v1120 = vadd.f32 0.0, %v1119
      %v1121 = vpop.f32.mrf.mxu0
      %v1122 = vadd.f32 0.0, %v1121
      %1123 = vmatmul.bf16.gmra.mxu0 %v1047
      %v1124 = vpop.f32.mrf.mxu0
      %v1125 = vadd.f32 0.0, %v1124
      %v1126 = vpop.f32.mrf.mxu0
      %v1127 = vadd.f32 0.0, %v1126
      %1128 = vmatmul.bf16.gmra.mxu0 %v1050
      %v1129 = vpop.f32.mrf.mxu0
      %v1130 = vadd.f32 0.0, %v1129
      %v1131 = vpop.f32.mrf.mxu0
      %v1132 = vadd.f32 0.0, %v1131
      %1133 = vmatmul.bf16.gmra.mxu0 %v1053
      %v1134 = vpop.f32.mrf.mxu0
      %v1135 = vadd.f32 0.0, %v1134
      %v1136 = vpop.f32.mrf.mxu0
      %v1137 = vadd.f32 0.0, %v1136
      %1138 = vmatmul.bf16.gmra.mxu0 %v1056
      %v1139 = vpop.f32.mrf.mxu0
      %v1140 = vadd.f32 0.0, %v1139
      %v1141 = vpop.f32.mrf.mxu0
      %v1142 = vadd.f32 0.0, %v1141
      %1143 = vmatmul.bf16.gmra.mxu0 %v1059
      %v1144 = vpop.f32.mrf.mxu0
      %v1145 = vadd.f32 0.0, %v1144
      %v1146 = vpop.f32.mrf.mxu0
      %v1147 = vadd.f32 0.0, %v1146
      %1148 = vmatmul.bf16.gmra.mxu0 %v1062
      %v1149 = vpop.f32.mrf.mxu0
      %v1150 = vadd.f32 0.0, %v1149
      %v1151 = vpop.f32.mrf.mxu0
      %v1152 = vadd.f32 0.0, %v1151
      %1153 = vmatmul.bf16.gmra.mxu0 %v1065
      %v1154 = vpop.f32.mrf.mxu0
      %v1155 = vadd.f32 0.0, %v1154
      %v1156 = vpop.f32.mrf.mxu0
      %v1157 = vadd.f32 0.0, %v1156
      %1158 = vdwg.mxu0
      %v1159 = vld [vmem:[#allocation2] sm:$0xff]
      %v1160 = vld [vmem:[#allocation2 + $0x8] sm:$0xff]
      %v1161 = vld [vmem:[#allocation2 + $0x10] sm:$0xff]
      %v1162 = vld [vmem:[#allocation2 + $0x18] sm:$0xff]
      %v1163 = vld [vmem:[#allocation2 + $0x20] sm:$0xff]
      %v1164 = vld [vmem:[#allocation2 + $0x28] sm:$0xff]
      %v1165 = vld [vmem:[#allocation2 + $0x30] sm:$0xff]
      %v1166 = vld [vmem:[#allocation2 + $0x38] sm:$0xff]
      %v1167 = vld [vmem:[#allocation2 + $0x40] sm:$0xff]
      %v1168 = vld [vmem:[#allocation2 + $0x48] sm:$0xff]
      %v1169 = vld [vmem:[#allocation2 + $0x50] sm:$0xff]
      %v1170 = vld [vmem:[#allocation2 + $0x58] sm:$0xff]
      %v1171 = vld [vmem:[#allocation2 + $0x60] sm:$0xff]
      %v1172 = vld [vmem:[#allocation2 + $0x68] sm:$0xff]
      %v1173 = vld [vmem:[#allocation2 + $0x70] sm:$0xff]
      %v1174 = vld [vmem:[#allocation2 + $0x78] sm:$0xff]
      %v1175 = vld [vmem:[#allocation2 + $0x80] sm:$0xff]
      %v1176 = vld [vmem:[#allocation2 + $0x88] sm:$0xff]
      %v1177 = vld [vmem:[#allocation2 + $0x90] sm:$0xff]
      %v1178 = vld [vmem:[#allocation2 + $0x98] sm:$0xff]
      %v1179 = vld [vmem:[#allocation2 + $0xa0] sm:$0xff]
      %v1180 = vld [vmem:[#allocation2 + $0xa8] sm:$0xff]
      %v1181 = vld [vmem:[#allocation2 + $0xb0] sm:$0xff]
      %v1182 = vld [vmem:[#allocation2 + $0xb8] sm:$0xff]
      %v1183 = vld [vmem:[#allocation2 + $0xc0] sm:$0xff]
      %v1184 = vld [vmem:[#allocation2 + $0xc8] sm:$0xff]
      %v1185 = vld [vmem:[#allocation2 + $0xd0] sm:$0xff]
      %v1186 = vld [vmem:[#allocation2 + $0xd8] sm:$0xff]
      %v1187 = vld [vmem:[#allocation2 + $0xe0] sm:$0xff]
      %v1188 = vld [vmem:[#allocation2 + $0xe8] sm:$0xff]
      %v1189 = vld [vmem:[#allocation2 + $0xf0] sm:$0xff]
      %v1190 = vld [vmem:[#allocation2 + $0xf8] sm:$0xff]
      %v1191 = vadd.f32 %v1159, %v1080
      %v1192 = vadd.f32 %v1160, %v1082
      %v1193 = vadd.f32 %v1161, %v1085
      %v1194 = vadd.f32 %v1162, %v1087
      %v1195 = vadd.f32 %v1163, %v1090
      %v1196 = vadd.f32 %v1164, %v1092
      %v1197 = vadd.f32 %v1165, %v1095
      %v1198 = vadd.f32 %v1166, %v1097
      %v1199 = vadd.f32 %v1167, %v1100
      %v1200 = vadd.f32 %v1168, %v1102
      %v1201 = vadd.f32 %v1169, %v1105
      %v1202 = vadd.f32 %v1170, %v1107
      %v1203 = vadd.f32 %v1171, %v1110
      %v1204 = vadd.f32 %v1172, %v1112
      %v1205 = vadd.f32 %v1173, %v1115
      %v1206 = vadd.f32 %v1174, %v1117
      %v1207 = vadd.f32 %v1175, %v1120
      %v1208 = vadd.f32 %v1176, %v1122
      %v1209 = vadd.f32 %v1177, %v1125
      %v1210 = vadd.f32 %v1178, %v1127
      %v1211 = vadd.f32 %v1179, %v1130
      %v1212 = vadd.f32 %v1180, %v1132
      %v1213 = vadd.f32 %v1181, %v1135
      %v1214 = vadd.f32 %v1182, %v1137
      %v1215 = vadd.f32 %v1183, %v1140
      %v1216 = vadd.f32 %v1184, %v1142
      %v1217 = vadd.f32 %v1185, %v1145
      %v1218 = vadd.f32 %v1186, %v1147
      %v1219 = vadd.f32 %v1187, %v1150
      %v1220 = vadd.f32 %v1188, %v1152
      %v1221 = vadd.f32 %v1189, %v1155
      %v1222 = vadd.f32 %v1190, %v1157
      %1223 = vst [vmem:[#allocation2] sm:$0xff] %v1191
      %1224 = vst [vmem:[#allocation2 + $0x8] sm:$0xff] %v1192
      %1225 = vst [vmem:[#allocation2 + $0x10] sm:$0xff] %v1193
      %1226 = vst [vmem:[#allocation2 + $0x18] sm:$0xff] %v1194
      %1227 = vst [vmem:[#allocation2 + $0x20] sm:$0xff] %v1195
      %1228 = vst [vmem:[#allocation2 + $0x28] sm:$0xff] %v1196
      %1229 = vst [vmem:[#allocation2 + $0x30] sm:$0xff] %v1197
      %1230 = vst [vmem:[#allocation2 + $0x38] sm:$0xff] %v1198
      %1231 = vst [vmem:[#allocation2 + $0x40] sm:$0xff] %v1199
      %1232 = vst [vmem:[#allocation2 + $0x48] sm:$0xff] %v1200
      %1233 = vst [vmem:[#allocation2 + $0x50] sm:$0xff] %v1201
      %1234 = vst [vmem:[#allocation2 + $0x58] sm:$0xff] %v1202
      %1235 = vst [vmem:[#allocation2 + $0x60] sm:$0xff] %v1203
      %1236 = vst [vmem:[#allocation2 + $0x68] sm:$0xff] %v1204
      %1237 = vst [vmem:[#allocation2 + $0x70] sm:$0xff] %v1205
      %1238 = vst [vmem:[#allocation2 + $0x78] sm:$0xff] %v1206
      %1239 = vst [vmem:[#allocation2 + $0x80] sm:$0xff] %v1207
      %1240 = vst [vmem:[#allocation2 + $0x88] sm:$0xff] %v1208
      %1241 = vst [vmem:[#allocation2 + $0x90] sm:$0xff] %v1209
      %1242 = vst [vmem:[#allocation2 + $0x98] sm:$0xff] %v1210
      %1243 = vst [vmem:[#allocation2 + $0xa0] sm:$0xff] %v1211
      %1244 = vst [vmem:[#allocation2 + $0xa8] sm:$0xff] %v1212
      %1245 = vst [vmem:[#allocation2 + $0xb0] sm:$0xff] %v1213
      %1246 = vst [vmem:[#allocation2 + $0xb8] sm:$0xff] %v1214
      %1247 = vst [vmem:[#allocation2 + $0xc0] sm:$0xff] %v1215
      %1248 = vst [vmem:[#allocation2 + $0xc8] sm:$0xff] %v1216
      %1249 = vst [vmem:[#allocation2 + $0xd0] sm:$0xff] %v1217
      %1250 = vst [vmem:[#allocation2 + $0xd8] sm:$0xff] %v1218
      %1251 = vst [vmem:[#allocation2 + $0xe0] sm:$0xff] %v1219
      %1252 = vst [vmem:[#allocation2 + $0xe8] sm:$0xff] %v1220
      %1253 = vst [vmem:[#allocation2 + $0xf0] sm:$0xff] %v1221
      %1254 = vst [vmem:[#allocation2 + $0xf8] sm:$0xff] %v1222
      %s1255 = scalar_lea.vmem %s165, 1224
      %v1256 = vld [vmem:[%s1255] sm:$0xff]
      %v1257 = vld [vmem:[%s1255 + $0x8] sm:$0xff]
      %v1258 = vld [vmem:[%s1255 + $0x18] sm:$0xff]
      %v1259 = vld [vmem:[%s1255 + $0x20] sm:$0xff]
      %v1260 = vld [vmem:[%s1255 + $0x30] sm:$0xff]
      %v1261 = vld [vmem:[%s1255 + $0x38] sm:$0xff]
      %v1262 = vld [vmem:[%s1255 + $0x48] sm:$0xff]
      %v1263 = vld [vmem:[%s1255 + $0x50] sm:$0xff]
      %v1264 = vld [vmem:[%s1255 + $0x60] sm:$0xff]
      %v1265 = vld [vmem:[%s1255 + $0x68] sm:$0xff]
      %v1266 = vld [vmem:[%s1255 + $0x78] sm:$0xff]
      %v1267 = vld [vmem:[%s1255 + $0x80] sm:$0xff]
      %v1268 = vld [vmem:[%s1255 + $0x90] sm:$0xff]
      %v1269 = vld [vmem:[%s1255 + $0x98] sm:$0xff]
      %v1270 = vld [vmem:[%s1255 + $0xa8] sm:$0xff]
      %v1271 = vld [vmem:[%s1255 + $0xb0] sm:$0xff]
      %v1272 = vld [vmem:[%s1255 + $0xc0] sm:$0xff]
      %v1273 = vld [vmem:[%s1255 + $0xc8] sm:$0xff]
      %v1274 = vld [vmem:[%s1255 + $0xd8] sm:$0xff]
      %v1275 = vld [vmem:[%s1255 + $0xe0] sm:$0xff]
      %v1276 = vld [vmem:[%s1255 + $0xf0] sm:$0xff]
      %v1277 = vld [vmem:[%s1255 + $0xf8] sm:$0xff]
      %v1278 = vld [vmem:[%s1255 + $0x108] sm:$0xff]
      %v1279 = vld [vmem:[%s1255 + $0x110] sm:$0xff]
      %v1280 = vld [vmem:[%s1255 + $0x120] sm:$0xff]
      %v1281 = vld [vmem:[%s1255 + $0x128] sm:$0xff]
      %v1282 = vld [vmem:[%s1255 + $0x138] sm:$0xff]
      %v1283 = vld [vmem:[%s1255 + $0x140] sm:$0xff]
      %v1284 = vld [vmem:[%s1255 + $0x150] sm:$0xff]
      %v1285 = vld [vmem:[%s1255 + $0x158] sm:$0xff]
      %v1286 = vld [vmem:[%s1255 + $0x168] sm:$0xff]
      %v1287 = vld [vmem:[%s1255 + $0x170] sm:$0xff]
      %v1288 = vpack.c.bf16 %v1257, %v1256
      %v1289 = vpack.c.bf16 %v1259, %v1258
      %v1290 = vpack.c.bf16 %v1261, %v1260
      %v1291 = vpack.c.bf16 %v1263, %v1262
      %v1292 = vpack.c.bf16 %v1265, %v1264
      %v1293 = vpack.c.bf16 %v1267, %v1266
      %v1294 = vpack.c.bf16 %v1269, %v1268
      %v1295 = vpack.c.bf16 %v1271, %v1270
      %v1296 = vpack.c.bf16 %v1273, %v1272
      %v1297 = vpack.c.bf16 %v1275, %v1274
      %v1298 = vpack.c.bf16 %v1277, %v1276
      %v1299 = vpack.c.bf16 %v1279, %v1278
      %v1300 = vpack.c.bf16 %v1281, %v1280
      %v1301 = vpack.c.bf16 %v1283, %v1282
      %v1302 = vpack.c.bf16 %v1285, %v1284
      %v1303 = vpack.c.bf16 %v1287, %v1286
      %s1304 = scalar_lea.vmem %s1, 8
      %v1305 = vld [vmem:[%s1304] sm:$0x3]
      %v1307 = vsel %vm221, %v1288, 0
      %v1310 = vsel %vm221, %v1289, 0
      %v1313 = vsel %vm221, %v1290, 0
      %v1316 = vsel %vm221, %v1291, 0
      %v1319 = vsel %vm221, %v1292, 0
      %v1322 = vsel %vm221, %v1293, 0
      %v1325 = vsel %vm221, %v1294, 0
      %v1328 = vsel %vm221, %v1295, 0
      %v1331 = vsel %vm221, %v1296, 0
      %v1334 = vsel %vm221, %v1297, 0
      %v1337 = vsel %vm221, %v1298, 0
      %v1340 = vsel %vm221, %v1299, 0
      %v1343 = vsel %vm221, %v1300, 0
      %v1346 = vsel %vm221, %v1301, 0
      %v1349 = vsel %vm221, %v1302, 0
      %v1352 = vsel %vm221, %v1303, 0
      %v1355 = vsel %vm270, %v1305, 0
      %1357 = vmatpush.bf16.msra.mxu0 0
      %1358 = vmatpush.bf16.msra.mxu0 0
      %1359 = vmatpush.bf16.msra.mxu0 0
      %1360 = vmatpush.bf16.msra.mxu0 0
      %1361 = vmatpush.bf16.msra.mxu0 0
      %1362 = vmatpush.bf16.msra.mxu0 0
      %1363 = vmatpush.bf16.msra.mxu0 0
      %1364 = vmatpush.bf16.msra.mxu0 %v1355
      %1365 = vmatmul.bf16.gmra.mxu0 %v1307
      %v1366 = vpop.f32.mrf.mxu0
      %v1367 = vadd.f32 0.0, %v1366
      %v1368 = vpop.f32.mrf.mxu0
      %v1369 = vadd.f32 0.0, %v1368
      %1370 = vmatmul.bf16.gmra.mxu0 %v1310
      %v1371 = vpop.f32.mrf.mxu0
      %v1372 = vadd.f32 0.0, %v1371
      %v1373 = vpop.f32.mrf.mxu0
      %v1374 = vadd.f32 0.0, %v1373
      %1375 = vmatmul.bf16.gmra.mxu0 %v1313
      %v1376 = vpop.f32.mrf.mxu0
      %v1377 = vadd.f32 0.0, %v1376
      %v1378 = vpop.f32.mrf.mxu0
      %v1379 = vadd.f32 0.0, %v1378
      %1380 = vmatmul.bf16.gmra.mxu0 %v1316
      %v1381 = vpop.f32.mrf.mxu0
      %v1382 = vadd.f32 0.0, %v1381
      %v1383 = vpop.f32.mrf.mxu0
      %v1384 = vadd.f32 0.0, %v1383
      %1385 = vmatmul.bf16.gmra.mxu0 %v1319
      %v1386 = vpop.f32.mrf.mxu0
      %v1387 = vadd.f32 0.0, %v1386
      %v1388 = vpop.f32.mrf.mxu0
      %v1389 = vadd.f32 0.0, %v1388
      %1390 = vmatmul.bf16.gmra.mxu0 %v1322
      %v1391 = vpop.f32.mrf.mxu0
      %v1392 = vadd.f32 0.0, %v1391
      %v1393 = vpop.f32.mrf.mxu0
      %v1394 = vadd.f32 0.0, %v1393
      %1395 = vmatmul.bf16.gmra.mxu0 %v1325
      %v1396 = vpop.f32.mrf.mxu0
      %v1397 = vadd.f32 0.0, %v1396
      %v1398 = vpop.f32.mrf.mxu0
      %v1399 = vadd.f32 0.0, %v1398
      %1400 = vmatmul.bf16.gmra.mxu0 %v1328
      %v1401 = vpop.f32.mrf.mxu0
      %v1402 = vadd.f32 0.0, %v1401
      %v1403 = vpop.f32.mrf.mxu0
      %v1404 = vadd.f32 0.0, %v1403
      %1405 = vmatmul.bf16.gmra.mxu0 %v1331
      %v1406 = vpop.f32.mrf.mxu0
      %v1407 = vadd.f32 0.0, %v1406
      %v1408 = vpop.f32.mrf.mxu0
      %v1409 = vadd.f32 0.0, %v1408
      %1410 = vmatmul.bf16.gmra.mxu0 %v1334
      %v1411 = vpop.f32.mrf.mxu0
      %v1412 = vadd.f32 0.0, %v1411
      %v1413 = vpop.f32.mrf.mxu0
      %v1414 = vadd.f32 0.0, %v1413
      %1415 = vmatmul.bf16.gmra.mxu0 %v1337
      %v1416 = vpop.f32.mrf.mxu0
      %v1417 = vadd.f32 0.0, %v1416
      %v1418 = vpop.f32.mrf.mxu0
      %v1419 = vadd.f32 0.0, %v1418
      %1420 = vmatmul.bf16.gmra.mxu0 %v1340
      %v1421 = vpop.f32.mrf.mxu0
      %v1422 = vadd.f32 0.0, %v1421
      %v1423 = vpop.f32.mrf.mxu0
      %v1424 = vadd.f32 0.0, %v1423
      %1425 = vmatmul.bf16.gmra.mxu0 %v1343
      %v1426 = vpop.f32.mrf.mxu0
      %v1427 = vadd.f32 0.0, %v1426
      %v1428 = vpop.f32.mrf.mxu0
      %v1429 = vadd.f32 0.0, %v1428
      %1430 = vmatmul.bf16.gmra.mxu0 %v1346
      %v1431 = vpop.f32.mrf.mxu0
      %v1432 = vadd.f32 0.0, %v1431
      %v1433 = vpop.f32.mrf.mxu0
      %v1434 = vadd.f32 0.0, %v1433
      %1435 = vmatmul.bf16.gmra.mxu0 %v1349
      %v1436 = vpop.f32.mrf.mxu0
      %v1437 = vadd.f32 0.0, %v1436
      %v1438 = vpop.f32.mrf.mxu0
      %v1439 = vadd.f32 0.0, %v1438
      %1440 = vmatmul.bf16.gmra.mxu0 %v1352
      %v1441 = vpop.f32.mrf.mxu0
      %v1442 = vadd.f32 0.0, %v1441
      %v1443 = vpop.f32.mrf.mxu0
      %v1444 = vadd.f32 0.0, %v1443
      %1445 = vdwg.mxu0
      %v1446 = vld [vmem:[#allocation2] sm:$0xff]
      %v1447 = vld [vmem:[#allocation2 + $0x8] sm:$0xff]
      %v1448 = vld [vmem:[#allocation2 + $0x10] sm:$0xff]
      %v1449 = vld [vmem:[#allocation2 + $0x18] sm:$0xff]
      %v1450 = vld [vmem:[#allocation2 + $0x20] sm:$0xff]
      %v1451 = vld [vmem:[#allocation2 + $0x28] sm:$0xff]
      %v1452 = vld [vmem:[#allocation2 + $0x30] sm:$0xff]
      %v1453 = vld [vmem:[#allocation2 + $0x38] sm:$0xff]
      %v1454 = vld [vmem:[#allocation2 + $0x40] sm:$0xff]
      %v1455 = vld [vmem:[#allocation2 + $0x48] sm:$0xff]
      %v1456 = vld [vmem:[#allocation2 + $0x50] sm:$0xff]
      %v1457 = vld [vmem:[#allocation2 + $0x58] sm:$0xff]
      %v1458 = vld [vmem:[#allocation2 + $0x60] sm:$0xff]
      %v1459 = vld [vmem:[#allocation2 + $0x68] sm:$0xff]
      %v1460 = vld [vmem:[#allocation2 + $0x70] sm:$0xff]
      %v1461 = vld [vmem:[#allocation2 + $0x78] sm:$0xff]
      %v1462 = vld [vmem:[#allocation2 + $0x80] sm:$0xff]
      %v1463 = vld [vmem:[#allocation2 + $0x88] sm:$0xff]
      %v1464 = vld [vmem:[#allocation2 + $0x90] sm:$0xff]
      %v1465 = vld [vmem:[#allocation2 + $0x98] sm:$0xff]
      %v1466 = vld [vmem:[#allocation2 + $0xa0] sm:$0xff]
      %v1467 = vld [vmem:[#allocation2 + $0xa8] sm:$0xff]
      %v1468 = vld [vmem:[#allocation2 + $0xb0] sm:$0xff]
      %v1469 = vld [vmem:[#allocation2 + $0xb8] sm:$0xff]
      %v1470 = vld [vmem:[#allocation2 + $0xc0] sm:$0xff]
      %v1471 = vld [vmem:[#allocation2 + $0xc8] sm:$0xff]
      %v1472 = vld [vmem:[#allocation2 + $0xd0] sm:$0xff]
      %v1473 = vld [vmem:[#allocation2 + $0xd8] sm:$0xff]
      %v1474 = vld [vmem:[#allocation2 + $0xe0] sm:$0xff]
      %v1475 = vld [vmem:[#allocation2 + $0xe8] sm:$0xff]
      %v1476 = vld [vmem:[#allocation2 + $0xf0] sm:$0xff]
      %v1477 = vld [vmem:[#allocation2 + $0xf8] sm:$0xff]
      %v1478 = vadd.f32 %v1446, %v1367
      %v1479 = vadd.f32 %v1447, %v1369
      %v1480 = vadd.f32 %v1448, %v1372
      %v1481 = vadd.f32 %v1449, %v1374
      %v1482 = vadd.f32 %v1450, %v1377
      %v1483 = vadd.f32 %v1451, %v1379
      %v1484 = vadd.f32 %v1452, %v1382
      %v1485 = vadd.f32 %v1453, %v1384
      %v1486 = vadd.f32 %v1454, %v1387
      %v1487 = vadd.f32 %v1455, %v1389
      %v1488 = vadd.f32 %v1456, %v1392
      %v1489 = vadd.f32 %v1457, %v1394
      %v1490 = vadd.f32 %v1458, %v1397
      %v1491 = vadd.f32 %v1459, %v1399
      %v1492 = vadd.f32 %v1460, %v1402
      %v1493 = vadd.f32 %v1461, %v1404
      %v1494 = vadd.f32 %v1462, %v1407
      %v1495 = vadd.f32 %v1463, %v1409
      %v1496 = vadd.f32 %v1464, %v1412
      %v1497 = vadd.f32 %v1465, %v1414
      %v1498 = vadd.f32 %v1466, %v1417
      %v1499 = vadd.f32 %v1467, %v1419
      %v1500 = vadd.f32 %v1468, %v1422
      %v1501 = vadd.f32 %v1469, %v1424
      %v1502 = vadd.f32 %v1470, %v1427
      %v1503 = vadd.f32 %v1471, %v1429
      %v1504 = vadd.f32 %v1472, %v1432
      %v1505 = vadd.f32 %v1473, %v1434
      %v1506 = vadd.f32 %v1474, %v1437
      %v1507 = vadd.f32 %v1475, %v1439
      %v1508 = vadd.f32 %v1476, %v1442
      %v1509 = vadd.f32 %v1477, %v1444
      %1510 = vst [vmem:[#allocation2] sm:$0xff] %v1478
      %1511 = vst [vmem:[#allocation2 + $0x8] sm:$0xff] %v1479
      %1512 = vst [vmem:[#allocation2 + $0x10] sm:$0xff] %v1480
      %1513 = vst [vmem:[#allocation2 + $0x18] sm:$0xff] %v1481
      %1514 = vst [vmem:[#allocation2 + $0x20] sm:$0xff] %v1482
      %1515 = vst [vmem:[#allocation2 + $0x28] sm:$0xff] %v1483
      %1516 = vst [vmem:[#allocation2 + $0x30] sm:$0xff] %v1484
      %1517 = vst [vmem:[#allocation2 + $0x38] sm:$0xff] %v1485
      %1518 = vst [vmem:[#allocation2 + $0x40] sm:$0xff] %v1486
      %1519 = vst [vmem:[#allocation2 + $0x48] sm:$0xff] %v1487
      %1520 = vst [vmem:[#allocation2 + $0x50] sm:$0xff] %v1488
      %1521 = vst [vmem:[#allocation2 + $0x58] sm:$0xff] %v1489
      %1522 = vst [vmem:[#allocation2 + $0x60] sm:$0xff] %v1490
      %1523 = vst [vmem:[#allocation2 + $0x68] sm:$0xff] %v1491
      %1524 = vst [vmem:[#allocation2 + $0x70] sm:$0xff] %v1492
      %1525 = vst [vmem:[#allocation2 + $0x78] sm:$0xff] %v1493
      %1526 = vst [vmem:[#allocation2 + $0x80] sm:$0xff] %v1494
      %1527 = vst [vmem:[#allocation2 + $0x88] sm:$0xff] %v1495
      %1528 = vst [vmem:[#allocation2 + $0x90] sm:$0xff] %v1496
      %1529 = vst [vmem:[#allocation2 + $0x98] sm:$0xff] %v1497
      %1530 = vst [vmem:[#allocation2 + $0xa0] sm:$0xff] %v1498
      %1531 = vst [vmem:[#allocation2 + $0xa8] sm:$0xff] %v1499
      %1532 = vst [vmem:[#allocation2 + $0xb0] sm:$0xff] %v1500
      %1533 = vst [vmem:[#allocation2 + $0xb8] sm:$0xff] %v1501
      %1534 = vst [vmem:[#allocation2 + $0xc0] sm:$0xff] %v1502
      %1535 = vst [vmem:[#allocation2 + $0xc8] sm:$0xff] %v1503
      %1536 = vst [vmem:[#allocation2 + $0xd0] sm:$0xff] %v1504
      %1537 = vst [vmem:[#allocation2 + $0xd8] sm:$0xff] %v1505
      %1538 = vst [vmem:[#allocation2 + $0xe0] sm:$0xff] %v1506
      %1539 = vst [vmem:[#allocation2 + $0xe8] sm:$0xff] %v1507
      %1540 = vst [vmem:[#allocation2 + $0xf0] sm:$0xff] %v1508
      %1541 = vst [vmem:[#allocation2 + $0xf8] sm:$0xff] %v1509
      %v1542 = vld [vmem:[%s968 + $0x1] sm:$0xff]
      %v1543 = vld [vmem:[%s968 + $0x9] sm:$0xff]
      %v1544 = vld [vmem:[%s968 + $0x19] sm:$0xff]
      %v1545 = vld [vmem:[%s968 + $0x21] sm:$0xff]
      %v1546 = vld [vmem:[%s968 + $0x31] sm:$0xff]
      %v1547 = vld [vmem:[%s968 + $0x39] sm:$0xff]
      %v1548 = vld [vmem:[%s968 + $0x49] sm:$0xff]
      %v1549 = vld [vmem:[%s968 + $0x51] sm:$0xff]
      %v1550 = vld [vmem:[%s968 + $0x61] sm:$0xff]
      %v1551 = vld [vmem:[%s968 + $0x69] sm:$0xff]
      %v1552 = vld [vmem:[%s968 + $0x79] sm:$0xff]
      %v1553 = vld [vmem:[%s968 + $0x81] sm:$0xff]
      %v1554 = vld [vmem:[%s968 + $0x91] sm:$0xff]
      %v1555 = vld [vmem:[%s968 + $0x99] sm:$0xff]
      %v1556 = vld [vmem:[%s968 + $0xa9] sm:$0xff]
      %v1557 = vld [vmem:[%s968 + $0xb1] sm:$0xff]
      %v1558 = vld [vmem:[%s968 + $0xc1] sm:$0xff]
      %v1559 = vld [vmem:[%s968 + $0xc9] sm:$0xff]
      %v1560 = vld [vmem:[%s968 + $0xd9] sm:$0xff]
      %v1561 = vld [vmem:[%s968 + $0xe1] sm:$0xff]
      %v1562 = vld [vmem:[%s968 + $0xf1] sm:$0xff]
      %v1563 = vld [vmem:[%s968 + $0xf9] sm:$0xff]
      %v1564 = vld [vmem:[%s968 + $0x109] sm:$0xff]
      %v1565 = vld [vmem:[%s968 + $0x111] sm:$0xff]
      %v1566 = vld [vmem:[%s968 + $0x121] sm:$0xff]
      %v1567 = vld [vmem:[%s968 + $0x129] sm:$0xff]
      %v1568 = vld [vmem:[%s968 + $0x139] sm:$0xff]
      %v1569 = vld [vmem:[%s968 + $0x141] sm:$0xff]
      %v1570 = vld [vmem:[%s968 + $0x151] sm:$0xff]
      %v1571 = vld [vmem:[%s968 + $0x159] sm:$0xff]
      %v1572 = vld [vmem:[%s968 + $0x169] sm:$0xff]
      %v1573 = vld [vmem:[%s968 + $0x171] sm:$0xff]
      %v1574 = vpack.c.bf16 %v1543, %v1542
      %v1575 = vpack.c.bf16 %v1545, %v1544
      %v1576 = vpack.c.bf16 %v1547, %v1546
      %v1577 = vpack.c.bf16 %v1549, %v1548
      %v1578 = vpack.c.bf16 %v1551, %v1550
      %v1579 = vpack.c.bf16 %v1553, %v1552
      %v1580 = vpack.c.bf16 %v1555, %v1554
      %v1581 = vpack.c.bf16 %v1557, %v1556
      %v1582 = vpack.c.bf16 %v1559, %v1558
      %v1583 = vpack.c.bf16 %v1561, %v1560
      %v1584 = vpack.c.bf16 %v1563, %v1562
      %v1585 = vpack.c.bf16 %v1565, %v1564
      %v1586 = vpack.c.bf16 %v1567, %v1566
      %v1587 = vpack.c.bf16 %v1569, %v1568
      %v1588 = vpack.c.bf16 %v1571, %v1570
      %v1589 = vpack.c.bf16 %v1573, %v1572
      %s1590 = scalar_lea.vmem %s1, 10
      %v1591 = vld [vmem:[%s1590] sm:$0x3]
      %v1593 = vsel %vm221, %v1574, 0
      %v1596 = vsel %vm221, %v1575, 0
      %v1599 = vsel %vm221, %v1576, 0
      %v1602 = vsel %vm221, %v1577, 0
      %v1605 = vsel %vm221, %v1578, 0
      %v1608 = vsel %vm221, %v1579, 0
      %v1611 = vsel %vm221, %v1580, 0
      %v1614 = vsel %vm221, %v1581, 0
      %v1617 = vsel %vm221, %v1582, 0
      %v1620 = vsel %vm221, %v1583, 0
      %v1623 = vsel %vm221, %v1584, 0
      %v1626 = vsel %vm221, %v1585, 0
      %v1629 = vsel %vm221, %v1586, 0
      %v1632 = vsel %vm221, %v1587, 0
      %v1635 = vsel %vm221, %v1588, 0
      %v1638 = vsel %vm221, %v1589, 0
      %v1641 = vsel %vm270, %v1591, 0
      %1643 = vmatpush.bf16.msra.mxu0 0
      %1644 = vmatpush.bf16.msra.mxu0 0
      %1645 = vmatpush.bf16.msra.mxu0 0
      %1646 = vmatpush.bf16.msra.mxu0 0
      %1647 = vmatpush.bf16.msra.mxu0 0
      %1648 = vmatpush.bf16.msra.mxu0 0
      %1649 = vmatpush.bf16.msra.mxu0 0
      %1650 = vmatpush.bf16.msra.mxu0 %v1641
      %1651 = vmatmul.bf16.gmra.mxu0 %v1593
      %v1652 = vpop.f32.mrf.mxu0
      %v1653 = vadd.f32 0.0, %v1652
      %v1654 = vpop.f32.mrf.mxu0
      %v1655 = vadd.f32 0.0, %v1654
      %1656 = vmatmul.bf16.gmra.mxu0 %v1596
      %v1657 = vpop.f32.mrf.mxu0
      %v1658 = vadd.f32 0.0, %v1657
      %v1659 = vpop.f32.mrf.mxu0
      %v1660 = vadd.f32 0.0, %v1659
      %1661 = vmatmul.bf16.gmra.mxu0 %v1599
      %v1662 = vpop.f32.mrf.mxu0
      %v1663 = vadd.f32 0.0, %v1662
      %v1664 = vpop.f32.mrf.mxu0
      %v1665 = vadd.f32 0.0, %v1664
      %1666 = vmatmul.bf16.gmra.mxu0 %v1602
      %v1667 = vpop.f32.mrf.mxu0
      %v1668 = vadd.f32 0.0, %v1667
      %v1669 = vpop.f32.mrf.mxu0
      %v1670 = vadd.f32 0.0, %v1669
      %1671 = vmatmul.bf16.gmra.mxu0 %v1605
      %v1672 = vpop.f32.mrf.mxu0
      %v1673 = vadd.f32 0.0, %v1672
      %v1674 = vpop.f32.mrf.mxu0
      %v1675 = vadd.f32 0.0, %v1674
      %1676 = vmatmul.bf16.gmra.mxu0 %v1608
      %v1677 = vpop.f32.mrf.mxu0
      %v1678 = vadd.f32 0.0, %v1677
      %v1679 = vpop.f32.mrf.mxu0
      %v1680 = vadd.f32 0.0, %v1679
      %1681 = vmatmul.bf16.gmra.mxu0 %v1611
      %v1682 = vpop.f32.mrf.mxu0
      %v1683 = vadd.f32 0.0, %v1682
      %v1684 = vpop.f32.mrf.mxu0
      %v1685 = vadd.f32 0.0, %v1684
      %1686 = vmatmul.bf16.gmra.mxu0 %v1614
      %v1687 = vpop.f32.mrf.mxu0
      %v1688 = vadd.f32 0.0, %v1687
      %v1689 = vpop.f32.mrf.mxu0
      %v1690 = vadd.f32 0.0, %v1689
      %1691 = vmatmul.bf16.gmra.mxu0 %v1617
      %v1692 = vpop.f32.mrf.mxu0
      %v1693 = vadd.f32 0.0, %v1692
      %v1694 = vpop.f32.mrf.mxu0
      %v1695 = vadd.f32 0.0, %v1694
      %1696 = vmatmul.bf16.gmra.mxu0 %v1620
      %v1697 = vpop.f32.mrf.mxu0
      %v1698 = vadd.f32 0.0, %v1697
      %v1699 = vpop.f32.mrf.mxu0
      %v1700 = vadd.f32 0.0, %v1699
      %1701 = vmatmul.bf16.gmra.mxu0 %v1623
      %v1702 = vpop.f32.mrf.mxu0
      %v1703 = vadd.f32 0.0, %v1702
      %v1704 = vpop.f32.mrf.mxu0
      %v1705 = vadd.f32 0.0, %v1704
      %1706 = vmatmul.bf16.gmra.mxu0 %v1626
      %v1707 = vpop.f32.mrf.mxu0
      %v1708 = vadd.f32 0.0, %v1707
      %v1709 = vpop.f32.mrf.mxu0
      %v1710 = vadd.f32 0.0, %v1709
      %1711 = vmatmul.bf16.gmra.mxu0 %v1629
      %v1712 = vpop.f32.mrf.mxu0
      %v1713 = vadd.f32 0.0, %v1712
      %v1714 = vpop.f32.mrf.mxu0
      %v1715 = vadd.f32 0.0, %v1714
      %1716 = vmatmul.bf16.gmra.mxu0 %v1632
      %v1717 = vpop.f32.mrf.mxu0
      %v1718 = vadd.f32 0.0, %v1717
      %v1719 = vpop.f32.mrf.mxu0
      %v1720 = vadd.f32 0.0, %v1719
      %1721 = vmatmul.bf16.gmra.mxu0 %v1635
      %v1722 = vpop.f32.mrf.mxu0
      %v1723 = vadd.f32 0.0, %v1722
      %v1724 = vpop.f32.mrf.mxu0
      %v1725 = vadd.f32 0.0, %v1724
      %1726 = vmatmul.bf16.gmra.mxu0 %v1638
      %v1727 = vpop.f32.mrf.mxu0
      %v1728 = vadd.f32 0.0, %v1727
      %v1729 = vpop.f32.mrf.mxu0
      %v1730 = vadd.f32 0.0, %v1729
      %1731 = vdwg.mxu0
      %v1732 = vld [vmem:[#allocation2] sm:$0xff]
      %v1733 = vld [vmem:[#allocation2 + $0x8] sm:$0xff]
      %v1734 = vld [vmem:[#allocation2 + $0x10] sm:$0xff]
      %v1735 = vld [vmem:[#allocation2 + $0x18] sm:$0xff]
      %v1736 = vld [vmem:[#allocation2 + $0x20] sm:$0xff]
      %v1737 = vld [vmem:[#allocation2 + $0x28] sm:$0xff]
      %v1738 = vld [vmem:[#allocation2 + $0x30] sm:$0xff]
      %v1739 = vld [vmem:[#allocation2 + $0x38] sm:$0xff]
      %v1740 = vld [vmem:[#allocation2 + $0x40] sm:$0xff]
      %v1741 = vld [vmem:[#allocation2 + $0x48] sm:$0xff]
      %v1742 = vld [vmem:[#allocation2 + $0x50] sm:$0xff]
      %v1743 = vld [vmem:[#allocation2 + $0x58] sm:$0xff]
      %v1744 = vld [vmem:[#allocation2 + $0x60] sm:$0xff]
      %v1745 = vld [vmem:[#allocation2 + $0x68] sm:$0xff]
      %v1746 = vld [vmem:[#allocation2 + $0x70] sm:$0xff]
      %v1747 = vld [vmem:[#allocation2 + $0x78] sm:$0xff]
      %v1748 = vld [vmem:[#allocation2 + $0x80] sm:$0xff]
      %v1749 = vld [vmem:[#allocation2 + $0x88] sm:$0xff]
      %v1750 = vld [vmem:[#allocation2 + $0x90] sm:$0xff]
      %v1751 = vld [vmem:[#allocation2 + $0x98] sm:$0xff]
      %v1752 = vld [vmem:[#allocation2 + $0xa0] sm:$0xff]
      %v1753 = vld [vmem:[#allocation2 + $0xa8] sm:$0xff]
      %v1754 = vld [vmem:[#allocation2 + $0xb0] sm:$0xff]
      %v1755 = vld [vmem:[#allocation2 + $0xb8] sm:$0xff]
      %v1756 = vld [vmem:[#allocation2 + $0xc0] sm:$0xff]
      %v1757 = vld [vmem:[#allocation2 + $0xc8] sm:$0xff]
      %v1758 = vld [vmem:[#allocation2 + $0xd0] sm:$0xff]
      %v1759 = vld [vmem:[#allocation2 + $0xd8] sm:$0xff]
      %v1760 = vld [vmem:[#allocation2 + $0xe0] sm:$0xff]
      %v1761 = vld [vmem:[#allocation2 + $0xe8] sm:$0xff]
      %v1762 = vld [vmem:[#allocation2 + $0xf0] sm:$0xff]
      %v1763 = vld [vmem:[#allocation2 + $0xf8] sm:$0xff]
      %v1764 = vadd.f32 %v1732, %v1653
      %v1765 = vadd.f32 %v1733, %v1655
      %v1766 = vadd.f32 %v1734, %v1658
      %v1767 = vadd.f32 %v1735, %v1660
      %v1768 = vadd.f32 %v1736, %v1663
      %v1769 = vadd.f32 %v1737, %v1665
      %v1770 = vadd.f32 %v1738, %v1668
      %v1771 = vadd.f32 %v1739, %v1670
      %v1772 = vadd.f32 %v1740, %v1673
      %v1773 = vadd.f32 %v1741, %v1675
      %v1774 = vadd.f32 %v1742, %v1678
      %v1775 = vadd.f32 %v1743, %v1680
      %v1776 = vadd.f32 %v1744, %v1683
      %v1777 = vadd.f32 %v1745, %v1685
      %v1778 = vadd.f32 %v1746, %v1688
      %v1779 = vadd.f32 %v1747, %v1690
      %v1780 = vadd.f32 %v1748, %v1693
      %v1781 = vadd.f32 %v1749, %v1695
      %v1782 = vadd.f32 %v1750, %v1698
      %v1783 = vadd.f32 %v1751, %v1700
      %v1784 = vadd.f32 %v1752, %v1703
      %v1785 = vadd.f32 %v1753, %v1705
      %v1786 = vadd.f32 %v1754, %v1708
      %v1787 = vadd.f32 %v1755, %v1710
      %v1788 = vadd.f32 %v1756, %v1713
      %v1789 = vadd.f32 %v1757, %v1715
      %v1790 = vadd.f32 %v1758, %v1718
      %v1791 = vadd.f32 %v1759, %v1720
      %v1792 = vadd.f32 %v1760, %v1723
      %v1793 = vadd.f32 %v1761, %v1725
      %v1794 = vadd.f32 %v1762, %v1728
      %v1795 = vadd.f32 %v1763, %v1730
      %1796 = vst [vmem:[#allocation2] sm:$0xff] %v1764
      %1797 = vst [vmem:[#allocation2 + $0x8] sm:$0xff] %v1765
      %1798 = vst [vmem:[#allocation2 + $0x10] sm:$0xff] %v1766
      %1799 = vst [vmem:[#allocation2 + $0x18] sm:$0xff] %v1767
      %1800 = vst [vmem:[#allocation2 + $0x20] sm:$0xff] %v1768
      %1801 = vst [vmem:[#allocation2 + $0x28] sm:$0xff] %v1769
      %1802 = vst [vmem:[#allocation2 + $0x30] sm:$0xff] %v1770
      %1803 = vst [vmem:[#allocation2 + $0x38] sm:$0xff] %v1771
      %1804 = vst [vmem:[#allocation2 + $0x40] sm:$0xff] %v1772
      %1805 = vst [vmem:[#allocation2 + $0x48] sm:$0xff] %v1773
      %1806 = vst [vmem:[#allocation2 + $0x50] sm:$0xff] %v1774
      %1807 = vst [vmem:[#allocation2 + $0x58] sm:$0xff] %v1775
      %1808 = vst [vmem:[#allocation2 + $0x60] sm:$0xff] %v1776
      %1809 = vst [vmem:[#allocation2 + $0x68] sm:$0xff] %v1777
      %1810 = vst [vmem:[#allocation2 + $0x70] sm:$0xff] %v1778
      %1811 = vst [vmem:[#allocation2 + $0x78] sm:$0xff] %v1779
      %1812 = vst [vmem:[#allocation2 + $0x80] sm:$0xff] %v1780
      %1813 = vst [vmem:[#allocation2 + $0x88] sm:$0xff] %v1781
      %1814 = vst [vmem:[#allocation2 + $0x90] sm:$0xff] %v1782
      %1815 = vst [vmem:[#allocation2 + $0x98] sm:$0xff] %v1783
      %1816 = vst [vmem:[#allocation2 + $0xa0] sm:$0xff] %v1784
      %1817 = vst [vmem:[#allocation2 + $0xa8] sm:$0xff] %v1785
      %1818 = vst [vmem:[#allocation2 + $0xb0] sm:$0xff] %v1786
      %1819 = vst [vmem:[#allocation2 + $0xb8] sm:$0xff] %v1787
      %1820 = vst [vmem:[#allocation2 + $0xc0] sm:$0xff] %v1788
      %1821 = vst [vmem:[#allocation2 + $0xc8] sm:$0xff] %v1789
      %1822 = vst [vmem:[#allocation2 + $0xd0] sm:$0xff] %v1790
      %1823 = vst [vmem:[#allocation2 + $0xd8] sm:$0xff] %v1791
      %1824 = vst [vmem:[#allocation2 + $0xe0] sm:$0xff] %v1792
      %1825 = vst [vmem:[#allocation2 + $0xe8] sm:$0xff] %v1793
      %1826 = vst [vmem:[#allocation2 + $0xf0] sm:$0xff] %v1794
      %1827 = vst [vmem:[#allocation2 + $0xf8] sm:$0xff] %v1795
      %s1828 = scalar_lea.vmem %s165, 24
      %v1829 = vld [vmem:[%s1828] sm:$0xff]
      %v1830 = vld [vmem:[%s1828 + $0x8] sm:$0xff]
      %v1831 = vld [vmem:[%s1828 + $0x18] sm:$0xff]
      %v1832 = vld [vmem:[%s1828 + $0x20] sm:$0xff]
      %v1833 = vld [vmem:[%s1828 + $0x30] sm:$0xff]
      %v1834 = vld [vmem:[%s1828 + $0x38] sm:$0xff]
      %v1835 = vld [vmem:[%s1828 + $0x48] sm:$0xff]
      %v1836 = vld [vmem:[%s1828 + $0x50] sm:$0xff]
      %v1837 = vld [vmem:[%s1828 + $0x60] sm:$0xff]
      %v1838 = vld [vmem:[%s1828 + $0x68] sm:$0xff]
      %v1839 = vld [vmem:[%s1828 + $0x78] sm:$0xff]
      %v1840 = vld [vmem:[%s1828 + $0x80] sm:$0xff]
      %v1841 = vld [vmem:[%s1828 + $0x90] sm:$0xff]
      %v1842 = vld [vmem:[%s1828 + $0x98] sm:$0xff]
      %v1843 = vld [vmem:[%s1828 + $0xa8] sm:$0xff]
      %v1844 = vld [vmem:[%s1828 + $0xb0] sm:$0xff]
      %v1845 = vld [vmem:[%s1828 + $0xc0] sm:$0xff]
      %v1846 = vld [vmem:[%s1828 + $0xc8] sm:$0xff]
      %v1847 = vld [vmem:[%s1828 + $0xd8] sm:$0xff]
      %v1848 = vld [vmem:[%s1828 + $0xe0] sm:$0xff]
      %v1849 = vld [vmem:[%s1828 + $0xf0] sm:$0xff]
      %v1850 = vld [vmem:[%s1828 + $0xf8] sm:$0xff]
      %v1851 = vld [vmem:[%s1828 + $0x108] sm:$0xff]
      %v1852 = vld [vmem:[%s1828 + $0x110] sm:$0xff]
      %v1853 = vld [vmem:[%s1828 + $0x120] sm:$0xff]
      %v1854 = vld [vmem:[%s1828 + $0x128] sm:$0xff]
      %v1855 = vld [vmem:[%s1828 + $0x138] sm:$0xff]
      %v1856 = vld [vmem:[%s1828 + $0x140] sm:$0xff]
      %v1857 = vld [vmem:[%s1828 + $0x150] sm:$0xff]
      %v1858 = vld [vmem:[%s1828 + $0x158] sm:$0xff]
      %v1859 = vld [vmem:[%s1828 + $0x168] sm:$0xff]
      %v1860 = vld [vmem:[%s1828 + $0x170] sm:$0xff]
      %v1861 = vpack.c.bf16 %v1830, %v1829
      %v1862 = vpack.c.bf16 %v1832, %v1831
      %v1863 = vpack.c.bf16 %v1834, %v1833
      %v1864 = vpack.c.bf16 %v1836, %v1835
      %v1865 = vpack.c.bf16 %v1838, %v1837
      %v1866 = vpack.c.bf16 %v1840, %v1839
      %v1867 = vpack.c.bf16 %v1842, %v1841
      %v1868 = vpack.c.bf16 %v1844, %v1843
      %v1869 = vpack.c.bf16 %v1846, %v1845
      %v1870 = vpack.c.bf16 %v1848, %v1847
      %v1871 = vpack.c.bf16 %v1850, %v1849
      %v1872 = vpack.c.bf16 %v1852, %v1851
      %v1873 = vpack.c.bf16 %v1854, %v1853
      %v1874 = vpack.c.bf16 %v1856, %v1855
      %v1875 = vpack.c.bf16 %v1858, %v1857
      %v1876 = vpack.c.bf16 %v1860, %v1859
      %s1877 = scalar_lea.vmem %s1, 12
      %v1878 = vld [vmem:[%s1877] sm:$0x3]
      %v1880 = vsel %vm221, %v1861, 0
      %v1883 = vsel %vm221, %v1862, 0
      %v1886 = vsel %vm221, %v1863, 0
      %v1889 = vsel %vm221, %v1864, 0
      %v1892 = vsel %vm221, %v1865, 0
      %v1895 = vsel %vm221, %v1866, 0
      %v1898 = vsel %vm221, %v1867, 0
      %v1901 = vsel %vm221, %v1868, 0
      %v1904 = vsel %vm221, %v1869, 0
      %v1907 = vsel %vm221, %v1870, 0
      %v1910 = vsel %vm221, %v1871, 0
      %v1913 = vsel %vm221, %v1872, 0
      %v1916 = vsel %vm221, %v1873, 0
      %v1919 = vsel %vm221, %v1874, 0
      %v1922 = vsel %vm221, %v1875, 0
      %v1925 = vsel %vm221, %v1876, 0
      %v1928 = vsel %vm270, %v1878, 0
      %1930 = vmatpush.bf16.msra.mxu0 0
      %1931 = vmatpush.bf16.msra.mxu0 0
      %1932 = vmatpush.bf16.msra.mxu0 0
      %1933 = vmatpush.bf16.msra.mxu0 0
      %1934 = vmatpush.bf16.msra.mxu0 0
      %1935 = vmatpush.bf16.msra.mxu0 0
      %1936 = vmatpush.bf16.msra.mxu0 0
      %1937 = vmatpush.bf16.msra.mxu0 %v1928
      %1938 = vmatmul.bf16.gmra.mxu0 %v1880
      %v1939 = vpop.f32.mrf.mxu0
      %v1940 = vadd.f32 0.0, %v1939
      %v1941 = vpop.f32.mrf.mxu0
      %v1942 = vadd.f32 0.0, %v1941
      %1943 = vmatmul.bf16.gmra.mxu0 %v1883
      %v1944 = vpop.f32.mrf.mxu0
      %v1945 = vadd.f32 0.0, %v1944
      %v1946 = vpop.f32.mrf.mxu0
      %v1947 = vadd.f32 0.0, %v1946
      %1948 = vmatmul.bf16.gmra.mxu0 %v1886
      %v1949 = vpop.f32.mrf.mxu0
      %v1950 = vadd.f32 0.0, %v1949
      %v1951 = vpop.f32.mrf.mxu0
      %v1952 = vadd.f32 0.0, %v1951
      %1953 = vmatmul.bf16.gmra.mxu0 %v1889
      %v1954 = vpop.f32.mrf.mxu0
      %v1955 = vadd.f32 0.0, %v1954
      %v1956 = vpop.f32.mrf.mxu0
      %v1957 = vadd.f32 0.0, %v1956
      %1958 = vmatmul.bf16.gmra.mxu0 %v1892
      %v1959 = vpop.f32.mrf.mxu0
      %v1960 = vadd.f32 0.0, %v1959
      %v1961 = vpop.f32.mrf.mxu0
      %v1962 = vadd.f32 0.0, %v1961
      %1963 = vmatmul.bf16.gmra.mxu0 %v1895
      %v1964 = vpop.f32.mrf.mxu0
      %v1965 = vadd.f32 0.0, %v1964
      %v1966 = vpop.f32.mrf.mxu0
      %v1967 = vadd.f32 0.0, %v1966
      %1968 = vmatmul.bf16.gmra.mxu0 %v1898
      %v1969 = vpop.f32.mrf.mxu0
      %v1970 = vadd.f32 0.0, %v1969
      %v1971 = vpop.f32.mrf.mxu0
      %v1972 = vadd.f32 0.0, %v1971
      %1973 = vmatmul.bf16.gmra.mxu0 %v1901
      %v1974 = vpop.f32.mrf.mxu0
      %v1975 = vadd.f32 0.0, %v1974
      %v1976 = vpop.f32.mrf.mxu0
      %v1977 = vadd.f32 0.0, %v1976
      %1978 = vmatmul.bf16.gmra.mxu0 %v1904
      %v1979 = vpop.f32.mrf.mxu0
      %v1980 = vadd.f32 0.0, %v1979
      %v1981 = vpop.f32.mrf.mxu0
      %v1982 = vadd.f32 0.0, %v1981
      %1983 = vmatmul.bf16.gmra.mxu0 %v1907
      %v1984 = vpop.f32.mrf.mxu0
      %v1985 = vadd.f32 0.0, %v1984
      %v1986 = vpop.f32.mrf.mxu0
      %v1987 = vadd.f32 0.0, %v1986
      %1988 = vmatmul.bf16.gmra.mxu0 %v1910
      %v1989 = vpop.f32.mrf.mxu0
      %v1990 = vadd.f32 0.0, %v1989
      %v1991 = vpop.f32.mrf.mxu0
      %v1992 = vadd.f32 0.0, %v1991
      %1993 = vmatmul.bf16.gmra.mxu0 %v1913
      %v1994 = vpop.f32.mrf.mxu0
      %v1995 = vadd.f32 0.0, %v1994
      %v1996 = vpop.f32.mrf.mxu0
      %v1997 = vadd.f32 0.0, %v1996
      %1998 = vmatmul.bf16.gmra.mxu0 %v1916
      %v1999 = vpop.f32.mrf.mxu0
      %v2000 = vadd.f32 0.0, %v1999
      %v2001 = vpop.f32.mrf.mxu0
      %v2002 = vadd.f32 0.0, %v2001
      %2003 = vmatmul.bf16.gmra.mxu0 %v1919
      %v2004 = vpop.f32.mrf.mxu0
      %v2005 = vadd.f32 0.0, %v2004
      %v2006 = vpop.f32.mrf.mxu0
      %v2007 = vadd.f32 0.0, %v2006
      %2008 = vmatmul.bf16.gmra.mxu0 %v1922
      %v2009 = vpop.f32.mrf.mxu0
      %v2010 = vadd.f32 0.0, %v2009
      %v2011 = vpop.f32.mrf.mxu0
      %v2012 = vadd.f32 0.0, %v2011
      %2013 = vmatmul.bf16.gmra.mxu0 %v1925
      %v2014 = vpop.f32.mrf.mxu0
      %v2015 = vadd.f32 0.0, %v2014
      %v2016 = vpop.f32.mrf.mxu0
      %v2017 = vadd.f32 0.0, %v2016
      %2018 = vdwg.mxu0
      %v2019 = vld [vmem:[#allocation2] sm:$0xff]
      %v2020 = vld [vmem:[#allocation2 + $0x8] sm:$0xff]
      %v2021 = vld [vmem:[#allocation2 + $0x10] sm:$0xff]
      %v2022 = vld [vmem:[#allocation2 + $0x18] sm:$0xff]
      %v2023 = vld [vmem:[#allocation2 + $0x20] sm:$0xff]
      %v2024 = vld [vmem:[#allocation2 + $0x28] sm:$0xff]
      %v2025 = vld [vmem:[#allocation2 + $0x30] sm:$0xff]
      %v2026 = vld [vmem:[#allocation2 + $0x38] sm:$0xff]
      %v2027 = vld [vmem:[#allocation2 + $0x40] sm:$0xff]
      %v2028 = vld [vmem:[#allocation2 + $0x48] sm:$0xff]
      %v2029 = vld [vmem:[#allocation2 + $0x50] sm:$0xff]
      %v2030 = vld [vmem:[#allocation2 + $0x58] sm:$0xff]
      %v2031 = vld [vmem:[#allocation2 + $0x60] sm:$0xff]
      %v2032 = vld [vmem:[#allocation2 + $0x68] sm:$0xff]
      %v2033 = vld [vmem:[#allocation2 + $0x70] sm:$0xff]
      %v2034 = vld [vmem:[#allocation2 + $0x78] sm:$0xff]
      %v2035 = vld [vmem:[#allocation2 + $0x80] sm:$0xff]
      %v2036 = vld [vmem:[#allocation2 + $0x88] sm:$0xff]
      %v2037 = vld [vmem:[#allocation2 + $0x90] sm:$0xff]
      %v2038 = vld [vmem:[#allocation2 + $0x98] sm:$0xff]
      %v2039 = vld [vmem:[#allocation2 + $0xa0] sm:$0xff]
      %v2040 = vld [vmem:[#allocation2 + $0xa8] sm:$0xff]
      %v2041 = vld [vmem:[#allocation2 + $0xb0] sm:$0xff]
      %v2042 = vld [vmem:[#allocation2 + $0xb8] sm:$0xff]
      %v2043 = vld [vmem:[#allocation2 + $0xc0] sm:$0xff]
      %v2044 = vld [vmem:[#allocation2 + $0xc8] sm:$0xff]
      %v2045 = vld [vmem:[#allocation2 + $0xd0] sm:$0xff]
      %v2046 = vld [vmem:[#allocation2 + $0xd8] sm:$0xff]
      %v2047 = vld [vmem:[#allocation2 + $0xe0] sm:$0xff]
      %v2048 = vld [vmem:[#allocation2 + $0xe8] sm:$0xff]
      %v2049 = vld [vmem:[#allocation2 + $0xf0] sm:$0xff]
      %v2050 = vld [vmem:[#allocation2 + $0xf8] sm:$0xff]
      %v2051 = vadd.f32 %v2019, %v1940
      %v2052 = vadd.f32 %v2020, %v1942
      %v2053 = vadd.f32 %v2021, %v1945
      %v2054 = vadd.f32 %v2022, %v1947
      %v2055 = vadd.f32 %v2023, %v1950
      %v2056 = vadd.f32 %v2024, %v1952
      %v2057 = vadd.f32 %v2025, %v1955
      %v2058 = vadd.f32 %v2026, %v1957
      %v2059 = vadd.f32 %v2027, %v1960
      %v2060 = vadd.f32 %v2028, %v1962
      %v2061 = vadd.f32 %v2029, %v1965
      %v2062 = vadd.f32 %v2030, %v1967
      %v2063 = vadd.f32 %v2031, %v1970
      %v2064 = vadd.f32 %v2032, %v1972
      %v2065 = vadd.f32 %v2033, %v1975
      %v2066 = vadd.f32 %v2034, %v1977
      %v2067 = vadd.f32 %v2035, %v1980
      %v2068 = vadd.f32 %v2036, %v1982
      %v2069 = vadd.f32 %v2037, %v1985
      %v2070 = vadd.f32 %v2038, %v1987
      %v2071 = vadd.f32 %v2039, %v1990
      %v2072 = vadd.f32 %v2040, %v1992
      %v2073 = vadd.f32 %v2041, %v1995
      %v2074 = vadd.f32 %v2042, %v1997
      %v2075 = vadd.f32 %v2043, %v2000
      %v2076 = vadd.f32 %v2044, %v2002
      %v2077 = vadd.f32 %v2045, %v2005
      %v2078 = vadd.f32 %v2046, %v2007
      %v2079 = vadd.f32 %v2047, %v2010
      %v2080 = vadd.f32 %v2048, %v2012
      %v2081 = vadd.f32 %v2049, %v2015
      %v2082 = vadd.f32 %v2050, %v2017
      %2083 = vst [vmem:[#allocation2] sm:$0xff] %v2051
      %2084 = vst [vmem:[#allocation2 + $0x8] sm:$0xff] %v2052
      %2085 = vst [vmem:[#allocation2 + $0x10] sm:$0xff] %v2053
      %2086 = vst [vmem:[#allocation2 + $0x18] sm:$0xff] %v2054
      %2087 = vst [vmem:[#allocation2 + $0x20] sm:$0xff] %v2055
      %2088 = vst [vmem:[#allocation2 + $0x28] sm:$0xff] %v2056
      %2089 = vst [vmem:[#allocation2 + $0x30] sm:$0xff] %v2057
      %2090 = vst [vmem:[#allocation2 + $0x38] sm:$0xff] %v2058
      %2091 = vst [vmem:[#allocation2 + $0x40] sm:$0xff] %v2059
      %2092 = vst [vmem:[#allocation2 + $0x48] sm:$0xff] %v2060
      %2093 = vst [vmem:[#allocation2 + $0x50] sm:$0xff] %v2061
      %2094 = vst [vmem:[#allocation2 + $0x58] sm:$0xff] %v2062
      %2095 = vst [vmem:[#allocation2 + $0x60] sm:$0xff] %v2063
      %2096 = vst [vmem:[#allocation2 + $0x68] sm:$0xff] %v2064
      %2097 = vst [vmem:[#allocation2 + $0x70] sm:$0xff] %v2065
      %2098 = vst [vmem:[#allocation2 + $0x78] sm:$0xff] %v2066
      %2099 = vst [vmem:[#allocation2 + $0x80] sm:$0xff] %v2067
      %2100 = vst [vmem:[#allocation2 + $0x88] sm:$0xff] %v2068
      %2101 = vst [vmem:[#allocation2 + $0x90] sm:$0xff] %v2069
      %2102 = vst [vmem:[#allocation2 + $0x98] sm:$0xff] %v2070
      %2103 = vst [vmem:[#allocation2 + $0xa0] sm:$0xff] %v2071
      %2104 = vst [vmem:[#allocation2 + $0xa8] sm:$0xff] %v2072
      %2105 = vst [vmem:[#allocation2 + $0xb0] sm:$0xff] %v2073
      %2106 = vst [vmem:[#allocation2 + $0xb8] sm:$0xff] %v2074
      %2107 = vst [vmem:[#allocation2 + $0xc0] sm:$0xff] %v2075
      %2108 = vst [vmem:[#allocation2 + $0xc8] sm:$0xff] %v2076
      %2109 = vst [vmem:[#allocation2 + $0xd0] sm:$0xff] %v2077
      %2110 = vst [vmem:[#allocation2 + $0xd8] sm:$0xff] %v2078
      %2111 = vst [vmem:[#allocation2 + $0xe0] sm:$0xff] %v2079
      %2112 = vst [vmem:[#allocation2 + $0xe8] sm:$0xff] %v2080
      %2113 = vst [vmem:[#allocation2 + $0xf0] sm:$0xff] %v2081
      %2114 = vst [vmem:[#allocation2 + $0xf8] sm:$0xff] %v2082
      %s2115 = scalar_lea.vmem %s165, 432
      %v2116 = vld [vmem:[%s2115] sm:$0xff]
      %v2117 = vld [vmem:[%s2115 + $0x8] sm:$0xff]
      %v2118 = vld [vmem:[%s2115 + $0x18] sm:$0xff]
      %v2119 = vld [vmem:[%s2115 + $0x20] sm:$0xff]
      %v2120 = vld [vmem:[%s2115 + $0x30] sm:$0xff]
      %v2121 = vld [vmem:[%s2115 + $0x38] sm:$0xff]
      %v2122 = vld [vmem:[%s2115 + $0x48] sm:$0xff]
      %v2123 = vld [vmem:[%s2115 + $0x50] sm:$0xff]
      %v2124 = vld [vmem:[%s2115 + $0x60] sm:$0xff]
      %v2125 = vld [vmem:[%s2115 + $0x68] sm:$0xff]
      %v2126 = vld [vmem:[%s2115 + $0x78] sm:$0xff]
      %v2127 = vld [vmem:[%s2115 + $0x80] sm:$0xff]
      %v2128 = vld [vmem:[%s2115 + $0x90] sm:$0xff]
      %v2129 = vld [vmem:[%s2115 + $0x98] sm:$0xff]
      %v2130 = vld [vmem:[%s2115 + $0xa8] sm:$0xff]
      %v2131 = vld [vmem:[%s2115 + $0xb0] sm:$0xff]
      %v2132 = vld [vmem:[%s2115 + $0xc0] sm:$0xff]
      %v2133 = vld [vmem:[%s2115 + $0xc8] sm:$0xff]
      %v2134 = vld [vmem:[%s2115 + $0xd8] sm:$0xff]
      %v2135 = vld [vmem:[%s2115 + $0xe0] sm:$0xff]
      %v2136 = vld [vmem:[%s2115 + $0xf0] sm:$0xff]
      %v2137 = vld [vmem:[%s2115 + $0xf8] sm:$0xff]
      %v2138 = vld [vmem:[%s2115 + $0x108] sm:$0xff]
      %v2139 = vld [vmem:[%s2115 + $0x110] sm:$0xff]
      %v2140 = vld [vmem:[%s2115 + $0x120] sm:$0xff]
      %v2141 = vld [vmem:[%s2115 + $0x128] sm:$0xff]
      %v2142 = vld [vmem:[%s2115 + $0x138] sm:$0xff]
      %v2143 = vld [vmem:[%s2115 + $0x140] sm:$0xff]
      %v2144 = vld [vmem:[%s2115 + $0x150] sm:$0xff]
      %v2145 = vld [vmem:[%s2115 + $0x158] sm:$0xff]
      %v2146 = vld [vmem:[%s2115 + $0x168] sm:$0xff]
      %v2147 = vld [vmem:[%s2115 + $0x170] sm:$0xff]
      %v2148 = vpack.c.bf16 %v2117, %v2116
      %v2149 = vpack.c.bf16 %v2119, %v2118
      %v2150 = vpack.c.bf16 %v2121, %v2120
      %v2151 = vpack.c.bf16 %v2123, %v2122
      %v2152 = vpack.c.bf16 %v2125, %v2124
      %v2153 = vpack.c.bf16 %v2127, %v2126
      %v2154 = vpack.c.bf16 %v2129, %v2128
      %v2155 = vpack.c.bf16 %v2131, %v2130
      %v2156 = vpack.c.bf16 %v2133, %v2132
      %v2157 = vpack.c.bf16 %v2135, %v2134
      %v2158 = vpack.c.bf16 %v2137, %v2136
      %v2159 = vpack.c.bf16 %v2139, %v2138
      %v2160 = vpack.c.bf16 %v2141, %v2140
      %v2161 = vpack.c.bf16 %v2143, %v2142
      %v2162 = vpack.c.bf16 %v2145, %v2144
      %v2163 = vpack.c.bf16 %v2147, %v2146
      %s2164 = scalar_lea.vmem %s1, 14
      %v2165 = vld [vmem:[%s2164] sm:$0x3]
      %v2167 = vsel %vm221, %v2148, 0
      %v2170 = vsel %vm221, %v2149, 0
      %v2173 = vsel %vm221, %v2150, 0
      %v2176 = vsel %vm221, %v2151, 0
      %v2179 = vsel %vm221, %v2152, 0
      %v2182 = vsel %vm221, %v2153, 0
      %v2185 = vsel %vm221, %v2154, 0
      %v2188 = vsel %vm221, %v2155, 0
      %v2191 = vsel %vm221, %v2156, 0
      %v2194 = vsel %vm221, %v2157, 0
      %v2197 = vsel %vm221, %v2158, 0
      %v2200 = vsel %vm221, %v2159, 0
      %v2203 = vsel %vm221, %v2160, 0
      %v2206 = vsel %vm221, %v2161, 0
      %v2209 = vsel %vm221, %v2162, 0
      %v2212 = vsel %vm221, %v2163, 0
      %v2215 = vsel %vm270, %v2165, 0
      %2217 = vmatpush.bf16.msra.mxu0 0
      %2218 = vmatpush.bf16.msra.mxu0 0
      %2219 = vmatpush.bf16.msra.mxu0 0
      %2220 = vmatpush.bf16.msra.mxu0 0
      %2221 = vmatpush.bf16.msra.mxu0 0
      %2222 = vmatpush.bf16.msra.mxu0 0
      %2223 = vmatpush.bf16.msra.mxu0 0
      %2224 = vmatpush.bf16.msra.mxu0 %v2215
      %2225 = vmatmul.bf16.gmra.mxu0 %v2167
      %v2226 = vpop.f32.mrf.mxu0
      %v2227 = vadd.f32 0.0, %v2226
      %v2228 = vpop.f32.mrf.mxu0
      %v2229 = vadd.f32 0.0, %v2228
      %2230 = vmatmul.bf16.gmra.mxu0 %v2170
      %v2231 = vpop.f32.mrf.mxu0
      %v2232 = vadd.f32 0.0, %v2231
      %v2233 = vpop.f32.mrf.mxu0
      %v2234 = vadd.f32 0.0, %v2233
      %2235 = vmatmul.bf16.gmra.mxu0 %v2173
      %v2236 = vpop.f32.mrf.mxu0
      %v2237 = vadd.f32 0.0, %v2236
      %v2238 = vpop.f32.mrf.mxu0
      %v2239 = vadd.f32 0.0, %v2238
      %2240 = vmatmul.bf16.gmra.mxu0 %v2176
      %v2241 = vpop.f32.mrf.mxu0
      %v2242 = vadd.f32 0.0, %v2241
      %v2243 = vpop.f32.mrf.mxu0
      %v2244 = vadd.f32 0.0, %v2243
      %2245 = vmatmul.bf16.gmra.mxu0 %v2179
      %v2246 = vpop.f32.mrf.mxu0
      %v2247 = vadd.f32 0.0, %v2246
      %v2248 = vpop.f32.mrf.mxu0
      %v2249 = vadd.f32 0.0, %v2248
      %2250 = vmatmul.bf16.gmra.mxu0 %v2182
      %v2251 = vpop.f32.mrf.mxu0
      %v2252 = vadd.f32 0.0, %v2251
      %v2253 = vpop.f32.mrf.mxu0
      %v2254 = vadd.f32 0.0, %v2253
      %2255 = vmatmul.bf16.gmra.mxu0 %v2185
      %v2256 = vpop.f32.mrf.mxu0
      %v2257 = vadd.f32 0.0, %v2256
      %v2258 = vpop.f32.mrf.mxu0
      %v2259 = vadd.f32 0.0, %v2258
      %2260 = vmatmul.bf16.gmra.mxu0 %v2188
      %v2261 = vpop.f32.mrf.mxu0
      %v2262 = vadd.f32 0.0, %v2261
      %v2263 = vpop.f32.mrf.mxu0
      %v2264 = vadd.f32 0.0, %v2263
      %2265 = vmatmul.bf16.gmra.mxu0 %v2191
      %v2266 = vpop.f32.mrf.mxu0
      %v2267 = vadd.f32 0.0, %v2266
      %v2268 = vpop.f32.mrf.mxu0
      %v2269 = vadd.f32 0.0, %v2268
      %2270 = vmatmul.bf16.gmra.mxu0 %v2194
      %v2271 = vpop.f32.mrf.mxu0
      %v2272 = vadd.f32 0.0, %v2271
      %v2273 = vpop.f32.mrf.mxu0
      %v2274 = vadd.f32 0.0, %v2273
      %2275 = vmatmul.bf16.gmra.mxu0 %v2197
      %v2276 = vpop.f32.mrf.mxu0
      %v2277 = vadd.f32 0.0, %v2276
      %v2278 = vpop.f32.mrf.mxu0
      %v2279 = vadd.f32 0.0, %v2278
      %2280 = vmatmul.bf16.gmra.mxu0 %v2200
      %v2281 = vpop.f32.mrf.mxu0
      %v2282 = vadd.f32 0.0, %v2281
      %v2283 = vpop.f32.mrf.mxu0
      %v2284 = vadd.f32 0.0, %v2283
      %2285 = vmatmul.bf16.gmra.mxu0 %v2203
      %v2286 = vpop.f32.mrf.mxu0
      %v2287 = vadd.f32 0.0, %v2286
      %v2288 = vpop.f32.mrf.mxu0
      %v2289 = vadd.f32 0.0, %v2288
      %2290 = vmatmul.bf16.gmra.mxu0 %v2206
      %v2291 = vpop.f32.mrf.mxu0
      %v2292 = vadd.f32 0.0, %v2291
      %v2293 = vpop.f32.mrf.mxu0
      %v2294 = vadd.f32 0.0, %v2293
      %2295 = vmatmul.bf16.gmra.mxu0 %v2209
      %v2296 = vpop.f32.mrf.mxu0
      %v2297 = vadd.f32 0.0, %v2296
      %v2298 = vpop.f32.mrf.mxu0
      %v2299 = vadd.f32 0.0, %v2298
      %2300 = vmatmul.bf16.gmra.mxu0 %v2212
      %v2301 = vpop.f32.mrf.mxu0
      %v2302 = vadd.f32 0.0, %v2301
      %v2303 = vpop.f32.mrf.mxu0
      %v2304 = vadd.f32 0.0, %v2303
      %2305 = vdwg.mxu0
      %v2306 = vld [vmem:[#allocation2] sm:$0xff]
      %v2307 = vld [vmem:[#allocation2 + $0x8] sm:$0xff]
      %v2308 = vld [vmem:[#allocation2 + $0x10] sm:$0xff]
      %v2309 = vld [vmem:[#allocation2 + $0x18] sm:$0xff]
      %v2310 = vld [vmem:[#allocation2 + $0x20] sm:$0xff]
      %v2311 = vld [vmem:[#allocation2 + $0x28] sm:$0xff]
      %v2312 = vld [vmem:[#allocation2 + $0x30] sm:$0xff]
      %v2313 = vld [vmem:[#allocation2 + $0x38] sm:$0xff]
      %v2314 = vld [vmem:[#allocation2 + $0x40] sm:$0xff]
      %v2315 = vld [vmem:[#allocation2 + $0x48] sm:$0xff]
      %v2316 = vld [vmem:[#allocation2 + $0x50] sm:$0xff]
      %v2317 = vld [vmem:[#allocation2 + $0x58] sm:$0xff]
      %v2318 = vld [vmem:[#allocation2 + $0x60] sm:$0xff]
      %v2319 = vld [vmem:[#allocation2 + $0x68] sm:$0xff]
      %v2320 = vld [vmem:[#allocation2 + $0x70] sm:$0xff]
      %v2321 = vld [vmem:[#allocation2 + $0x78] sm:$0xff]
      %v2322 = vld [vmem:[#allocation2 + $0x80] sm:$0xff]
      %v2323 = vld [vmem:[#allocation2 + $0x88] sm:$0xff]
      %v2324 = vld [vmem:[#allocation2 + $0x90] sm:$0xff]
      %v2325 = vld [vmem:[#allocation2 + $0x98] sm:$0xff]
      %v2326 = vld [vmem:[#allocation2 + $0xa0] sm:$0xff]
      %v2327 = vld [vmem:[#allocation2 + $0xa8] sm:$0xff]
      %v2328 = vld [vmem:[#allocation2 + $0xb0] sm:$0xff]
      %v2329 = vld [vmem:[#allocation2 + $0xb8] sm:$0xff]
      %v2330 = vld [vmem:[#allocation2 + $0xc0] sm:$0xff]
      %v2331 = vld [vmem:[#allocation2 + $0xc8] sm:$0xff]
      %v2332 = vld [vmem:[#allocation2 + $0xd0] sm:$0xff]
      %v2333 = vld [vmem:[#allocation2 + $0xd8] sm:$0xff]
      %v2334 = vld [vmem:[#allocation2 + $0xe0] sm:$0xff]
      %v2335 = vld [vmem:[#allocation2 + $0xe8] sm:$0xff]
      %v2336 = vld [vmem:[#allocation2 + $0xf0] sm:$0xff]
      %v2337 = vld [vmem:[#allocation2 + $0xf8] sm:$0xff]
      %v2338 = vadd.f32 %v2306, %v2227
      %v2339 = vadd.f32 %v2307, %v2229
      %v2340 = vadd.f32 %v2308, %v2232
      %v2341 = vadd.f32 %v2309, %v2234
      %v2342 = vadd.f32 %v2310, %v2237
      %v2343 = vadd.f32 %v2311, %v2239
      %v2344 = vadd.f32 %v2312, %v2242
      %v2345 = vadd.f32 %v2313, %v2244
      %v2346 = vadd.f32 %v2314, %v2247
      %v2347 = vadd.f32 %v2315, %v2249
      %v2348 = vadd.f32 %v2316, %v2252
      %v2349 = vadd.f32 %v2317, %v2254
      %v2350 = vadd.f32 %v2318, %v2257
      %v2351 = vadd.f32 %v2319, %v2259
      %v2352 = vadd.f32 %v2320, %v2262
      %v2353 = vadd.f32 %v2321, %v2264
      %v2354 = vadd.f32 %v2322, %v2267
      %v2355 = vadd.f32 %v2323, %v2269
      %v2356 = vadd.f32 %v2324, %v2272
      %v2357 = vadd.f32 %v2325, %v2274
      %v2358 = vadd.f32 %v2326, %v2277
      %v2359 = vadd.f32 %v2327, %v2279
      %v2360 = vadd.f32 %v2328, %v2282
      %v2361 = vadd.f32 %v2329, %v2284
      %v2362 = vadd.f32 %v2330, %v2287
      %v2363 = vadd.f32 %v2331, %v2289
      %v2364 = vadd.f32 %v2332, %v2292
      %v2365 = vadd.f32 %v2333, %v2294
      %v2366 = vadd.f32 %v2334, %v2297
      %v2367 = vadd.f32 %v2335, %v2299
      %v2368 = vadd.f32 %v2336, %v2302
      %v2369 = vadd.f32 %v2337, %v2304
      %2370 = vst [vmem:[#allocation2] sm:$0xff] %v2338
      %2371 = vst [vmem:[#allocation2 + $0x8] sm:$0xff] %v2339
      %2372 = vst [vmem:[#allocation2 + $0x10] sm:$0xff] %v2340
      %2373 = vst [vmem:[#allocation2 + $0x18] sm:$0xff] %v2341
      %2374 = vst [vmem:[#allocation2 + $0x20] sm:$0xff] %v2342
      %2375 = vst [vmem:[#allocation2 + $0x28] sm:$0xff] %v2343
      %2376 = vst [vmem:[#allocation2 + $0x30] sm:$0xff] %v2344
      %2377 = vst [vmem:[#allocation2 + $0x38] sm:$0xff] %v2345
      %2378 = vst [vmem:[#allocation2 + $0x40] sm:$0xff] %v2346
      %2379 = vst [vmem:[#allocation2 + $0x48] sm:$0xff] %v2347
      %2380 = vst [vmem:[#allocation2 + $0x50] sm:$0xff] %v2348
      %2381 = vst [vmem:[#allocation2 + $0x58] sm:$0xff] %v2349
      %2382 = vst [vmem:[#allocation2 + $0x60] sm:$0xff] %v2350
      %2383 = vst [vmem:[#allocation2 + $0x68] sm:$0xff] %v2351
      %2384 = vst [vmem:[#allocation2 + $0x70] sm:$0xff] %v2352
      %2385 = vst [vmem:[#allocation2 + $0x78] sm:$0xff] %v2353
      %2386 = vst [vmem:[#allocation2 + $0x80] sm:$0xff] %v2354
      %2387 = vst [vmem:[#allocation2 + $0x88] sm:$0xff] %v2355
      %2388 = vst [vmem:[#allocation2 + $0x90] sm:$0xff] %v2356
      %2389 = vst [vmem:[#allocation2 + $0x98] sm:$0xff] %v2357
      %2390 = vst [vmem:[#allocation2 + $0xa0] sm:$0xff] %v2358
      %2391 = vst [vmem:[#allocation2 + $0xa8] sm:$0xff] %v2359
      %2392 = vst [vmem:[#allocation2 + $0xb0] sm:$0xff] %v2360
      %2393 = vst [vmem:[#allocation2 + $0xb8] sm:$0xff] %v2361
      %2394 = vst [vmem:[#allocation2 + $0xc0] sm:$0xff] %v2362
      %2395 = vst [vmem:[#allocation2 + $0xc8] sm:$0xff] %v2363
      %2396 = vst [vmem:[#allocation2 + $0xd0] sm:$0xff] %v2364
      %2397 = vst [vmem:[#allocation2 + $0xd8] sm:$0xff] %v2365
      %2398 = vst [vmem:[#allocation2 + $0xe0] sm:$0xff] %v2366
      %2399 = vst [vmem:[#allocation2 + $0xe8] sm:$0xff] %v2367
      %2400 = vst [vmem:[#allocation2 + $0xf0] sm:$0xff] %v2368
      %2401 = vst [vmem:[#allocation2 + $0xf8] sm:$0xff] %v2369
      %v2402 = vld [vmem:[%s1828 + $0x1] sm:$0xff]
      %v2403 = vld [vmem:[%s1828 + $0x9] sm:$0xff]
      %v2404 = vld [vmem:[%s1828 + $0x19] sm:$0xff]
      %v2405 = vld [vmem:[%s1828 + $0x21] sm:$0xff]
      %v2406 = vld [vmem:[%s1828 + $0x31] sm:$0xff]
      %v2407 = vld [vmem:[%s1828 + $0x39] sm:$0xff]
      %v2408 = vld [vmem:[%s1828 + $0x49] sm:$0xff]
      %v2409 = vld [vmem:[%s1828 + $0x51] sm:$0xff]
      %v2410 = vld [vmem:[%s1828 + $0x61] sm:$0xff]
      %v2411 = vld [vmem:[%s1828 + $0x69] sm:$0xff]
      %v2412 = vld [vmem:[%s1828 + $0x79] sm:$0xff]
      %v2413 = vld [vmem:[%s1828 + $0x81] sm:$0xff]
      %v2414 = vld [vmem:[%s1828 + $0x91] sm:$0xff]
      %v2415 = vld [vmem:[%s1828 + $0x99] sm:$0xff]
      %v2416 = vld [vmem:[%s1828 + $0xa9] sm:$0xff]
      %v2417 = vld [vmem:[%s1828 + $0xb1] sm:$0xff]
      %v2418 = vld [vmem:[%s1828 + $0xc1] sm:$0xff]
      %v2419 = vld [vmem:[%s1828 + $0xc9] sm:$0xff]
      %v2420 = vld [vmem:[%s1828 + $0xd9] sm:$0xff]
      %v2421 = vld [vmem:[%s1828 + $0xe1] sm:$0xff]
      %v2422 = vld [vmem:[%s1828 + $0xf1] sm:$0xff]
      %v2423 = vld [vmem:[%s1828 + $0xf9] sm:$0xff]
      %v2424 = vld [vmem:[%s1828 + $0x109] sm:$0xff]
      %v2425 = vld [vmem:[%s1828 + $0x111] sm:$0xff]
      %v2426 = vld [vmem:[%s1828 + $0x121] sm:$0xff]
      %v2427 = vld [vmem:[%s1828 + $0x129] sm:$0xff]
      %v2428 = vld [vmem:[%s1828 + $0x139] sm:$0xff]
      %v2429 = vld [vmem:[%s1828 + $0x141] sm:$0xff]
      %v2430 = vld [vmem:[%s1828 + $0x151] sm:$0xff]
      %v2431 = vld [vmem:[%s1828 + $0x159] sm:$0xff]
      %v2432 = vld [vmem:[%s1828 + $0x169] sm:$0xff]
      %v2433 = vld [vmem:[%s1828 + $0x171] sm:$0xff]
      %v2434 = vpack.c.bf16 %v2403, %v2402
      %v2435 = vpack.c.bf16 %v2405, %v2404
      %v2436 = vpack.c.bf16 %v2407, %v2406
      %v2437 = vpack.c.bf16 %v2409, %v2408
      %v2438 = vpack.c.bf16 %v2411, %v2410
      %v2439 = vpack.c.bf16 %v2413, %v2412
      %v2440 = vpack.c.bf16 %v2415, %v2414
      %v2441 = vpack.c.bf16 %v2417, %v2416
      %v2442 = vpack.c.bf16 %v2419, %v2418
      %v2443 = vpack.c.bf16 %v2421, %v2420
      %v2444 = vpack.c.bf16 %v2423, %v2422
      %v2445 = vpack.c.bf16 %v2425, %v2424
      %v2446 = vpack.c.bf16 %v2427, %v2426
      %v2447 = vpack.c.bf16 %v2429, %v2428
      %v2448 = vpack.c.bf16 %v2431, %v2430
      %v2449 = vpack.c.bf16 %v2433, %v2432
      %s2450 = scalar_lea.vmem %s1, 16
      %v2451 = vld [vmem:[%s2450] sm:$0x3]
      %v2453 = vsel %vm221, %v2434, 0
      %v2456 = vsel %vm221, %v2435, 0
      %v2459 = vsel %vm221, %v2436, 0
      %v2462 = vsel %vm221, %v2437, 0
      %v2465 = vsel %vm221, %v2438, 0
      %v2468 = vsel %vm221, %v2439, 0
      %v2471 = vsel %vm221, %v2440, 0
      %v2474 = vsel %vm221, %v2441, 0
      %v2477 = vsel %vm221, %v2442, 0
      %v2480 = vsel %vm221, %v2443, 0
      %v2483 = vsel %vm221, %v2444, 0
      %v2486 = vsel %vm221, %v2445, 0
      %v2489 = vsel %vm221, %v2446, 0
      %v2492 = vsel %vm221, %v2447, 0
      %v2495 = vsel %vm221, %v2448, 0
      %v2498 = vsel %vm221, %v2449, 0
      %v2501 = vsel %vm270, %v2451, 0
      %2503 = vmatpush.bf16.msra.mxu0 0
      %2504 = vmatpush.bf16.msra.mxu0 0
      %2505 = vmatpush.bf16.msra.mxu0 0
      %2506 = vmatpush.bf16.msra.mxu0 0
      %2507 = vmatpush.bf16.msra.mxu0 0
      %2508 = vmatpush.bf16.msra.mxu0 0
      %2509 = vmatpush.bf16.msra.mxu0 0
      %2510 = vmatpush.bf16.msra.mxu0 %v2501
      %2511 = vmatmul.bf16.gmra.mxu0 %v2453
      %v2512 = vpop.f32.mrf.mxu0
      %v2513 = vadd.f32 0.0, %v2512
      %v2514 = vpop.f32.mrf.mxu0
      %v2515 = vadd.f32 0.0, %v2514
      %2516 = vmatmul.bf16.gmra.mxu0 %v2456
      %v2517 = vpop.f32.mrf.mxu0
      %v2518 = vadd.f32 0.0, %v2517
      %v2519 = vpop.f32.mrf.mxu0
      %v2520 = vadd.f32 0.0, %v2519
      %2521 = vmatmul.bf16.gmra.mxu0 %v2459
      %v2522 = vpop.f32.mrf.mxu0
      %v2523 = vadd.f32 0.0, %v2522
      %v2524 = vpop.f32.mrf.mxu0
      %v2525 = vadd.f32 0.0, %v2524
      %2526 = vmatmul.bf16.gmra.mxu0 %v2462
      %v2527 = vpop.f32.mrf.mxu0
      %v2528 = vadd.f32 0.0, %v2527
      %v2529 = vpop.f32.mrf.mxu0
      %v2530 = vadd.f32 0.0, %v2529
      %2531 = vmatmul.bf16.gmra.mxu0 %v2465
      %v2532 = vpop.f32.mrf.mxu0
      %v2533 = vadd.f32 0.0, %v2532
      %v2534 = vpop.f32.mrf.mxu0
      %v2535 = vadd.f32 0.0, %v2534
      %2536 = vmatmul.bf16.gmra.mxu0 %v2468
      %v2537 = vpop.f32.mrf.mxu0
      %v2538 = vadd.f32 0.0, %v2537
      %v2539 = vpop.f32.mrf.mxu0
      %v2540 = vadd.f32 0.0, %v2539
      %2541 = vmatmul.bf16.gmra.mxu0 %v2471
      %v2542 = vpop.f32.mrf.mxu0
      %v2543 = vadd.f32 0.0, %v2542
      %v2544 = vpop.f32.mrf.mxu0
      %v2545 = vadd.f32 0.0, %v2544
      %2546 = vmatmul.bf16.gmra.mxu0 %v2474
      %v2547 = vpop.f32.mrf.mxu0
      %v2548 = vadd.f32 0.0, %v2547
      %v2549 = vpop.f32.mrf.mxu0
      %v2550 = vadd.f32 0.0, %v2549
      %2551 = vmatmul.bf16.gmra.mxu0 %v2477
      %v2552 = vpop.f32.mrf.mxu0
      %v2553 = vadd.f32 0.0, %v2552
      %v2554 = vpop.f32.mrf.mxu0
      %v2555 = vadd.f32 0.0, %v2554
      %2556 = vmatmul.bf16.gmra.mxu0 %v2480
      %v2557 = vpop.f32.mrf.mxu0
      %v2558 = vadd.f32 0.0, %v2557
      %v2559 = vpop.f32.mrf.mxu0
      %v2560 = vadd.f32 0.0, %v2559
      %2561 = vmatmul.bf16.gmra.mxu0 %v2483
      %v2562 = vpop.f32.mrf.mxu0
      %v2563 = vadd.f32 0.0, %v2562
      %v2564 = vpop.f32.mrf.mxu0
      %v2565 = vadd.f32 0.0, %v2564
      %2566 = vmatmul.bf16.gmra.mxu0 %v2486
      %v2567 = vpop.f32.mrf.mxu0
      %v2568 = vadd.f32 0.0, %v2567
      %v2569 = vpop.f32.mrf.mxu0
      %v2570 = vadd.f32 0.0, %v2569
      %2571 = vmatmul.bf16.gmra.mxu0 %v2489
      %v2572 = vpop.f32.mrf.mxu0
      %v2573 = vadd.f32 0.0, %v2572
      %v2574 = vpop.f32.mrf.mxu0
      %v2575 = vadd.f32 0.0, %v2574
      %2576 = vmatmul.bf16.gmra.mxu0 %v2492
      %v2577 = vpop.f32.mrf.mxu0
      %v2578 = vadd.f32 0.0, %v2577
      %v2579 = vpop.f32.mrf.mxu0
      %v2580 = vadd.f32 0.0, %v2579
      %2581 = vmatmul.bf16.gmra.mxu0 %v2495
      %v2582 = vpop.f32.mrf.mxu0
      %v2583 = vadd.f32 0.0, %v2582
      %v2584 = vpop.f32.mrf.mxu0
      %v2585 = vadd.f32 0.0, %v2584
      %2586 = vmatmul.bf16.gmra.mxu0 %v2498
      %v2587 = vpop.f32.mrf.mxu0
      %v2588 = vadd.f32 0.0, %v2587
      %v2589 = vpop.f32.mrf.mxu0
      %v2590 = vadd.f32 0.0, %v2589
      %2591 = vdwg.mxu0
      %v2592 = vld [vmem:[#allocation2] sm:$0xff]
      %v2593 = vld [vmem:[#allocation2 + $0x8] sm:$0xff]
      %v2594 = vld [vmem:[#allocation2 + $0x10] sm:$0xff]
      %v2595 = vld [vmem:[#allocation2 + $0x18] sm:$0xff]
      %v2596 = vld [vmem:[#allocation2 + $0x20] sm:$0xff]
      %v2597 = vld [vmem:[#allocation2 + $0x28] sm:$0xff]
      %v2598 = vld [vmem:[#allocation2 + $0x30] sm:$0xff]
      %v2599 = vld [vmem:[#allocation2 + $0x38] sm:$0xff]
      %v2600 = vld [vmem:[#allocation2 + $0x40] sm:$0xff]
      %v2601 = vld [vmem:[#allocation2 + $0x48] sm:$0xff]
      %v2602 = vld [vmem:[#allocation2 + $0x50] sm:$0xff]
      %v2603 = vld [vmem:[#allocation2 + $0x58] sm:$0xff]
      %v2604 = vld [vmem:[#allocation2 + $0x60] sm:$0xff]
      %v2605 = vld [vmem:[#allocation2 + $0x68] sm:$0xff]
      %v2606 = vld [vmem:[#allocation2 + $0x70] sm:$0xff]
      %v2607 = vld [vmem:[#allocation2 + $0x78] sm:$0xff]
      %v2608 = vld [vmem:[#allocation2 + $0x80] sm:$0xff]
      %v2609 = vld [vmem:[#allocation2 + $0x88] sm:$0xff]
      %v2610 = vld [vmem:[#allocation2 + $0x90] sm:$0xff]
      %v2611 = vld [vmem:[#allocation2 + $0x98] sm:$0xff]
      %v2612 = vld [vmem:[#allocation2 + $0xa0] sm:$0xff]
      %v2613 = vld [vmem:[#allocation2 + $0xa8] sm:$0xff]
      %v2614 = vld [vmem:[#allocation2 + $0xb0] sm:$0xff]
      %v2615 = vld [vmem:[#allocation2 + $0xb8] sm:$0xff]
      %v2616 = vld [vmem:[#allocation2 + $0xc0] sm:$0xff]
      %v2617 = vld [vmem:[#allocation2 + $0xc8] sm:$0xff]
      %v2618 = vld [vmem:[#allocation2 + $0xd0] sm:$0xff]
      %v2619 = vld [vmem:[#allocation2 + $0xd8] sm:$0xff]
      %v2620 = vld [vmem:[#allocation2 + $0xe0] sm:$0xff]
      %v2621 = vld [vmem:[#allocation2 + $0xe8] sm:$0xff]
      %v2622 = vld [vmem:[#allocation2 + $0xf0] sm:$0xff]
      %v2623 = vld [vmem:[#allocation2 + $0xf8] sm:$0xff]
      %v2624 = vadd.f32 %v2592, %v2513
      %v2625 = vadd.f32 %v2593, %v2515
      %v2626 = vadd.f32 %v2594, %v2518
      %v2627 = vadd.f32 %v2595, %v2520
      %v2628 = vadd.f32 %v2596, %v2523
      %v2629 = vadd.f32 %v2597, %v2525
      %v2630 = vadd.f32 %v2598, %v2528
      %v2631 = vadd.f32 %v2599, %v2530
      %v2632 = vadd.f32 %v2600, %v2533
      %v2633 = vadd.f32 %v2601, %v2535
      %v2634 = vadd.f32 %v2602, %v2538
      %v2635 = vadd.f32 %v2603, %v2540
      %v2636 = vadd.f32 %v2604, %v2543
      %v2637 = vadd.f32 %v2605, %v2545
      %v2638 = vadd.f32 %v2606, %v2548
      %v2639 = vadd.f32 %v2607, %v2550
      %v2640 = vadd.f32 %v2608, %v2553
      %v2641 = vadd.f32 %v2609, %v2555
      %v2642 = vadd.f32 %v2610, %v2558
      %v2643 = vadd.f32 %v2611, %v2560
      %v2644 = vadd.f32 %v2612, %v2563
      %v2645 = vadd.f32 %v2613, %v2565
      %v2646 = vadd.f32 %v2614, %v2568
      %v2647 = vadd.f32 %v2615, %v2570
      %v2648 = vadd.f32 %v2616, %v2573
      %v2649 = vadd.f32 %v2617, %v2575
      %v2650 = vadd.f32 %v2618, %v2578
      %v2651 = vadd.f32 %v2619, %v2580
      %v2652 = vadd.f32 %v2620, %v2583
      %v2653 = vadd.f32 %v2621, %v2585
      %v2654 = vadd.f32 %v2622, %v2588
      %v2655 = vadd.f32 %v2623, %v2590
      %2656 = vst [vmem:[#allocation2] sm:$0xff] %v2624
      %2657 = vst [vmem:[#allocation2 + $0x8] sm:$0xff] %v2625
      %2658 = vst [vmem:[#allocation2 + $0x10] sm:$0xff] %v2626
      %2659 = vst [vmem:[#allocation2 + $0x18] sm:$0xff] %v2627
      %2660 = vst [vmem:[#allocation2 + $0x20] sm:$0xff] %v2628
      %2661 = vst [vmem:[#allocation2 + $0x28] sm:$0xff] %v2629
      %2662 = vst [vmem:[#allocation2 + $0x30] sm:$0xff] %v2630
      %2663 = vst [vmem:[#allocation2 + $0x38] sm:$0xff] %v2631
      %2664 = vst [vmem:[#allocation2 + $0x40] sm:$0xff] %v2632
      %2665 = vst [vmem:[#allocation2 + $0x48] sm:$0xff] %v2633
      %2666 = vst [vmem:[#allocation2 + $0x50] sm:$0xff] %v2634
      %2667 = vst [vmem:[#allocation2 + $0x58] sm:$0xff] %v2635
      %2668 = vst [vmem:[#allocation2 + $0x60] sm:$0xff] %v2636
      %2669 = vst [vmem:[#allocation2 + $0x68] sm:$0xff] %v2637
      %2670 = vst [vmem:[#allocation2 + $0x70] sm:$0xff] %v2638
      %2671 = vst [vmem:[#allocation2 + $0x78] sm:$0xff] %v2639
      %2672 = vst [vmem:[#allocation2 + $0x80] sm:$0xff] %v2640
      %2673 = vst [vmem:[#allocation2 + $0x88] sm:$0xff] %v2641
      %2674 = vst [vmem:[#allocation2 + $0x90] sm:$0xff] %v2642
      %2675 = vst [vmem:[#allocation2 + $0x98] sm:$0xff] %v2643
      %2676 = vst [vmem:[#allocation2 + $0xa0] sm:$0xff] %v2644
      %2677 = vst [vmem:[#allocation2 + $0xa8] sm:$0xff] %v2645
      %2678 = vst [vmem:[#allocation2 + $0xb0] sm:$0xff] %v2646
      %2679 = vst [vmem:[#allocation2 + $0xb8] sm:$0xff] %v2647
      %2680 = vst [vmem:[#allocation2 + $0xc0] sm:$0xff] %v2648
      %2681 = vst [vmem:[#allocation2 + $0xc8] sm:$0xff] %v2649
      %2682 = vst [vmem:[#allocation2 + $0xd0] sm:$0xff] %v2650
      %2683 = vst [vmem:[#allocation2 + $0xd8] sm:$0xff] %v2651
      %2684 = vst [vmem:[#allocation2 + $0xe0] sm:$0xff] %v2652
      %2685 = vst [vmem:[#allocation2 + $0xe8] sm:$0xff] %v2653
      %2686 = vst [vmem:[#allocation2 + $0xf0] sm:$0xff] %v2654
      %2687 = vst [vmem:[#allocation2 + $0xf8] sm:$0xff] %v2655
      %v2688 = vld [vmem:[#allocation2] sm:$0xff]
      %v2689 = vld [vmem:[#allocation2 + $0x8] sm:$0xff]
      %v2690 = vld [vmem:[#allocation2 + $0x10] sm:$0xff]
      %v2691 = vld [vmem:[#allocation2 + $0x18] sm:$0xff]
      %v2692 = vld [vmem:[#allocation2 + $0x20] sm:$0xff]
      %v2693 = vld [vmem:[#allocation2 + $0x28] sm:$0xff]
      %v2694 = vld [vmem:[#allocation2 + $0x30] sm:$0xff]
      %v2695 = vld [vmem:[#allocation2 + $0x38] sm:$0xff]
      %v2696 = vld [vmem:[#allocation2 + $0x40] sm:$0xff]
      %v2697 = vld [vmem:[#allocation2 + $0x48] sm:$0xff]
      %v2698 = vld [vmem:[#allocation2 + $0x50] sm:$0xff]
      %v2699 = vld [vmem:[#allocation2 + $0x58] sm:$0xff]
      %v2700 = vld [vmem:[#allocation2 + $0x60] sm:$0xff]
      %v2701 = vld [vmem:[#allocation2 + $0x68] sm:$0xff]
      %v2702 = vld [vmem:[#allocation2 + $0x70] sm:$0xff]
      %v2703 = vld [vmem:[#allocation2 + $0x78] sm:$0xff]
      %v2704 = vld [vmem:[#allocation2 + $0x80] sm:$0xff]
      %v2705 = vld [vmem:[#allocation2 + $0x88] sm:$0xff]
      %v2706 = vld [vmem:[#allocation2 + $0x90] sm:$0xff]
      %v2707 = vld [vmem:[#allocation2 + $0x98] sm:$0xff]
      %v2708 = vld [vmem:[#allocation2 + $0xa0] sm:$0xff]
      %v2709 = vld [vmem:[#allocation2 + $0xa8] sm:$0xff]
      %v2710 = vld [vmem:[#allocation2 + $0xb0] sm:$0xff]
      %v2711 = vld [vmem:[#allocation2 + $0xb8] sm:$0xff]
      %v2712 = vld [vmem:[#allocation2 + $0xc0] sm:$0xff]
      %v2713 = vld [vmem:[#allocation2 + $0xc8] sm:$0xff]
      %v2714 = vld [vmem:[#allocation2 + $0xd0] sm:$0xff]
      %v2715 = vld [vmem:[#allocation2 + $0xd8] sm:$0xff]
      %v2716 = vld [vmem:[#allocation2 + $0xe0] sm:$0xff]
      %v2717 = vld [vmem:[#allocation2 + $0xe8] sm:$0xff]
      %v2718 = vld [vmem:[#allocation2 + $0xf0] sm:$0xff]
      %v2719 = vld [vmem:[#allocation2 + $0xf8] sm:$0xff]
      %v2720 = vld [vmem:[%s2] sm:$0x1]
      %v2722 = vperm.slane %v2720, 0
      %v2724 = vadd.f32 %v2688, %v2722
      %v2725 = vadd.f32 %v2689, %v2722
      %v2726 = vadd.f32 %v2690, %v2722
      %v2727 = vadd.f32 %v2691, %v2722
      %v2728 = vadd.f32 %v2692, %v2722
      %v2729 = vadd.f32 %v2693, %v2722
      %v2730 = vadd.f32 %v2694, %v2722
      %v2731 = vadd.f32 %v2695, %v2722
      %v2732 = vadd.f32 %v2696, %v2722
      %v2733 = vadd.f32 %v2697, %v2722
      %v2734 = vadd.f32 %v2698, %v2722
      %v2735 = vadd.f32 %v2699, %v2722
      %v2736 = vadd.f32 %v2700, %v2722
      %v2737 = vadd.f32 %v2701, %v2722
      %v2738 = vadd.f32 %v2702, %v2722
      %v2739 = vadd.f32 %v2703, %v2722
      %v2740 = vadd.f32 %v2704, %v2722
      %v2741 = vadd.f32 %v2705, %v2722
      %v2742 = vadd.f32 %v2706, %v2722
      %v2743 = vadd.f32 %v2707, %v2722
      %v2744 = vadd.f32 %v2708, %v2722
      %v2745 = vadd.f32 %v2709, %v2722
      %v2746 = vadd.f32 %v2710, %v2722
      %v2747 = vadd.f32 %v2711, %v2722
      %v2748 = vadd.f32 %v2712, %v2722
      %v2749 = vadd.f32 %v2713, %v2722
      %v2750 = vadd.f32 %v2714, %v2722
      %v2751 = vadd.f32 %v2715, %v2722
      %v2752 = vadd.f32 %v2716, %v2722
      %v2753 = vadd.f32 %v2717, %v2722
      %v2754 = vadd.f32 %v2718, %v2722
      %v2755 = vadd.f32 %v2719, %v2722
      %v2756 = vmax.f32 %v2724, 0.0
      %v2757 = vmax.f32 %v2725, 0.0
      %v2758 = vmax.f32 %v2726, 0.0
      %v2759 = vmax.f32 %v2727, 0.0
      %v2760 = vmax.f32 %v2728, 0.0
      %v2761 = vmax.f32 %v2729, 0.0
      %v2762 = vmax.f32 %v2730, 0.0
      %v2763 = vmax.f32 %v2731, 0.0
      %v2764 = vmax.f32 %v2732, 0.0
      %v2765 = vmax.f32 %v2733, 0.0
      %v2766 = vmax.f32 %v2734, 0.0
      %v2767 = vmax.f32 %v2735, 0.0
      %v2768 = vmax.f32 %v2736, 0.0
      %v2769 = vmax.f32 %v2737, 0.0
      %v2770 = vmax.f32 %v2738, 0.0
      %v2771 = vmax.f32 %v2739, 0.0
      %v2772 = vmax.f32 %v2740, 0.0
      %v2773 = vmax.f32 %v2741, 0.0
      %v2774 = vmax.f32 %v2742, 0.0
      %v2775 = vmax.f32 %v2743, 0.0
      %v2776 = vmax.f32 %v2744, 0.0
      %v2777 = vmax.f32 %v2745, 0.0
      %v2778 = vmax.f32 %v2746, 0.0
      %v2779 = vmax.f32 %v2747, 0.0
      %v2780 = vmax.f32 %v2748, 0.0
      %v2781 = vmax.f32 %v2749, 0.0
      %v2782 = vmax.f32 %v2750, 0.0
      %v2783 = vmax.f32 %v2751, 0.0
      %v2784 = vmax.f32 %v2752, 0.0
      %v2785 = vmax.f32 %v2753, 0.0
      %v2786 = vmax.f32 %v2754, 0.0
      %v2787 = vmax.f32 %v2755, 0.0
      %2788 = vst [vmem:[%s170] sm:$0xff] %v2756
      %2789 = vst [vmem:[%s170 + $0x8] sm:$0xff] %v2757
      %2790 = vst [vmem:[%s170 + $0x10] sm:$0xff] %v2758
      %2791 = vst [vmem:[%s170 + $0x18] sm:$0xff] %v2759
      %2792 = vst [vmem:[%s170 + $0x20] sm:$0xff] %v2760
      %2793 = vst [vmem:[%s170 + $0x28] sm:$0xff] %v2761
      %2794 = vst [vmem:[%s170 + $0x30] sm:$0xff] %v2762
      %2795 = vst [vmem:[%s170 + $0x38] sm:$0xff] %v2763
      %2796 = vst [vmem:[%s170 + $0x40] sm:$0xff] %v2764
      %2797 = vst [vmem:[%s170 + $0x48] sm:$0xff] %v2765
      %2798 = vst [vmem:[%s170 + $0x50] sm:$0xff] %v2766
      %2799 = vst [vmem:[%s170 + $0x58] sm:$0xff] %v2767
      %2800 = vst [vmem:[%s170 + $0x60] sm:$0xff] %v2768
      %2801 = vst [vmem:[%s170 + $0x68] sm:$0xff] %v2769
      %2802 = vst [vmem:[%s170 + $0x70] sm:$0xff] %v2770
      %2803 = vst [vmem:[%s170 + $0x78] sm:$0xff] %v2771
      %2804 = vst [vmem:[%s170 + $0x80] sm:$0xff] %v2772
      %2805 = vst [vmem:[%s170 + $0x88] sm:$0xff] %v2773
      %2806 = vst [vmem:[%s170 + $0x90] sm:$0xff] %v2774
      %2807 = vst [vmem:[%s170 + $0x98] sm:$0xff] %v2775
      %2808 = vst [vmem:[%s170 + $0xa0] sm:$0xff] %v2776
      %2809 = vst [vmem:[%s170 + $0xa8] sm:$0xff] %v2777
      %2810 = vst [vmem:[%s170 + $0xb0] sm:$0xff] %v2778
      %2811 = vst [vmem:[%s170 + $0xb8] sm:$0xff] %v2779
      %2812 = vst [vmem:[%s170 + $0xc0] sm:$0xff] %v2780
      %2813 = vst [vmem:[%s170 + $0xc8] sm:$0xff] %v2781
      %2814 = vst [vmem:[%s170 + $0xd0] sm:$0xff] %v2782
      %2815 = vst [vmem:[%s170 + $0xd8] sm:$0xff] %v2783
      %2816 = vst [vmem:[%s170 + $0xe0] sm:$0xff] %v2784
      %2817 = vst [vmem:[%s170 + $0xe8] sm:$0xff] %v2785
      %2818 = vst [vmem:[%s170 + $0xf0] sm:$0xff] %v2786
      %2819 = vst [vmem:[%s170 + $0xf8] sm:$0xff] %v2787
      %p2820 = scmp.lt.s32.totalorder %s14, 1
      %s2821 = scalar_select %p2820, %s14, 1
      %s2822 = smul.addr %s2821, 32
      %s2823 = smul.addr %s2822, 8
      %s2824 = scalar_lea.vmem %s3, %s2823
      // Predicated region
      $region33: #{contrastive_encoder_forward.2} parent=31 // pred_check
        %p2825 = pneg %p100
      $region34: #{contrastive_encoder_forward.2} parent=31 // pred_check_branch
        %2827 = sbr.rel (%p2825) target = $region36
      $region35: #{contrastive_encoder_forward.2} parent=31 // pred_region
        _
      $region36: #{contrastive_encoder_forward.2} parent=31 // pred_fallthru
        _
    $region32: #{contrastive_encoder_forward.2} parent=5 // pred_fallthru
      _
    %p2828 = scmp.le.s32.totalorder 2, %s9
    // Predicated region
    $region37: #{contrastive_encoder_forward.2} parent=5 // pred_check
      %p2829 = pneg %p2828
    $region38: #{contrastive_encoder_forward.2} parent=5 // pred_check_branch
      %2831 = sbr.rel (%p2829) target = $region40
    $region39: #{contrastive_encoder_forward.2} parent=5 // pred_region
      %s2832 = ssub.s32 %s9, 2
      // Predicated region
      $region41: #{contrastive_encoder_forward.2} parent=39 // pred_check
        %p2833 = pneg %p106
      $region42: #{contrastive_encoder_forward.2} parent=39 // pred_check_branch
        %2835 = sbr.rel (%p2833) target = $region44
      $region43: #{contrastive_encoder_forward.2} parent=39 // pred_region
        %p2836 = scmp.lt.s32.totalorder %s15, 1
        %s2837 = scalar_select %p2836, %s15, 1
        %s2838 = smul.addr %s2837, 32
        %s2839 = smul.addr %s2838, 8
        %s2840 = scalar_lea.vmem %s3, %s2839
      $region44: #{contrastive_encoder_forward.2} parent=39 // pred_fallthru
        _
    $region40: #{contrastive_encoder_forward.2} parent=5 // pred_fallthru
      _
  $region6: #{contrastive_encoder_forward.2} parent=0 // loop_footer
    %s13 = sadd.s32 1, %s9
  $region7: #{contrastive_encoder_forward.2} parent=0 // loop_footer_branch
    %8 = sbr.rel target = $region3
  $region8: #{contrastive_encoder_forward.2} parent=0 // loop_exit
    _

// kernel: contrastive_encoder_forward.3
$region0: #{contrastive_encoder_forward.3}
  #allocation0 [shape = 'u32[]', space=smem, size = 0x4, offset = 0x4, fixed_abs, tag = 'smem constant byte address 0x4 - core index']
  #allocation1 [shape = 'u32[72,128]{1,0:T(1,128)}', space=vmem, size = 0x9000, scoped, tag = 'internal scratch']
  #allocation2 [shape = 'f32[64,128]{1,0:T(8,128)}', space=vmem, size = 0x8000, scoped, tag = 'scratch operand']
  %s0 = inlined_call_operand.vmem [shape: f32[2,4,9,9,128], index: 0, kind: input, shape index: {}]
  %s1 = inlined_call_operand.vmem [shape: bf16[3,3,128,128], index: 1, kind: input, shape index: {}]
  %s2 = inlined_call_operand.vmem [shape: f32[1,128], index: 2, kind: input, shape index: {}]
  %s3 = inlined_call_operand.vmem [shape: f32[128,128], index: 3, kind: input, shape index: {}]
  %s4 = inlined_call_operand.vmem [shape: f32[1,128], index: 4, kind: input, shape index: {}]
  %s5 = inlined_call_operand.vmem [shape: f32[128,128], index: 5, kind: input, shape index: {}]
  %s6 = inlined_call_operand.vmem [shape: f32[1,128], index: 6, kind: input, shape index: {}]
  %s7 = inlined_call_operand.hbm [shape: f32[2,1,128], index: 7, kind: output, shape index: {}]
  %s8 = sld [smem:[#allocation0]]
  $region61: #{contrastive_encoder_forward.3} parent=0
    _
  %s10 = ssub.s32 1, %s8
  %s11 = scalar_select 0, %s10, %s8
  $region1: #{contrastive_encoder_forward.3} parent=0
    #allocation3 [shape = 'u8[1024]{0}', space=vmem, size = 0x400, scoped, tag = 'output window, operand 0']
    #allocation4 [shape = 's32[2]{0}', space=sflag, size = 0x8, scoped, tag = 'scoped memory for contrastive_encoder_forward.3']
    %12 = vsyncpa [#allocation4], 0
    %s13 = scalar_lea.sflag [#allocation4], 1
    %14 = vsyncpa %s13, 0
    loop: start=0, step=1, limit=4
    $region2: #{contrastive_encoder_forward.3} parent=1 // loop_pre_header
      _
    $region3: #{contrastive_encoder_forward.3} parent=1 // loop_header
      %s16 = sphi 0, %s20
      %p17 = scmp.ge.s32.totalorder %s16, 4
      %s26 = sphi 0, %s28
      %s29 = sphi 0, %s26
      %s30 = sphi 0, %s29
      %s46 = sphi 0, %s30
      %s50 = sphi 0, %s50
      %s52 = sphi 0, %s50
      %s53 = sphi 0, %s52
      %s67 = sphi 0, %s53
      %s71 = sphi 0, %s71
      %s73 = sphi 0, %s71
      %s74 = sphi 0, %s73
      %s88 = sphi 0, %s74
      %s92 = sphi 0, %s92
      %s94 = sphi 0, %s92
      %s95 = sphi 0, %s94
      %s109 = sphi 0, %s95
      %s113 = sphi 0, %s113
      %s115 = sphi 0, %s113
      %s116 = sphi 0, %s115
      %s130 = sphi 0, %s116
      %s134 = sphi 0, %s134
      %s136 = sphi 0, %s134
      %s137 = sphi 0, %s136
      %s151 = sphi 0, %s137
      %s155 = sphi 0, %s155
      %s157 = sphi 0, %s155
      %s158 = sphi 0, %s157
      %s172 = sphi 0, %s158
      %s178 = sphi 0, %s180
      %s181 = sphi 0, %s178
      %s182 = sphi 0, %s181
      %s198 = sphi 0, %s182
    $region4: #{contrastive_encoder_forward.3} parent=1 // loop_header_branch
      %19 = sbr.rel (%p17) target = $region8
    $region5: #{contrastive_encoder_forward.3} parent=1 // loop_body
      %s21 = ssub.s32 %s16, 1
      %s22 = ssub.s32 %s16, 2
      %s23 = sadd.s32 %s16, 1
      %s24 = ssub.s32 %s16, %s23
      %p25 = scmp.eq.s32.totalorder %s24, 0
      %s27 = sadd.s32 %s26, 1
      %s28 = scalar_select %p25, %s26, %s27
      %p31 = pneg %p25
      %p32 = scmp.eq.s32.totalorder %s16, 1
      %p33 = por %p31, %p32
      %p34 = scmp.ne.s32.totalorder %s26, %s29
      %p35 = scmp.eq.s32.totalorder %s16, 0
      %p36 = por %p34, %p35
      %p37 = scmp.ne.s32.totalorder %s26, %s29
      %p38 = scmp.eq.s32.totalorder %s21, 1
      %p39 = por %p37, %p38
      %p40 = scmp.ne.s32.totalorder %s29, %s30
      %p41 = scmp.eq.s32.totalorder %s21, 0
      %p42 = por %p40, %p41
      %p43 = scmp.ne.s32.totalorder %s29, %s30
      %p44 = scmp.eq.s32.totalorder %s22, 1
      %p45 = por %p43, %p44
      %p47 = scmp.ne.s32.totalorder %s30, %s46
      %p48 = scmp.eq.s32.totalorder %s22, 0
      %p49 = por %p47, %p48
      %s51 = sadd.s32 %s50, 1
      %p54 = scmp.eq.s32.totalorder %s16, 1
      %p55 = scmp.ne.s32.totalorder %s50, %s52
      %p56 = scmp.eq.s32.totalorder %s16, 0
      %p57 = por %p55, %p56
      %p58 = scmp.ne.s32.totalorder %s50, %s52
      %p59 = scmp.eq.s32.totalorder %s21, 1
      %p60 = por %p58, %p59
      %p61 = scmp.ne.s32.totalorder %s52, %s53
      %p62 = scmp.eq.s32.totalorder %s21, 0
      %p63 = por %p61, %p62
      %p64 = scmp.ne.s32.totalorder %s52, %s53
      %p65 = scmp.eq.s32.totalorder %s22, 1
      %p66 = por %p64, %p65
      %p68 = scmp.ne.s32.totalorder %s53, %s67
      %p69 = scmp.eq.s32.totalorder %s22, 0
      %p70 = por %p68, %p69
      %s72 = sadd.s32 %s71, 1
      %p75 = scmp.eq.s32.totalorder %s16, 1
      %p76 = scmp.ne.s32.totalorder %s71, %s73
      %p77 = scmp.eq.s32.totalorder %s16, 0
      %p78 = por %p76, %p77
      %p79 = scmp.ne.s32.totalorder %s71, %s73
      %p80 = scmp.eq.s32.totalorder %s21, 1
      %p81 = por %p79, %p80
      %p82 = scmp.ne.s32.totalorder %s73, %s74
      %p83 = scmp.eq.s32.totalorder %s21, 0
      %p84 = por %p82, %p83
      %p85 = scmp.ne.s32.totalorder %s73, %s74
      %p86 = scmp.eq.s32.totalorder %s22, 1
      %p87 = por %p85, %p86
      %p89 = scmp.ne.s32.totalorder %s74, %s88
      %p90 = scmp.eq.s32.totalorder %s22, 0
      %p91 = por %p89, %p90
      %s93 = sadd.s32 %s92, 1
      %p96 = scmp.eq.s32.totalorder %s16, 1
      %p97 = scmp.ne.s32.totalorder %s92, %s94
      %p98 = scmp.eq.s32.totalorder %s16, 0
      %p99 = por %p97, %p98
      %p100 = scmp.ne.s32.totalorder %s92, %s94
      %p101 = scmp.eq.s32.totalorder %s21, 1
      %p102 = por %p100, %p101
      %p103 = scmp.ne.s32.totalorder %s94, %s95
      %p104 = scmp.eq.s32.totalorder %s21, 0
      %p105 = por %p103, %p104
      %p106 = scmp.ne.s32.totalorder %s94, %s95
      %p107 = scmp.eq.s32.totalorder %s22, 1
      %p108 = por %p106, %p107
      %p110 = scmp.ne.s32.totalorder %s95, %s109
      %p111 = scmp.eq.s32.totalorder %s22, 0
      %p112 = por %p110, %p111
      %s114 = sadd.s32 %s113, 1
      %p117 = scmp.eq.s32.totalorder %s16, 1
      %p118 = scmp.ne.s32.totalorder %s113, %s115
      %p119 = scmp.eq.s32.totalorder %s16, 0
      %p120 = por %p118, %p119
      %p121 = scmp.ne.s32.totalorder %s113, %s115
      %p122 = scmp.eq.s32.totalorder %s21, 1
      %p123 = por %p121, %p122
      %p124 = scmp.ne.s32.totalorder %s115, %s116
      %p125 = scmp.eq.s32.totalorder %s21, 0
      %p126 = por %p124, %p125
      %p127 = scmp.ne.s32.totalorder %s115, %s116
      %p128 = scmp.eq.s32.totalorder %s22, 1
      %p129 = por %p127, %p128
      %p131 = scmp.ne.s32.totalorder %s116, %s130
      %p132 = scmp.eq.s32.totalorder %s22, 0
      %p133 = por %p131, %p132
      %s135 = sadd.s32 %s134, 1
      %p138 = scmp.eq.s32.totalorder %s16, 1
      %p139 = scmp.ne.s32.totalorder %s134, %s136
      %p140 = scmp.eq.s32.totalorder %s16, 0
      %p141 = por %p139, %p140
      %p142 = scmp.ne.s32.totalorder %s134, %s136
      %p143 = scmp.eq.s32.totalorder %s21, 1
      %p144 = por %p142, %p143
      %p145 = scmp.ne.s32.totalorder %s136, %s137
      %p146 = scmp.eq.s32.totalorder %s21, 0
      %p147 = por %p145, %p146
      %p148 = scmp.ne.s32.totalorder %s136, %s137
      %p149 = scmp.eq.s32.totalorder %s22, 1
      %p150 = por %p148, %p149
      %p152 = scmp.ne.s32.totalorder %s137, %s151
      %p153 = scmp.eq.s32.totalorder %s22, 0
      %p154 = por %p152, %p153
      %s156 = sadd.s32 %s155, 1
      %p159 = scmp.eq.s32.totalorder %s16, 1
      %p160 = scmp.ne.s32.totalorder %s155, %s157
      %p161 = scmp.eq.s32.totalorder %s16, 0
      %p162 = por %p160, %p161
      %p163 = scmp.ne.s32.totalorder %s155, %s157
      %p164 = scmp.eq.s32.totalorder %s21, 1
      %p165 = por %p163, %p164
      %p166 = scmp.ne.s32.totalorder %s157, %s158
      %p167 = scmp.eq.s32.totalorder %s21, 0
      %p168 = por %p166, %p167
      %p169 = scmp.ne.s32.totalorder %s157, %s158
      %p170 = scmp.eq.s32.totalorder %s22, 1
      %p171 = por %p169, %p170
      %p173 = scmp.ne.s32.totalorder %s158, %s172
      %p174 = scmp.eq.s32.totalorder %s22, 0
      %p175 = por %p173, %p174
      %s176 = ssub.s32 %s16, %s23
      %p177 = scmp.eq.s32.totalorder %s176, 0
      %s179 = sadd.s32 %s178, 1
      %s180 = scalar_select %p177, %s178, %s179
      %p183 = pneg %p177
      %p184 = scmp.eq.s32.totalorder %s16, 1
      %p185 = por %p183, %p184
      %p186 = scmp.ne.s32.totalorder %s178, %s181
      %p187 = scmp.eq.s32.totalorder %s16, 0
      %p188 = por %p186, %p187
      %p189 = scmp.ne.s32.totalorder %s178, %s181
      %p190 = scmp.eq.s32.totalorder %s21, 1
      %p191 = por %p189, %p190
      %p192 = scmp.ne.s32.totalorder %s181, %s182
      %p193 = scmp.eq.s32.totalorder %s21, 0
      %p194 = por %p192, %p193
      %p195 = scmp.ne.s32.totalorder %s181, %s182
      %p196 = scmp.eq.s32.totalorder %s22, 1
      %p197 = por %p195, %p196
      %p199 = scmp.ne.s32.totalorder %s182, %s198
      %p200 = scmp.eq.s32.totalorder %s22, 0
      %p201 = por %p199, %p200
      %p202 = scmp.le.s32.totalorder 1, %s16
      %p203 = scmp.lt.s32.totalorder %s16, 3
      %p204 = pnand %p202, %p203
      %p205 = pneg %p204
      // Predicated region
      $region9: #{contrastive_encoder_forward.3} parent=5 // pred_check
        _
      $region10: #{contrastive_encoder_forward.3} parent=5 // pred_check_branch
        %207 = sbr.rel (%p204) target = $region12
      $region11: #{contrastive_encoder_forward.3} parent=5 // pred_region
        %s208 = ssub.s32 %s16, 1
        // Predicated region
        $region13: #{contrastive_encoder_forward.3} parent=11 // pred_check
          %p209 = pneg %p63
        $region14: #{contrastive_encoder_forward.3} parent=11 // pred_check_branch
          %211 = sbr.rel (%p209) target = $region16
        $region15: #{contrastive_encoder_forward.3} parent=11 // pred_region
          _
        $region16: #{contrastive_encoder_forward.3} parent=11 // pred_fallthru
          _
        // Predicated region
        $region17: #{contrastive_encoder_forward.3} parent=11 // pred_check
          %p212 = pneg %p84
        $region18: #{contrastive_encoder_forward.3} parent=11 // pred_check_branch
          %214 = sbr.rel (%p212) target = $region20
        $region19: #{contrastive_encoder_forward.3} parent=11 // pred_region
          _
        $region20: #{contrastive_encoder_forward.3} parent=11 // pred_fallthru
          _
        // Predicated region
        $region21: #{contrastive_encoder_forward.3} parent=11 // pred_check
          %p215 = pneg %p105
        $region22: #{contrastive_encoder_forward.3} parent=11 // pred_check_branch
          %217 = sbr.rel (%p215) target = $region24
        $region23: #{contrastive_encoder_forward.3} parent=11 // pred_region
          _
        $region24: #{contrastive_encoder_forward.3} parent=11 // pred_fallthru
          _
        // Predicated region
        $region25: #{contrastive_encoder_forward.3} parent=11 // pred_check
          %p218 = pneg %p126
        $region26: #{contrastive_encoder_forward.3} parent=11 // pred_check_branch
          %220 = sbr.rel (%p218) target = $region28
        $region27: #{contrastive_encoder_forward.3} parent=11 // pred_region
          _
        $region28: #{contrastive_encoder_forward.3} parent=11 // pred_fallthru
          _
        // Predicated region
        $region29: #{contrastive_encoder_forward.3} parent=11 // pred_check
          %p221 = pneg %p147
        $region30: #{contrastive_encoder_forward.3} parent=11 // pred_check_branch
          %223 = sbr.rel (%p221) target = $region32
        $region31: #{contrastive_encoder_forward.3} parent=11 // pred_region
          _
        $region32: #{contrastive_encoder_forward.3} parent=11 // pred_fallthru
          _
        // Predicated region
        $region33: #{contrastive_encoder_forward.3} parent=11 // pred_check
          %p224 = pneg %p168
        $region34: #{contrastive_encoder_forward.3} parent=11 // pred_check_branch
          %226 = sbr.rel (%p224) target = $region36
        $region35: #{contrastive_encoder_forward.3} parent=11 // pred_region
          _
        $region36: #{contrastive_encoder_forward.3} parent=11 // pred_fallthru
          _
      $region12: #{contrastive_encoder_forward.3} parent=5 // pred_fallthru
        _
      %p227 = scmp.lt.s32.totalorder %s16, 2
      // Predicated region
      $region37: #{contrastive_encoder_forward.3} parent=5 // pred_check
        %p228 = pneg %p227
      $region38: #{contrastive_encoder_forward.3} parent=5 // pred_check_branch
        %230 = sbr.rel (%p228) target = $region40
      $region39: #{contrastive_encoder_forward.3} parent=5 // pred_region
        // Predicated region
        $region41: #{contrastive_encoder_forward.3} parent=39 // pred_check
          %p231 = pneg %p36
        $region42: #{contrastive_encoder_forward.3} parent=39 // pred_check_branch
          %233 = sbr.rel (%p231) target = $region44
        $region43: #{contrastive_encoder_forward.3} parent=39 // pred_region
          %p234 = scmp.lt.s32.totalorder %s16, 1
          %s235 = scalar_select %p234, %s16, 1
          %s236 = smul.addr %s235, 72
          %s237 = smul.addr %s236, 8
          %s238 = scalar_lea.vmem %s0, %s237
        $region44: #{contrastive_encoder_forward.3} parent=39 // pred_fallthru
          _
      $region40: #{contrastive_encoder_forward.3} parent=5 // pred_fallthru
        _
      %p239 = scmp.le.s32.totalorder 1, %s16
      %p240 = scmp.lt.s32.totalorder %s16, 3
      %p241 = pnand %p239, %p240
      %p242 = pneg %p241
      // Predicated region
      $region45: #{contrastive_encoder_forward.3} parent=5 // pred_check
        _
      $region46: #{contrastive_encoder_forward.3} parent=5 // pred_check_branch
        %244 = sbr.rel (%p241) target = $region48
      $region47: #{contrastive_encoder_forward.3} parent=5 // pred_region
        %s245 = ssub.s32 %s16, 1
        %p246 = scmp.lt.s32.totalorder %s21, 1
        %s247 = scalar_select %p246, %s21, 1
        %s248 = smul.addr %s247, 72
        %s249 = smul.addr %s248, 8
        %s250 = scalar_lea.vmem %s0, %s249
        %p251 = pneg %p42
        %p252 = pneg %p39
        %p253 = pneg %p63
        %p254 = pneg %p60
        %p255 = pneg %p84
        %p256 = pneg %p81
        %p257 = pneg %p105
        %p258 = pneg %p102
        %p259 = pneg %p126
        %p260 = pneg %p123
        %p261 = pneg %p147
        %p262 = pneg %p144
        %p263 = pneg %p168
        %p264 = pneg %p165
        %p265 = pneg %p194
        %p266 = pneg %p191
        %s267 = sand.u32 %s181, 1
        %s268 = scalar_lea.sflag [#allocation4], %s267
        %s269 = sand.u32 %s181, 1
        %s270 = scalar_lea.vmem [#allocation3], %s269
        %p271 = scmp.lt.s32.totalorder %s21, 1
        %s272 = scalar_select %p271, %s21, 1
        %s273 = smul.addr %s272, 72
        %s274 = smul.addr %s273, 8
        %s275 = scalar_lea.vmem %s0, %s274
        %v276 = vld [vmem:[%s275] sm:$0xff]
        %v277 = vld [vmem:[%s275 + $0x10] sm:$0xff]
        %v278 = vld [vmem:[%s275 + $0x20] sm:$0xff]
        %v279 = vld [vmem:[%s275 + $0x30] sm:$0xff]
        %v280 = vld [vmem:[%s275 + $0x40] sm:$0xff]
        %v281 = vld [vmem:[%s275 + $0x50] sm:$0xff]
        %v282 = vld [vmem:[%s275 + $0x60] sm:$0xff]
        %v283 = vld [vmem:[%s275 + $0x70] sm:$0xff]
        %v284 = vpack.c.bf16 %v277, %v276
        %v285 = vpack.c.bf16 %v279, %v278
        %v286 = vpack.c.bf16 %v281, %v280
        %v287 = vpack.c.bf16 %v283, %v282
        %v288 = vld [vmem:[%s1] sm:$0xf]
        %v289 = vld [vmem:[%s1 + $0x4] sm:$0xf]
        %v290 = vld [vmem:[%s1 + $0x8] sm:$0xf]
        %v291 = vld [vmem:[%s1 + $0xc] sm:$0xf]
        %v292 = vld [vmem:[%s1 + $0x10] sm:$0xf]
        %v293 = vld [vmem:[%s1 + $0x14] sm:$0xf]
        %v294 = vld [vmem:[%s1 + $0x18] sm:$0xf]
        %v295 = vld [vmem:[%s1 + $0x1c] sm:$0xf]
        %v296 = vld [vmem:[%s1 + $0x20] sm:$0xf]
        %v297 = vld [vmem:[%s1 + $0x24] sm:$0xf]
        %v298 = vld [vmem:[%s1 + $0x28] sm:$0xf]
        %v299 = vld [vmem:[%s1 + $0x2c] sm:$0xf]
        %v300 = vld [vmem:[%s1 + $0x30] sm:$0xf]
        %v301 = vld [vmem:[%s1 + $0x34] sm:$0xf]
        %v302 = vld [vmem:[%s1 + $0x38] sm:$0xf]
        %v303 = vld [vmem:[%s1 + $0x3c] sm:$0xf]
        %v320 = vunpack.c.l.b16 %v288
        %v321 = vunpack.c.l.b16 %v289
        %v322 = vunpack.c.l.b16 %v290
        %v323 = vunpack.c.l.b16 %v291
        %v324 = vunpack.c.l.b16 %v292
        %v325 = vunpack.c.l.b16 %v293
        %v326 = vunpack.c.l.b16 %v294
        %v327 = vunpack.c.l.b16 %v295
        %v328 = vunpack.c.l.b16 %v296
        %v329 = vunpack.c.l.b16 %v297
        %v330 = vunpack.c.l.b16 %v298
        %v331 = vunpack.c.l.b16 %v299
        %v332 = vunpack.c.l.b16 %v300
        %v333 = vunpack.c.l.b16 %v301
        %v334 = vunpack.c.l.b16 %v302
        %v335 = vunpack.c.l.b16 %v303
        %v336 = vpack.c.b16 %v321, %v320
        %v337 = vpack.c.b16 %v323, %v322
        %v338 = vpack.c.b16 %v325, %v324
        %v339 = vpack.c.b16 %v327, %v326
        %v340 = vpack.c.b16 %v329, %v328
        %v341 = vpack.c.b16 %v331, %v330
        %v342 = vpack.c.b16 %v333, %v332
        %v343 = vpack.c.b16 %v335, %v334
        %352 = vmatpush.bf16.msra.mxu0 %v343
        %353 = vmatpush.bf16.msra.mxu0 %v342
        %354 = vmatpush.bf16.msra.mxu0 %v341
        %355 = vmatpush.bf16.msra.mxu0 %v340
        %356 = vmatpush.bf16.msra.mxu0 %v339
        %357 = vmatpush.bf16.msra.mxu0 %v338
        %358 = vmatpush.bf16.msra.mxu0 %v337
        %359 = vmatpush.bf16.msra.mxu0 %v336
        %360 = vmatmul.bf16.gmra.mxu0 %v284
        %v361 = vpop.f32.mrf.mxu0
        %v362 = vadd.f32 0.0, %v361
        %v363 = vpop.f32.mrf.mxu0
        %v364 = vadd.f32 0.0, %v363
        %365 = vmatmul.bf16.gmra.mxu0 %v285
        %v366 = vpop.f32.mrf.mxu0
        %v367 = vadd.f32 0.0, %v366
        %v368 = vpop.f32.mrf.mxu0
        %v369 = vadd.f32 0.0, %v368
        %370 = vmatmul.bf16.gmra.mxu0 %v286
        %v371 = vpop.f32.mrf.mxu0
        %v372 = vadd.f32 0.0, %v371
        %v373 = vpop.f32.mrf.mxu0
        %v374 = vadd.f32 0.0, %v373
        %375 = vmatmul.bf16.gmra.mxu0 %v287
        %v376 = vpop.f32.mrf.mxu0
        %v377 = vadd.f32 0.0, %v376
        %v378 = vpop.f32.mrf.mxu0
        %v379 = vadd.f32 0.0, %v378
        %380 = vdwg.mxu0
        %381 = vst [vmem:[#allocation2] sm:$0xff] %v362
        %382 = vst [vmem:[#allocation2 + $0x8] sm:$0xff] %v364
        %383 = vst [vmem:[#allocation2 + $0x10] sm:$0xff] %v367
        %384 = vst [vmem:[#allocation2 + $0x18] sm:$0xff] %v369
        %385 = vst [vmem:[#allocation2 + $0x20] sm:$0xff] %v372
        %386 = vst [vmem:[#allocation2 + $0x28] sm:$0xff] %v374
        %387 = vst [vmem:[#allocation2 + $0x30] sm:$0xff] %v377
        %388 = vst [vmem:[#allocation2 + $0x38] sm:$0xff] %v379
        %s389 = scalar_lea.vmem %s275, 144
        %v390 = vld [vmem:[%s389] sm:$0xff]
        %v391 = vld [vmem:[%s389 + $0x10] sm:$0xff]
        %v392 = vld [vmem:[%s389 + $0x20] sm:$0xff]
        %v393 = vld [vmem:[%s389 + $0x30] sm:$0xff]
        %v394 = vld [vmem:[%s389 + $0x40] sm:$0xff]
        %v395 = vld [vmem:[%s389 + $0x50] sm:$0xff]
        %v396 = vld [vmem:[%s389 + $0x60] sm:$0xff]
        %v397 = vld [vmem:[%s389 + $0x70] sm:$0xff]
        %v398 = vpack.c.bf16 %v391, %v390
        %v399 = vpack.c.bf16 %v393, %v392
        %v400 = vpack.c.bf16 %v395, %v394
        %v401 = vpack.c.bf16 %v397, %v396
        %s402 = scalar_lea.vmem %s1, 64
        %v403 = vld [vmem:[%s402] sm:$0xf]
        %v404 = vld [vmem:[%s402 + $0x4] sm:$0xf]
        %v405 = vld [vmem:[%s402 + $0x8] sm:$0xf]
        %v406 = vld [vmem:[%s402 + $0xc] sm:$0xf]
        %v407 = vld [vmem:[%s402 + $0x10] sm:$0xf]
        %v408 = vld [vmem:[%s402 + $0x14] sm:$0xf]
        %v409 = vld [vmem:[%s402 + $0x18] sm:$0xf]
        %v410 = vld [vmem:[%s402 + $0x1c] sm:$0xf]
        %v411 = vld [vmem:[%s402 + $0x20] sm:$0xf]
        %v412 = vld [vmem:[%s402 + $0x24] sm:$0xf]
        %v413 = vld [vmem:[%s402 + $0x28] sm:$0xf]
        %v414 = vld [vmem:[%s402 + $0x2c] sm:$0xf]
        %v415 = vld [vmem:[%s402 + $0x30] sm:$0xf]
        %v416 = vld [vmem:[%s402 + $0x34] sm:$0xf]
        %v417 = vld [vmem:[%s402 + $0x38] sm:$0xf]
        %v418 = vld [vmem:[%s402 + $0x3c] sm:$0xf]
        %v435 = vunpack.c.l.b16 %v403
        %v436 = vunpack.c.l.b16 %v404
        %v437 = vunpack.c.l.b16 %v405
        %v438 = vunpack.c.l.b16 %v406
        %v439 = vunpack.c.l.b16 %v407
        %v440 = vunpack.c.l.b16 %v408
        %v441 = vunpack.c.l.b16 %v409
        %v442 = vunpack.c.l.b16 %v410
        %v443 = vunpack.c.l.b16 %v411
        %v444 = vunpack.c.l.b16 %v412
        %v445 = vunpack.c.l.b16 %v413
        %v446 = vunpack.c.l.b16 %v414
        %v447 = vunpack.c.l.b16 %v415
        %v448 = vunpack.c.l.b16 %v416
        %v449 = vunpack.c.l.b16 %v417
        %v450 = vunpack.c.l.b16 %v418
        %v451 = vpack.c.b16 %v436, %v435
        %v452 = vpack.c.b16 %v438, %v437
        %v453 = vpack.c.b16 %v440, %v439
        %v454 = vpack.c.b16 %v442, %v441
        %v455 = vpack.c.b16 %v444, %v443
        %v456 = vpack.c.b16 %v446, %v445
        %v457 = vpack.c.b16 %v448, %v447
        %v458 = vpack.c.b16 %v450, %v449
        %467 = vmatpush.bf16.msra.mxu0 %v458
        %468 = vmatpush.bf16.msra.mxu0 %v457
        %469 = vmatpush.bf16.msra.mxu0 %v456
        %470 = vmatpush.bf16.msra.mxu0 %v455
        %471 = vmatpush.bf16.msra.mxu0 %v454
        %472 = vmatpush.bf16.msra.mxu0 %v453
        %473 = vmatpush.bf16.msra.mxu0 %v452
        %474 = vmatpush.bf16.msra.mxu0 %v451
        %475 = vmatmul.bf16.gmra.mxu0 %v398
        %v476 = vpop.f32.mrf.mxu0
        %v477 = vadd.f32 0.0, %v476
        %v478 = vpop.f32.mrf.mxu0
        %v479 = vadd.f32 0.0, %v478
        %480 = vmatmul.bf16.gmra.mxu0 %v399
        %v481 = vpop.f32.mrf.mxu0
        %v482 = vadd.f32 0.0, %v481
        %v483 = vpop.f32.mrf.mxu0
        %v484 = vadd.f32 0.0, %v483
        %485 = vmatmul.bf16.gmra.mxu0 %v400
        %v486 = vpop.f32.mrf.mxu0
        %v487 = vadd.f32 0.0, %v486
        %v488 = vpop.f32.mrf.mxu0
        %v489 = vadd.f32 0.0, %v488
        %490 = vmatmul.bf16.gmra.mxu0 %v401
        %v491 = vpop.f32.mrf.mxu0
        %v492 = vadd.f32 0.0, %v491
        %v493 = vpop.f32.mrf.mxu0
        %v494 = vadd.f32 0.0, %v493
        %495 = vdwg.mxu0
        %v496 = vld [vmem:[#allocation2] sm:$0xff]
        %v497 = vld [vmem:[#allocation2 + $0x8] sm:$0xff]
        %v498 = vld [vmem:[#allocation2 + $0x10] sm:$0xff]
        %v499 = vld [vmem:[#allocation2 + $0x18] sm:$0xff]
        %v500 = vld [vmem:[#allocation2 + $0x20] sm:$0xff]
        %v501 = vld [vmem:[#allocation2 + $0x28] sm:$0xff]
        %v502 = vld [vmem:[#allocation2 + $0x30] sm:$0xff]
        %v503 = vld [vmem:[#allocation2 + $0x38] sm:$0xff]
        %v504 = vadd.f32 %v496, %v477
        %v505 = vadd.f32 %v497, %v479
        %v506 = vadd.f32 %v498, %v482
        %v507 = vadd.f32 %v499, %v484
        %v508 = vadd.f32 %v500, %v487
        %v509 = vadd.f32 %v501, %v489
        %v510 = vadd.f32 %v502, %v492
        %v511 = vadd.f32 %v503, %v494
        %512 = vst [vmem:[#allocation2] sm:$0xff] %v504
        %513 = vst [vmem:[#allocation2 + $0x8] sm:$0xff] %v505
        %514 = vst [vmem:[#allocation2 + $0x10] sm:$0xff] %v506
        %515 = vst [vmem:[#allocation2 + $0x18] sm:$0xff] %v507
        %516 = vst [vmem:[#allocation2 + $0x20] sm:$0xff] %v508
        %517 = vst [vmem:[#allocation2 + $0x28] sm:$0xff] %v509
        %518 = vst [vmem:[#allocation2 + $0x30] sm:$0xff] %v510
        %519 = vst [vmem:[#allocation2 + $0x38] sm:$0xff] %v511
        %v520 = vld [vmem:[%s275 + $0x1] sm:$0xff]
        %v521 = vld [vmem:[%s275 + $0x11] sm:$0xff]
        %v522 = vld [vmem:[%s275 + $0x21] sm:$0xff]
        %v523 = vld [vmem:[%s275 + $0x31] sm:$0xff]
        %v524 = vld [vmem:[%s275 + $0x41] sm:$0xff]
        %v525 = vld [vmem:[%s275 + $0x51] sm:$0xff]
        %v526 = vld [vmem:[%s275 + $0x61] sm:$0xff]
        %v527 = vld [vmem:[%s275 + $0x71] sm:$0xff]
        %v528 = vpack.c.bf16 %v521, %v520
        %v529 = vpack.c.bf16 %v523, %v522
        %v530 = vpack.c.bf16 %v525, %v524
        %v531 = vpack.c.bf16 %v527, %v526
        %s532 = scalar_lea.vmem %s1, 128
        %v533 = vld [vmem:[%s532] sm:$0xf]
        %v534 = vld [vmem:[%s532 + $0x4] sm:$0xf]
        %v535 = vld [vmem:[%s532 + $0x8] sm:$0xf]
        %v536 = vld [vmem:[%s532 + $0xc] sm:$0xf]
        %v537 = vld [vmem:[%s532 + $0x10] sm:$0xf]
        %v538 = vld [vmem:[%s532 + $0x14] sm:$0xf]
        %v539 = vld [vmem:[%s532 + $0x18] sm:$0xf]
        %v540 = vld [vmem:[%s532 + $0x1c] sm:$0xf]
        %v541 = vld [vmem:[%s532 + $0x20] sm:$0xf]
        %v542 = vld [vmem:[%s532 + $0x24] sm:$0xf]
        %v543 = vld [vmem:[%s532 + $0x28] sm:$0xf]
        %v544 = vld [vmem:[%s532 + $0x2c] sm:$0xf]
        %v545 = vld [vmem:[%s532 + $0x30] sm:$0xf]
        %v546 = vld [vmem:[%s532 + $0x34] sm:$0xf]
        %v547 = vld [vmem:[%s532 + $0x38] sm:$0xf]
        %v548 = vld [vmem:[%s532 + $0x3c] sm:$0xf]
        %v565 = vunpack.c.l.b16 %v533
        %v566 = vunpack.c.l.b16 %v534
        %v567 = vunpack.c.l.b16 %v535
        %v568 = vunpack.c.l.b16 %v536
        %v569 = vunpack.c.l.b16 %v537
        %v570 = vunpack.c.l.b16 %v538
        %v571 = vunpack.c.l.b16 %v539
        %v572 = vunpack.c.l.b16 %v540
        %v573 = vunpack.c.l.b16 %v541
        %v574 = vunpack.c.l.b16 %v542
        %v575 = vunpack.c.l.b16 %v543
        %v576 = vunpack.c.l.b16 %v544
        %v577 = vunpack.c.l.b16 %v545
        %v578 = vunpack.c.l.b16 %v546
        %v579 = vunpack.c.l.b16 %v547
        %v580 = vunpack.c.l.b16 %v548
        %v581 = vpack.c.b16 %v566, %v565
        %v582 = vpack.c.b16 %v568, %v567
        %v583 = vpack.c.b16 %v570, %v569
        %v584 = vpack.c.b16 %v572, %v571
        %v585 = vpack.c.b16 %v574, %v573
        %v586 = vpack.c.b16 %v576, %v575
        %v587 = vpack.c.b16 %v578, %v577
        %v588 = vpack.c.b16 %v580, %v579
        %597 = vmatpush.bf16.msra.mxu0 %v588
        %598 = vmatpush.bf16.msra.mxu0 %v587
        %599 = vmatpush.bf16.msra.mxu0 %v586
        %600 = vmatpush.bf16.msra.mxu0 %v585
        %601 = vmatpush.bf16.msra.mxu0 %v584
        %602 = vmatpush.bf16.msra.mxu0 %v583
        %603 = vmatpush.bf16.msra.mxu0 %v582
        %604 = vmatpush.bf16.msra.mxu0 %v581
        %605 = vmatmul.bf16.gmra.mxu0 %v528
        %v606 = vpop.f32.mrf.mxu0
        %v607 = vadd.f32 0.0, %v606
        %v608 = vpop.f32.mrf.mxu0
        %v609 = vadd.f32 0.0, %v608
        %610 = vmatmul.bf16.gmra.mxu0 %v529
        %v611 = vpop.f32.mrf.mxu0
        %v612 = vadd.f32 0.0, %v611
        %v613 = vpop.f32.mrf.mxu0
        %v614 = vadd.f32 0.0, %v613
        %615 = vmatmul.bf16.gmra.mxu0 %v530
        %v616 = vpop.f32.mrf.mxu0
        %v617 = vadd.f32 0.0, %v616
        %v618 = vpop.f32.mrf.mxu0
        %v619 = vadd.f32 0.0, %v618
        %620 = vmatmul.bf16.gmra.mxu0 %v531
        %v621 = vpop.f32.mrf.mxu0
        %v622 = vadd.f32 0.0, %v621
        %v623 = vpop.f32.mrf.mxu0
        %v624 = vadd.f32 0.0, %v623
        %625 = vdwg.mxu0
        %v626 = vld [vmem:[#allocation2] sm:$0xff]
        %v627 = vld [vmem:[#allocation2 + $0x8] sm:$0xff]
        %v628 = vld [vmem:[#allocation2 + $0x10] sm:$0xff]
        %v629 = vld [vmem:[#allocation2 + $0x18] sm:$0xff]
        %v630 = vld [vmem:[#allocation2 + $0x20] sm:$0xff]
        %v631 = vld [vmem:[#allocation2 + $0x28] sm:$0xff]
        %v632 = vld [vmem:[#allocation2 + $0x30] sm:$0xff]
        %v633 = vld [vmem:[#allocation2 + $0x38] sm:$0xff]
        %v634 = vadd.f32 %v626, %v607
        %v635 = vadd.f32 %v627, %v609
        %v636 = vadd.f32 %v628, %v612
        %v637 = vadd.f32 %v629, %v614
        %v638 = vadd.f32 %v630, %v617
        %v639 = vadd.f32 %v631, %v619
        %v640 = vadd.f32 %v632, %v622
        %v641 = vadd.f32 %v633, %v624
        %642 = vst [vmem:[#allocation2] sm:$0xff] %v634
        %643 = vst [vmem:[#allocation2 + $0x8] sm:$0xff] %v635
        %644 = vst [vmem:[#allocation2 + $0x10] sm:$0xff] %v636
        %645 = vst [vmem:[#allocation2 + $0x18] sm:$0xff] %v637
        %646 = vst [vmem:[#allocation2 + $0x20] sm:$0xff] %v638
        %647 = vst [vmem:[#allocation2 + $0x28] sm:$0xff] %v639
        %648 = vst [vmem:[#allocation2 + $0x30] sm:$0xff] %v640
        %649 = vst [vmem:[#allocation2 + $0x38] sm:$0xff] %v641
        %s650 = scalar_lea.vmem %s275, 288
        %v651 = vld [vmem:[%s650] sm:$0xff]
        %v652 = vld [vmem:[%s650 + $0x10] sm:$0xff]
        %v653 = vld [vmem:[%s650 + $0x20] sm:$0xff]
        %v654 = vld [vmem:[%s650 + $0x30] sm:$0xff]
        %v655 = vld [vmem:[%s650 + $0x40] sm:$0xff]
        %v656 = vld [vmem:[%s650 + $0x50] sm:$0xff]
        %v657 = vld [vmem:[%s650 + $0x60] sm:$0xff]
        %v658 = vld [vmem:[%s650 + $0x70] sm:$0xff]
        %v659 = vpack.c.bf16 %v652, %v651
        %v660 = vpack.c.bf16 %v654, %v653
        %v661 = vpack.c.bf16 %v656, %v655
        %v662 = vpack.c.bf16 %v658, %v657
        %s663 = scalar_lea.vmem %s1, 192
        %v664 = vld [vmem:[%s663] sm:$0xf]
        %v665 = vld [vmem:[%s663 + $0x4] sm:$0xf]
        %v666 = vld [vmem:[%s663 + $0x8] sm:$0xf]
        %v667 = vld [vmem:[%s663 + $0xc] sm:$0xf]
        %v668 = vld [vmem:[%s663 + $0x10] sm:$0xf]
        %v669 = vld [vmem:[%s663 + $0x14] sm:$0xf]
        %v670 = vld [vmem:[%s663 + $0x18] sm:$0xf]
        %v671 = vld [vmem:[%s663 + $0x1c] sm:$0xf]
        %v672 = vld [vmem:[%s663 + $0x20] sm:$0xf]
        %v673 = vld [vmem:[%s663 + $0x24] sm:$0xf]
        %v674 = vld [vmem:[%s663 + $0x28] sm:$0xf]
        %v675 = vld [vmem:[%s663 + $0x2c] sm:$0xf]
        %v676 = vld [vmem:[%s663 + $0x30] sm:$0xf]
        %v677 = vld [vmem:[%s663 + $0x34] sm:$0xf]
        %v678 = vld [vmem:[%s663 + $0x38] sm:$0xf]
        %v679 = vld [vmem:[%s663 + $0x3c] sm:$0xf]
        %v696 = vunpack.c.l.b16 %v664
        %v697 = vunpack.c.l.b16 %v665
        %v698 = vunpack.c.l.b16 %v666
        %v699 = vunpack.c.l.b16 %v667
        %v700 = vunpack.c.l.b16 %v668
        %v701 = vunpack.c.l.b16 %v669
        %v702 = vunpack.c.l.b16 %v670
        %v703 = vunpack.c.l.b16 %v671
        %v704 = vunpack.c.l.b16 %v672
        %v705 = vunpack.c.l.b16 %v673
        %v706 = vunpack.c.l.b16 %v674
        %v707 = vunpack.c.l.b16 %v675
        %v708 = vunpack.c.l.b16 %v676
        %v709 = vunpack.c.l.b16 %v677
        %v710 = vunpack.c.l.b16 %v678
        %v711 = vunpack.c.l.b16 %v679
        %v712 = vpack.c.b16 %v697, %v696
        %v713 = vpack.c.b16 %v699, %v698
        %v714 = vpack.c.b16 %v701, %v700
        %v715 = vpack.c.b16 %v703, %v702
        %v716 = vpack.c.b16 %v705, %v704
        %v717 = vpack.c.b16 %v707, %v706
        %v718 = vpack.c.b16 %v709, %v708
        %v719 = vpack.c.b16 %v711, %v710
        %728 = vmatpush.bf16.msra.mxu0 %v719
        %729 = vmatpush.bf16.msra.mxu0 %v718
        %730 = vmatpush.bf16.msra.mxu0 %v717
        %731 = vmatpush.bf16.msra.mxu0 %v716
        %732 = vmatpush.bf16.msra.mxu0 %v715
        %733 = vmatpush.bf16.msra.mxu0 %v714
        %734 = vmatpush.bf16.msra.mxu0 %v713
        %735 = vmatpush.bf16.msra.mxu0 %v712
        %736 = vmatmul.bf16.gmra.mxu0 %v659
        %v737 = vpop.f32.mrf.mxu0
        %v738 = vadd.f32 0.0, %v737
        %v739 = vpop.f32.mrf.mxu0
        %v740 = vadd.f32 0.0, %v739
        %741 = vmatmul.bf16.gmra.mxu0 %v660
        %v742 = vpop.f32.mrf.mxu0
        %v743 = vadd.f32 0.0, %v742
        %v744 = vpop.f32.mrf.mxu0
        %v745 = vadd.f32 0.0, %v744
        %746 = vmatmul.bf16.gmra.mxu0 %v661
        %v747 = vpop.f32.mrf.mxu0
        %v748 = vadd.f32 0.0, %v747
        %v749 = vpop.f32.mrf.mxu0
        %v750 = vadd.f32 0.0, %v749
        %751 = vmatmul.bf16.gmra.mxu0 %v662
        %v752 = vpop.f32.mrf.mxu0
        %v753 = vadd.f32 0.0, %v752
        %v754 = vpop.f32.mrf.mxu0
        %v755 = vadd.f32 0.0, %v754
        %756 = vdwg.mxu0
        %v757 = vld [vmem:[#allocation2] sm:$0xff]
        %v758 = vld [vmem:[#allocation2 + $0x8] sm:$0xff]
        %v759 = vld [vmem:[#allocation2 + $0x10] sm:$0xff]
        %v760 = vld [vmem:[#allocation2 + $0x18] sm:$0xff]
        %v761 = vld [vmem:[#allocation2 + $0x20] sm:$0xff]
        %v762 = vld [vmem:[#allocation2 + $0x28] sm:$0xff]
        %v763 = vld [vmem:[#allocation2 + $0x30] sm:$0xff]
        %v764 = vld [vmem:[#allocation2 + $0x38] sm:$0xff]
        %v765 = vadd.f32 %v757, %v738
        %v766 = vadd.f32 %v758, %v740
        %v767 = vadd.f32 %v759, %v743
        %v768 = vadd.f32 %v760, %v745
        %v769 = vadd.f32 %v761, %v748
        %v770 = vadd.f32 %v762, %v750
        %v771 = vadd.f32 %v763, %v753
        %v772 = vadd.f32 %v764, %v755
        %773 = vst [vmem:[#allocation2] sm:$0xff] %v765
        %774 = vst [vmem:[#allocation2 + $0x8] sm:$0xff] %v766
        %775 = vst [vmem:[#allocation2 + $0x10] sm:$0xff] %v767
        %776 = vst [vmem:[#allocation2 + $0x18] sm:$0xff] %v768
        %777 = vst [vmem:[#allocation2 + $0x20] sm:$0xff] %v769
        %778 = vst [vmem:[#allocation2 + $0x28] sm:$0xff] %v770
        %779 = vst [vmem:[#allocation2 + $0x30] sm:$0xff] %v771
        %780 = vst [vmem:[#allocation2 + $0x38] sm:$0xff] %v772
        %s781 = scalar_lea.vmem %s275, 432
        %v782 = vld [vmem:[%s781] sm:$0xff]
        %v783 = vld [vmem:[%s781 + $0x10] sm:$0xff]
        %v784 = vld [vmem:[%s781 + $0x20] sm:$0xff]
        %v785 = vld [vmem:[%s781 + $0x30] sm:$0xff]
        %v786 = vld [vmem:[%s781 + $0x40] sm:$0xff]
        %v787 = vld [vmem:[%s781 + $0x50] sm:$0xff]
        %v788 = vld [vmem:[%s781 + $0x60] sm:$0xff]
        %v789 = vld [vmem:[%s781 + $0x70] sm:$0xff]
        %v790 = vpack.c.bf16 %v783, %v782
        %v791 = vpack.c.bf16 %v785, %v784
        %v792 = vpack.c.bf16 %v787, %v786
        %v793 = vpack.c.bf16 %v789, %v788
        %s794 = scalar_lea.vmem %s1, 256
        %v795 = vld [vmem:[%s794] sm:$0xf]
        %v796 = vld [vmem:[%s794 + $0x4] sm:$0xf]
        %v797 = vld [vmem:[%s794 + $0x8] sm:$0xf]
        %v798 = vld [vmem:[%s794 + $0xc] sm:$0xf]
        %v799 = vld [vmem:[%s794 + $0x10] sm:$0xf]
        %v800 = vld [vmem:[%s794 + $0x14] sm:$0xf]
        %v801 = vld [vmem:[%s794 + $0x18] sm:$0xf]
        %v802 = vld [vmem:[%s794 + $0x1c] sm:$0xf]
        %v803 = vld [vmem:[%s794 + $0x20] sm:$0xf]
        %v804 = vld [vmem:[%s794 + $0x24] sm:$0xf]
        %v805 = vld [vmem:[%s794 + $0x28] sm:$0xf]
        %v806 = vld [vmem:[%s794 + $0x2c] sm:$0xf]
        %v807 = vld [vmem:[%s794 + $0x30] sm:$0xf]
        %v808 = vld [vmem:[%s794 + $0x34] sm:$0xf]
        %v809 = vld [vmem:[%s794 + $0x38] sm:$0xf]
        %v810 = vld [vmem:[%s794 + $0x3c] sm:$0xf]
        %v827 = vunpack.c.l.b16 %v795
        %v828 = vunpack.c.l.b16 %v796
        %v829 = vunpack.c.l.b16 %v797
        %v830 = vunpack.c.l.b16 %v798
        %v831 = vunpack.c.l.b16 %v799
        %v832 = vunpack.c.l.b16 %v800
        %v833 = vunpack.c.l.b16 %v801
        %v834 = vunpack.c.l.b16 %v802
        %v835 = vunpack.c.l.b16 %v803
        %v836 = vunpack.c.l.b16 %v804
        %v837 = vunpack.c.l.b16 %v805
        %v838 = vunpack.c.l.b16 %v806
        %v839 = vunpack.c.l.b16 %v807
        %v840 = vunpack.c.l.b16 %v808
        %v841 = vunpack.c.l.b16 %v809
        %v842 = vunpack.c.l.b16 %v810
        %v843 = vpack.c.b16 %v828, %v827
        %v844 = vpack.c.b16 %v830, %v829
        %v845 = vpack.c.b16 %v832, %v831
        %v846 = vpack.c.b16 %v834, %v833
        %v847 = vpack.c.b16 %v836, %v835
        %v848 = vpack.c.b16 %v838, %v837
        %v849 = vpack.c.b16 %v840, %v839
        %v850 = vpack.c.b16 %v842, %v841
        %859 = vmatpush.bf16.msra.mxu0 %v850
        %860 = vmatpush.bf16.msra.mxu0 %v849
        %861 = vmatpush.bf16.msra.mxu0 %v848
        %862 = vmatpush.bf16.msra.mxu0 %v847
        %863 = vmatpush.bf16.msra.mxu0 %v846
        %864 = vmatpush.bf16.msra.mxu0 %v845
        %865 = vmatpush.bf16.msra.mxu0 %v844
        %866 = vmatpush.bf16.msra.mxu0 %v843
        %867 = vmatmul.bf16.gmra.mxu0 %v790
        %v868 = vpop.f32.mrf.mxu0
        %v869 = vadd.f32 0.0, %v868
        %v870 = vpop.f32.mrf.mxu0
        %v871 = vadd.f32 0.0, %v870
        %872 = vmatmul.bf16.gmra.mxu0 %v791
        %v873 = vpop.f32.mrf.mxu0
        %v874 = vadd.f32 0.0, %v873
        %v875 = vpop.f32.mrf.mxu0
        %v876 = vadd.f32 0.0, %v875
        %877 = vmatmul.bf16.gmra.mxu0 %v792
        %v878 = vpop.f32.mrf.mxu0
        %v879 = vadd.f32 0.0, %v878
        %v880 = vpop.f32.mrf.mxu0
        %v881 = vadd.f32 0.0, %v880
        %882 = vmatmul.bf16.gmra.mxu0 %v793
        %v883 = vpop.f32.mrf.mxu0
        %v884 = vadd.f32 0.0, %v883
        %v885 = vpop.f32.mrf.mxu0
        %v886 = vadd.f32 0.0, %v885
        %887 = vdwg.mxu0
        %v888 = vld [vmem:[#allocation2] sm:$0xff]
        %v889 = vld [vmem:[#allocation2 + $0x8] sm:$0xff]
        %v890 = vld [vmem:[#allocation2 + $0x10] sm:$0xff]
        %v891 = vld [vmem:[#allocation2 + $0x18] sm:$0xff]
        %v892 = vld [vmem:[#allocation2 + $0x20] sm:$0xff]
        %v893 = vld [vmem:[#allocation2 + $0x28] sm:$0xff]
        %v894 = vld [vmem:[#allocation2 + $0x30] sm:$0xff]
        %v895 = vld [vmem:[#allocation2 + $0x38] sm:$0xff]
        %v896 = vadd.f32 %v888, %v869
        %v897 = vadd.f32 %v889, %v871
        %v898 = vadd.f32 %v890, %v874
        %v899 = vadd.f32 %v891, %v876
        %v900 = vadd.f32 %v892, %v879
        %v901 = vadd.f32 %v893, %v881
        %v902 = vadd.f32 %v894, %v884
        %v903 = vadd.f32 %v895, %v886
        %904 = vst [vmem:[#allocation2] sm:$0xff] %v896
        %905 = vst [vmem:[#allocation2 + $0x8] sm:$0xff] %v897
        %906 = vst [vmem:[#allocation2 + $0x10] sm:$0xff] %v898
        %907 = vst [vmem:[#allocation2 + $0x18] sm:$0xff] %v899
        %908 = vst [vmem:[#allocation2 + $0x20] sm:$0xff] %v900
        %909 = vst [vmem:[#allocation2 + $0x28] sm:$0xff] %v901
        %910 = vst [vmem:[#allocation2 + $0x30] sm:$0xff] %v902
        %911 = vst [vmem:[#allocation2 + $0x38] sm:$0xff] %v903
        %v912 = vld [vmem:[%s650 + $0x1] sm:$0xff]
        %v913 = vld [vmem:[%s650 + $0x11] sm:$0xff]
        %v914 = vld [vmem:[%s650 + $0x21] sm:$0xff]
        %v915 = vld [vmem:[%s650 + $0x31] sm:$0xff]
        %v916 = vld [vmem:[%s650 + $0x41] sm:$0xff]
        %v917 = vld [vmem:[%s650 + $0x51] sm:$0xff]
        %v918 = vld [vmem:[%s650 + $0x61] sm:$0xff]
        %v919 = vld [vmem:[%s650 + $0x71] sm:$0xff]
        %v920 = vpack.c.bf16 %v913, %v912
        %v921 = vpack.c.bf16 %v915, %v914
        %v922 = vpack.c.bf16 %v917, %v916
        %v923 = vpack.c.bf16 %v919, %v918
        %s924 = scalar_lea.vmem %s1, 320
        %v925 = vld [vmem:[%s924] sm:$0xf]
        %v926 = vld [vmem:[%s924 + $0x4] sm:$0xf]
        %v927 = vld [vmem:[%s924 + $0x8] sm:$0xf]
        %v928 = vld [vmem:[%s924 + $0xc] sm:$0xf]
        %v929 = vld [vmem:[%s924 + $0x10] sm:$0xf]
        %v930 = vld [vmem:[%s924 + $0x14] sm:$0xf]
        %v931 = vld [vmem:[%s924 + $0x18] sm:$0xf]
        %v932 = vld [vmem:[%s924 + $0x1c] sm:$0xf]
        %v933 = vld [vmem:[%s924 + $0x20] sm:$0xf]
        %v934 = vld [vmem:[%s924 + $0x24] sm:$0xf]
        %v935 = vld [vmem:[%s924 + $0x28] sm:$0xf]
        %v936 = vld [vmem:[%s924 + $0x2c] sm:$0xf]
        %v937 = vld [vmem:[%s924 + $0x30] sm:$0xf]
        %v938 = vld [vmem:[%s924 + $0x34] sm:$0xf]
        %v939 = vld [vmem:[%s924 + $0x38] sm:$0xf]
        %v940 = vld [vmem:[%s924 + $0x3c] sm:$0xf]
        %v957 = vunpack.c.l.b16 %v925
        %v958 = vunpack.c.l.b16 %v926
        %v959 = vunpack.c.l.b16 %v927
        %v960 = vunpack.c.l.b16 %v928
        %v961 = vunpack.c.l.b16 %v929
        %v962 = vunpack.c.l.b16 %v930
        %v963 = vunpack.c.l.b16 %v931
        %v964 = vunpack.c.l.b16 %v932
        %v965 = vunpack.c.l.b16 %v933
        %v966 = vunpack.c.l.b16 %v934
        %v967 = vunpack.c.l.b16 %v935
        %v968 = vunpack.c.l.b16 %v936
        %v969 = vunpack.c.l.b16 %v937
        %v970 = vunpack.c.l.b16 %v938
        %v971 = vunpack.c.l.b16 %v939
        %v972 = vunpack.c.l.b16 %v940
        %v973 = vpack.c.b16 %v958, %v957
        %v974 = vpack.c.b16 %v960, %v959
        %v975 = vpack.c.b16 %v962, %v961
        %v976 = vpack.c.b16 %v964, %v963
        %v977 = vpack.c.b16 %v966, %v965
        %v978 = vpack.c.b16 %v968, %v967
        %v979 = vpack.c.b16 %v970, %v969
        %v980 = vpack.c.b16 %v972, %v971
        %989 = vmatpush.bf16.msra.mxu0 %v980
        %990 = vmatpush.bf16.msra.mxu0 %v979
        %991 = vmatpush.bf16.msra.mxu0 %v978
        %992 = vmatpush.bf16.msra.mxu0 %v977
        %993 = vmatpush.bf16.msra.mxu0 %v976
        %994 = vmatpush.bf16.msra.mxu0 %v975
        %995 = vmatpush.bf16.msra.mxu0 %v974
        %996 = vmatpush.bf16.msra.mxu0 %v973
        %997 = vmatmul.bf16.gmra.mxu0 %v920
        %v998 = vpop.f32.mrf.mxu0
        %v999 = vadd.f32 0.0, %v998
        %v1000 = vpop.f32.mrf.mxu0
        %v1001 = vadd.f32 0.0, %v1000
        %1002 = vmatmul.bf16.gmra.mxu0 %v921
        %v1003 = vpop.f32.mrf.mxu0
        %v1004 = vadd.f32 0.0, %v1003
        %v1005 = vpop.f32.mrf.mxu0
        %v1006 = vadd.f32 0.0, %v1005
        %1007 = vmatmul.bf16.gmra.mxu0 %v922
        %v1008 = vpop.f32.mrf.mxu0
        %v1009 = vadd.f32 0.0, %v1008
        %v1010 = vpop.f32.mrf.mxu0
        %v1011 = vadd.f32 0.0, %v1010
        %1012 = vmatmul.bf16.gmra.mxu0 %v923
        %v1013 = vpop.f32.mrf.mxu0
        %v1014 = vadd.f32 0.0, %v1013
        %v1015 = vpop.f32.mrf.mxu0
        %v1016 = vadd.f32 0.0, %v1015
        %1017 = vdwg.mxu0
        %v1018 = vld [vmem:[#allocation2] sm:$0xff]
        %v1019 = vld [vmem:[#allocation2 + $0x8] sm:$0xff]
        %v1020 = vld [vmem:[#allocation2 + $0x10] sm:$0xff]
        %v1021 = vld [vmem:[#allocation2 + $0x18] sm:$0xff]
        %v1022 = vld [vmem:[#allocation2 + $0x20] sm:$0xff]
        %v1023 = vld [vmem:[#allocation2 + $0x28] sm:$0xff]
        %v1024 = vld [vmem:[#allocation2 + $0x30] sm:$0xff]
        %v1025 = vld [vmem:[#allocation2 + $0x38] sm:$0xff]
        %v1026 = vadd.f32 %v1018, %v999
        %v1027 = vadd.f32 %v1019, %v1001
        %v1028 = vadd.f32 %v1020, %v1004
        %v1029 = vadd.f32 %v1021, %v1006
        %v1030 = vadd.f32 %v1022, %v1009
        %v1031 = vadd.f32 %v1023, %v1011
        %v1032 = vadd.f32 %v1024, %v1014
        %v1033 = vadd.f32 %v1025, %v1016
        %1034 = vst [vmem:[#allocation2] sm:$0xff] %v1026
        %1035 = vst [vmem:[#allocation2 + $0x8] sm:$0xff] %v1027
        %1036 = vst [vmem:[#allocation2 + $0x10] sm:$0xff] %v1028
        %1037 = vst [vmem:[#allocation2 + $0x18] sm:$0xff] %v1029
        %1038 = vst [vmem:[#allocation2 + $0x20] sm:$0xff] %v1030
        %1039 = vst [vmem:[#allocation2 + $0x28] sm:$0xff] %v1031
        %1040 = vst [vmem:[#allocation2 + $0x30] sm:$0xff] %v1032
        %1041 = vst [vmem:[#allocation2 + $0x38] sm:$0xff] %v1033
        %s1042 = scalar_lea.vmem %s275, 16
        %v1043 = vld [vmem:[%s1042] sm:$0xff]
        %v1044 = vld [vmem:[%s1042 + $0x10] sm:$0xff]
        %v1045 = vld [vmem:[%s1042 + $0x20] sm:$0xff]
        %v1046 = vld [vmem:[%s1042 + $0x30] sm:$0xff]
        %v1047 = vld [vmem:[%s1042 + $0x40] sm:$0xff]
        %v1048 = vld [vmem:[%s1042 + $0x50] sm:$0xff]
        %v1049 = vld [vmem:[%s1042 + $0x60] sm:$0xff]
        %v1050 = vld [vmem:[%s1042 + $0x70] sm:$0xff]
        %v1051 = vpack.c.bf16 %v1044, %v1043
        %v1052 = vpack.c.bf16 %v1046, %v1045
        %v1053 = vpack.c.bf16 %v1048, %v1047
        %v1054 = vpack.c.bf16 %v1050, %v1049
        %s1055 = scalar_lea.vmem %s1, 384
        %v1056 = vld [vmem:[%s1055] sm:$0xf]
        %v1057 = vld [vmem:[%s1055 + $0x4] sm:$0xf]
        %v1058 = vld [vmem:[%s1055 + $0x8] sm:$0xf]
        %v1059 = vld [vmem:[%s1055 + $0xc] sm:$0xf]
        %v1060 = vld [vmem:[%s1055 + $0x10] sm:$0xf]
        %v1061 = vld [vmem:[%s1055 + $0x14] sm:$0xf]
        %v1062 = vld [vmem:[%s1055 + $0x18] sm:$0xf]
        %v1063 = vld [vmem:[%s1055 + $0x1c] sm:$0xf]
        %v1064 = vld [vmem:[%s1055 + $0x20] sm:$0xf]
        %v1065 = vld [vmem:[%s1055 + $0x24] sm:$0xf]
        %v1066 = vld [vmem:[%s1055 + $0x28] sm:$0xf]
        %v1067 = vld [vmem:[%s1055 + $0x2c] sm:$0xf]
        %v1068 = vld [vmem:[%s1055 + $0x30] sm:$0xf]
        %v1069 = vld [vmem:[%s1055 + $0x34] sm:$0xf]
        %v1070 = vld [vmem:[%s1055 + $0x38] sm:$0xf]
        %v1071 = vld [vmem:[%s1055 + $0x3c] sm:$0xf]
        %v1088 = vunpack.c.l.b16 %v1056
        %v1089 = vunpack.c.l.b16 %v1057
        %v1090 = vunpack.c.l.b16 %v1058
        %v1091 = vunpack.c.l.b16 %v1059
        %v1092 = vunpack.c.l.b16 %v1060
        %v1093 = vunpack.c.l.b16 %v1061
        %v1094 = vunpack.c.l.b16 %v1062
        %v1095 = vunpack.c.l.b16 %v1063
        %v1096 = vunpack.c.l.b16 %v1064
        %v1097 = vunpack.c.l.b16 %v1065
        %v1098 = vunpack.c.l.b16 %v1066
        %v1099 = vunpack.c.l.b16 %v1067
        %v1100 = vunpack.c.l.b16 %v1068
        %v1101 = vunpack.c.l.b16 %v1069
        %v1102 = vunpack.c.l.b16 %v1070
        %v1103 = vunpack.c.l.b16 %v1071
        %v1104 = vpack.c.b16 %v1089, %v1088
        %v1105 = vpack.c.b16 %v1091, %v1090
        %v1106 = vpack.c.b16 %v1093, %v1092
        %v1107 = vpack.c.b16 %v1095, %v1094
        %v1108 = vpack.c.b16 %v1097, %v1096
        %v1109 = vpack.c.b16 %v1099, %v1098
        %v1110 = vpack.c.b16 %v1101, %v1100
        %v1111 = vpack.c.b16 %v1103, %v1102
        %1120 = vmatpush.bf16.msra.mxu0 %v1111
        %1121 = vmatpush.bf16.msra.mxu0 %v1110
        %1122 = vmatpush.bf16.msra.mxu0 %v1109
        %1123 = vmatpush.bf16.msra.mxu0 %v1108
        %1124 = vmatpush.bf16.msra.mxu0 %v1107
        %1125 = vmatpush.bf16.msra.mxu0 %v1106
        %1126 = vmatpush.bf16.msra.mxu0 %v1105
        %1127 = vmatpush.bf16.msra.mxu0 %v1104
        %1128 = vmatmul.bf16.gmra.mxu0 %v1051
        %v1129 = vpop.f32.mrf.mxu0
        %v1130 = vadd.f32 0.0, %v1129
        %v1131 = vpop.f32.mrf.mxu0
        %v1132 = vadd.f32 0.0, %v1131
        %1133 = vmatmul.bf16.gmra.mxu0 %v1052
        %v1134 = vpop.f32.mrf.mxu0
        %v1135 = vadd.f32 0.0, %v1134
        %v1136 = vpop.f32.mrf.mxu0
        %v1137 = vadd.f32 0.0, %v1136
        %1138 = vmatmul.bf16.gmra.mxu0 %v1053
        %v1139 = vpop.f32.mrf.mxu0
        %v1140 = vadd.f32 0.0, %v1139
        %v1141 = vpop.f32.mrf.mxu0
        %v1142 = vadd.f32 0.0, %v1141
        %1143 = vmatmul.bf16.gmra.mxu0 %v1054
        %v1144 = vpop.f32.mrf.mxu0
        %v1145 = vadd.f32 0.0, %v1144
        %v1146 = vpop.f32.mrf.mxu0
        %v1147 = vadd.f32 0.0, %v1146
        %1148 = vdwg.mxu0
        %v1149 = vld [vmem:[#allocation2] sm:$0xff]
        %v1150 = vld [vmem:[#allocation2 + $0x8] sm:$0xff]
        %v1151 = vld [vmem:[#allocation2 + $0x10] sm:$0xff]
        %v1152 = vld [vmem:[#allocation2 + $0x18] sm:$0xff]
        %v1153 = vld [vmem:[#allocation2 + $0x20] sm:$0xff]
        %v1154 = vld [vmem:[#allocation2 + $0x28] sm:$0xff]
        %v1155 = vld [vmem:[#allocation2 + $0x30] sm:$0xff]
        %v1156 = vld [vmem:[#allocation2 + $0x38] sm:$0xff]
        %v1157 = vadd.f32 %v1149, %v1130
        %v1158 = vadd.f32 %v1150, %v1132
        %v1159 = vadd.f32 %v1151, %v1135
        %v1160 = vadd.f32 %v1152, %v1137
        %v1161 = vadd.f32 %v1153, %v1140
        %v1162 = vadd.f32 %v1154, %v1142
        %v1163 = vadd.f32 %v1155, %v1145
        %v1164 = vadd.f32 %v1156, %v1147
        %1165 = vst [vmem:[#allocation2] sm:$0xff] %v1157
        %1166 = vst [vmem:[#allocation2 + $0x8] sm:$0xff] %v1158
        %1167 = vst [vmem:[#allocation2 + $0x10] sm:$0xff] %v1159
        %1168 = vst [vmem:[#allocation2 + $0x18] sm:$0xff] %v1160
        %1169 = vst [vmem:[#allocation2 + $0x20] sm:$0xff] %v1161
        %1170 = vst [vmem:[#allocation2 + $0x28] sm:$0xff] %v1162
        %1171 = vst [vmem:[#allocation2 + $0x30] sm:$0xff] %v1163
        %1172 = vst [vmem:[#allocation2 + $0x38] sm:$0xff] %v1164
        %s1173 = scalar_lea.vmem %s275, 160
        %v1174 = vld [vmem:[%s1173] sm:$0xff]
        %v1175 = vld [vmem:[%s1173 + $0x10] sm:$0xff]
        %v1176 = vld [vmem:[%s1173 + $0x20] sm:$0xff]
        %v1177 = vld [vmem:[%s1173 + $0x30] sm:$0xff]
        %v1178 = vld [vmem:[%s1173 + $0x40] sm:$0xff]
        %v1179 = vld [vmem:[%s1173 + $0x50] sm:$0xff]
        %v1180 = vld [vmem:[%s1173 + $0x60] sm:$0xff]
        %v1181 = vld [vmem:[%s1173 + $0x70] sm:$0xff]
        %v1182 = vpack.c.bf16 %v1175, %v1174
        %v1183 = vpack.c.bf16 %v1177, %v1176
        %v1184 = vpack.c.bf16 %v1179, %v1178
        %v1185 = vpack.c.bf16 %v1181, %v1180
        %s1186 = scalar_lea.vmem %s1, 448
        %v1187 = vld [vmem:[%s1186] sm:$0xf]
        %v1188 = vld [vmem:[%s1186 + $0x4] sm:$0xf]
        %v1189 = vld [vmem:[%s1186 + $0x8] sm:$0xf]
        %v1190 = vld [vmem:[%s1186 + $0xc] sm:$0xf]
        %v1191 = vld [vmem:[%s1186 + $0x10] sm:$0xf]
        %v1192 = vld [vmem:[%s1186 + $0x14] sm:$0xf]
        %v1193 = vld [vmem:[%s1186 + $0x18] sm:$0xf]
        %v1194 = vld [vmem:[%s1186 + $0x1c] sm:$0xf]
        %v1195 = vld [vmem:[%s1186 + $0x20] sm:$0xf]
        %v1196 = vld [vmem:[%s1186 + $0x24] sm:$0xf]
        %v1197 = vld [vmem:[%s1186 + $0x28] sm:$0xf]
        %v1198 = vld [vmem:[%s1186 + $0x2c] sm:$0xf]
        %v1199 = vld [vmem:[%s1186 + $0x30] sm:$0xf]
        %v1200 = vld [vmem:[%s1186 + $0x34] sm:$0xf]
        %v1201 = vld [vmem:[%s1186 + $0x38] sm:$0xf]
        %v1202 = vld [vmem:[%s1186 + $0x3c] sm:$0xf]
        %v1219 = vunpack.c.l.b16 %v1187
        %v1220 = vunpack.c.l.b16 %v1188
        %v1221 = vunpack.c.l.b16 %v1189
        %v1222 = vunpack.c.l.b16 %v1190
        %v1223 = vunpack.c.l.b16 %v1191
        %v1224 = vunpack.c.l.b16 %v1192
        %v1225 = vunpack.c.l.b16 %v1193
        %v1226 = vunpack.c.l.b16 %v1194
        %v1227 = vunpack.c.l.b16 %v1195
        %v1228 = vunpack.c.l.b16 %v1196
        %v1229 = vunpack.c.l.b16 %v1197
        %v1230 = vunpack.c.l.b16 %v1198
        %v1231 = vunpack.c.l.b16 %v1199
        %v1232 = vunpack.c.l.b16 %v1200
        %v1233 = vunpack.c.l.b16 %v1201
        %v1234 = vunpack.c.l.b16 %v1202
        %v1235 = vpack.c.b16 %v1220, %v1219
        %v1236 = vpack.c.b16 %v1222, %v1221
        %v1237 = vpack.c.b16 %v1224, %v1223
        %v1238 = vpack.c.b16 %v1226, %v1225
        %v1239 = vpack.c.b16 %v1228, %v1227
        %v1240 = vpack.c.b16 %v1230, %v1229
        %v1241 = vpack.c.b16 %v1232, %v1231
        %v1242 = vpack.c.b16 %v1234, %v1233
        %1251 = vmatpush.bf16.msra.mxu0 %v1242
        %1252 = vmatpush.bf16.msra.mxu0 %v1241
        %1253 = vmatpush.bf16.msra.mxu0 %v1240
        %1254 = vmatpush.bf16.msra.mxu0 %v1239
        %1255 = vmatpush.bf16.msra.mxu0 %v1238
        %1256 = vmatpush.bf16.msra.mxu0 %v1237
        %1257 = vmatpush.bf16.msra.mxu0 %v1236
        %1258 = vmatpush.bf16.msra.mxu0 %v1235
        %1259 = vmatmul.bf16.gmra.mxu0 %v1182
        %v1260 = vpop.f32.mrf.mxu0
        %v1261 = vadd.f32 0.0, %v1260
        %v1262 = vpop.f32.mrf.mxu0
        %v1263 = vadd.f32 0.0, %v1262
        %1264 = vmatmul.bf16.gmra.mxu0 %v1183
        %v1265 = vpop.f32.mrf.mxu0
        %v1266 = vadd.f32 0.0, %v1265
        %v1267 = vpop.f32.mrf.mxu0
        %v1268 = vadd.f32 0.0, %v1267
        %1269 = vmatmul.bf16.gmra.mxu0 %v1184
        %v1270 = vpop.f32.mrf.mxu0
        %v1271 = vadd.f32 0.0, %v1270
        %v1272 = vpop.f32.mrf.mxu0
        %v1273 = vadd.f32 0.0, %v1272
        %1274 = vmatmul.bf16.gmra.mxu0 %v1185
        %v1275 = vpop.f32.mrf.mxu0
        %v1276 = vadd.f32 0.0, %v1275
        %v1277 = vpop.f32.mrf.mxu0
        %v1278 = vadd.f32 0.0, %v1277
        %1279 = vdwg.mxu0
        %v1280 = vld [vmem:[#allocation2] sm:$0xff]
        %v1281 = vld [vmem:[#allocation2 + $0x8] sm:$0xff]
        %v1282 = vld [vmem:[#allocation2 + $0x10] sm:$0xff]
        %v1283 = vld [vmem:[#allocation2 + $0x18] sm:$0xff]
        %v1284 = vld [vmem:[#allocation2 + $0x20] sm:$0xff]
        %v1285 = vld [vmem:[#allocation2 + $0x28] sm:$0xff]
        %v1286 = vld [vmem:[#allocation2 + $0x30] sm:$0xff]
        %v1287 = vld [vmem:[#allocation2 + $0x38] sm:$0xff]
        %v1288 = vadd.f32 %v1280, %v1261
        %v1289 = vadd.f32 %v1281, %v1263
        %v1290 = vadd.f32 %v1282, %v1266
        %v1291 = vadd.f32 %v1283, %v1268
        %v1292 = vadd.f32 %v1284, %v1271
        %v1293 = vadd.f32 %v1285, %v1273
        %v1294 = vadd.f32 %v1286, %v1276
        %v1295 = vadd.f32 %v1287, %v1278
        %1296 = vst [vmem:[#allocation2] sm:$0xff] %v1288
        %1297 = vst [vmem:[#allocation2 + $0x8] sm:$0xff] %v1289
        %1298 = vst [vmem:[#allocation2 + $0x10] sm:$0xff] %v1290
        %1299 = vst [vmem:[#allocation2 + $0x18] sm:$0xff] %v1291
        %1300 = vst [vmem:[#allocation2 + $0x20] sm:$0xff] %v1292
        %1301 = vst [vmem:[#allocation2 + $0x28] sm:$0xff] %v1293
        %1302 = vst [vmem:[#allocation2 + $0x30] sm:$0xff] %v1294
        %1303 = vst [vmem:[#allocation2 + $0x38] sm:$0xff] %v1295
        %v1304 = vld [vmem:[%s1042 + $0x1] sm:$0xff]
        %v1305 = vld [vmem:[%s1042 + $0x11] sm:$0xff]
        %v1306 = vld [vmem:[%s1042 + $0x21] sm:$0xff]
        %v1307 = vld [vmem:[%s1042 + $0x31] sm:$0xff]
        %v1308 = vld [vmem:[%s1042 + $0x41] sm:$0xff]
        %v1309 = vld [vmem:[%s1042 + $0x51] sm:$0xff]
        %v1310 = vld [vmem:[%s1042 + $0x61] sm:$0xff]
        %v1311 = vld [vmem:[%s1042 + $0x71] sm:$0xff]
        %v1312 = vpack.c.bf16 %v1305, %v1304
        %v1313 = vpack.c.bf16 %v1307, %v1306
        %v1314 = vpack.c.bf16 %v1309, %v1308
        %v1315 = vpack.c.bf16 %v1311, %v1310
        %s1316 = scalar_lea.vmem %s1, 512
        %v1317 = vld [vmem:[%s1316] sm:$0xf]
        %v1318 = vld [vmem:[%s1316 + $0x4] sm:$0xf]
        %v1319 = vld [vmem:[%s1316 + $0x8] sm:$0xf]
        %v1320 = vld [vmem:[%s1316 + $0xc] sm:$0xf]
        %v1321 = vld [vmem:[%s1316 + $0x10] sm:$0xf]
        %v1322 = vld [vmem:[%s1316 + $0x14] sm:$0xf]
        %v1323 = vld [vmem:[%s1316 + $0x18] sm:$0xf]
        %v1324 = vld [vmem:[%s1316 + $0x1c] sm:$0xf]
        %v1325 = vld [vmem:[%s1316 + $0x20] sm:$0xf]
        %v1326 = vld [vmem:[%s1316 + $0x24] sm:$0xf]
        %v1327 = vld [vmem:[%s1316 + $0x28] sm:$0xf]
        %v1328 = vld [vmem:[%s1316 + $0x2c] sm:$0xf]
        %v1329 = vld [vmem:[%s1316 + $0x30] sm:$0xf]
        %v1330 = vld [vmem:[%s1316 + $0x34] sm:$0xf]
        %v1331 = vld [vmem:[%s1316 + $0x38] sm:$0xf]
        %v1332 = vld [vmem:[%s1316 + $0x3c] sm:$0xf]
        %v1349 = vunpack.c.l.b16 %v1317
        %v1350 = vunpack.c.l.b16 %v1318
        %v1351 = vunpack.c.l.b16 %v1319
        %v1352 = vunpack.c.l.b16 %v1320
        %v1353 = vunpack.c.l.b16 %v1321
        %v1354 = vunpack.c.l.b16 %v1322
        %v1355 = vunpack.c.l.b16 %v1323
        %v1356 = vunpack.c.l.b16 %v1324
        %v1357 = vunpack.c.l.b16 %v1325
        %v1358 = vunpack.c.l.b16 %v1326
        %v1359 = vunpack.c.l.b16 %v1327
        %v1360 = vunpack.c.l.b16 %v1328
        %v1361 = vunpack.c.l.b16 %v1329
        %v1362 = vunpack.c.l.b16 %v1330
        %v1363 = vunpack.c.l.b16 %v1331
        %v1364 = vunpack.c.l.b16 %v1332
        %v1365 = vpack.c.b16 %v1350, %v1349
        %v1366 = vpack.c.b16 %v1352, %v1351
        %v1367 = vpack.c.b16 %v1354, %v1353
        %v1368 = vpack.c.b16 %v1356, %v1355
        %v1369 = vpack.c.b16 %v1358, %v1357
        %v1370 = vpack.c.b16 %v1360, %v1359
        %v1371 = vpack.c.b16 %v1362, %v1361
        %v1372 = vpack.c.b16 %v1364, %v1363
        %1381 = vmatpush.bf16.msra.mxu0 %v1372
        %1382 = vmatpush.bf16.msra.mxu0 %v1371
        %1383 = vmatpush.bf16.msra.mxu0 %v1370
        %1384 = vmatpush.bf16.msra.mxu0 %v1369
        %1385 = vmatpush.bf16.msra.mxu0 %v1368
        %1386 = vmatpush.bf16.msra.mxu0 %v1367
        %1387 = vmatpush.bf16.msra.mxu0 %v1366
        %1388 = vmatpush.bf16.msra.mxu0 %v1365
        %1389 = vmatmul.bf16.gmra.mxu0 %v1312
        %v1390 = vpop.f32.mrf.mxu0
        %v1391 = vadd.f32 0.0, %v1390
        %v1392 = vpop.f32.mrf.mxu0
        %v1393 = vadd.f32 0.0, %v1392
        %1394 = vmatmul.bf16.gmra.mxu0 %v1313
        %v1395 = vpop.f32.mrf.mxu0
        %v1396 = vadd.f32 0.0, %v1395
        %v1397 = vpop.f32.mrf.mxu0
        %v1398 = vadd.f32 0.0, %v1397
        %1399 = vmatmul.bf16.gmra.mxu0 %v1314
        %v1400 = vpop.f32.mrf.mxu0
        %v1401 = vadd.f32 0.0, %v1400
        %v1402 = vpop.f32.mrf.mxu0
        %v1403 = vadd.f32 0.0, %v1402
        %1404 = vmatmul.bf16.gmra.mxu0 %v1315
        %v1405 = vpop.f32.mrf.mxu0
        %v1406 = vadd.f32 0.0, %v1405
        %v1407 = vpop.f32.mrf.mxu0
        %v1408 = vadd.f32 0.0, %v1407
        %1409 = vdwg.mxu0
        %v1410 = vld [vmem:[#allocation2] sm:$0xff]
        %v1411 = vld [vmem:[#allocation2 + $0x8] sm:$0xff]
        %v1412 = vld [vmem:[#allocation2 + $0x10] sm:$0xff]
        %v1413 = vld [vmem:[#allocation2 + $0x18] sm:$0xff]
        %v1414 = vld [vmem:[#allocation2 + $0x20] sm:$0xff]
        %v1415 = vld [vmem:[#allocation2 + $0x28] sm:$0xff]
        %v1416 = vld [vmem:[#allocation2 + $0x30] sm:$0xff]
        %v1417 = vld [vmem:[#allocation2 + $0x38] sm:$0xff]
        %v1418 = vadd.f32 %v1410, %v1391
        %v1419 = vadd.f32 %v1411, %v1393
        %v1420 = vadd.f32 %v1412, %v1396
        %v1421 = vadd.f32 %v1413, %v1398
        %v1422 = vadd.f32 %v1414, %v1401
        %v1423 = vadd.f32 %v1415, %v1403
        %v1424 = vadd.f32 %v1416, %v1406
        %v1425 = vadd.f32 %v1417, %v1408
        %1426 = vst [vmem:[#allocation2] sm:$0xff] %v1418
        %1427 = vst [vmem:[#allocation2 + $0x8] sm:$0xff] %v1419
        %1428 = vst [vmem:[#allocation2 + $0x10] sm:$0xff] %v1420
        %1429 = vst [vmem:[#allocation2 + $0x18] sm:$0xff] %v1421
        %1430 = vst [vmem:[#allocation2 + $0x20] sm:$0xff] %v1422
        %1431 = vst [vmem:[#allocation2 + $0x28] sm:$0xff] %v1423
        %1432 = vst [vmem:[#allocation2 + $0x30] sm:$0xff] %v1424
        %1433 = vst [vmem:[#allocation2 + $0x38] sm:$0xff] %v1425
        %v1434 = vld [vmem:[#allocation2] sm:$0xff]
        %v1435 = vld [vmem:[#allocation2 + $0x8] sm:$0xff]
        %v1436 = vld [vmem:[#allocation2 + $0x10] sm:$0xff]
        %v1437 = vld [vmem:[#allocation2 + $0x18] sm:$0xff]
        %v1438 = vld [vmem:[#allocation2 + $0x20] sm:$0xff]
        %v1439 = vld [vmem:[#allocation2 + $0x28] sm:$0xff]
        %v1440 = vld [vmem:[#allocation2 + $0x30] sm:$0xff]
        %v1441 = vld [vmem:[#allocation2 + $0x38] sm:$0xff]
        %v1442 = vld [vmem:[%s2] sm:$0x1]
        %v1444 = vperm.slane %v1442, 0
        %v1446 = vadd.f32 %v1434, %v1444
        %v1447 = vadd.f32 %v1435, %v1444
        %v1448 = vadd.f32 %v1436, %v1444
        %v1449 = vadd.f32 %v1437, %v1444
        %v1450 = vadd.f32 %v1438, %v1444
        %v1451 = vadd.f32 %v1439, %v1444
        %v1452 = vadd.f32 %v1440, %v1444
        %v1453 = vadd.f32 %v1441, %v1444
        %v1454 = vmax.f32 %v1446, 0.0
        %v1455 = vmax.f32 %v1447, 0.0
        %v1456 = vmax.f32 %v1448, 0.0
        %v1457 = vmax.f32 %v1449, 0.0
        %v1458 = vmax.f32 %v1450, 0.0
        %v1459 = vmax.f32 %v1451, 0.0
        %v1460 = vmax.f32 %v1452, 0.0
        %v1461 = vmax.f32 %v1453, 0.0
        %v1462 = vadd.f32 %v1454, %v1455
        %v1463 = vadd.f32 %v1462, %v1456
        %v1464 = vadd.f32 %v1463, %v1457
        %v1465 = vadd.f32 %v1464, %v1458
        %v1466 = vadd.f32 %v1465, %v1459
        %v1467 = vadd.f32 %v1466, %v1460
        %v1468 = vadd.f32 %v1467, %v1461
        %v1469 = vrot.slane %v1468, 4
        %v1470 = vadd.f32 %v1468, %v1469
        %v1471 = vrot.slane %v1470, 2
        %v1472 = vadd.f32 %v1470, %v1471
        %v1473 = vrot.slane %v1472, 1
        %v1474 = vadd.f32 %v1472, %v1473
        %v1475 = vrcp.pop 64.0
        %v1476 = vmul.f32 64.0, %v1475
        %v1477 = vsub.f32 1.0, %v1476
        %v1478 = vmul.f32 %v1475, %v1477
        %v1479 = vadd.f32 %v1475, %v1478
        %vm1480 = vweird.f32 %v1475
        %v1481 = vsel %vm1480, %v1475, %v1479
        %v1482 = vmul.f32 %v1474, %v1481
        %v1483 = vld [vmem:[%s3] sm:$0xff]
        %v1484 = vld [vmem:[%s3 + $0x8] sm:$0xff]
        %v1485 = vld [vmem:[%s3 + $0x10] sm:$0xff]
        %v1486 = vld [vmem:[%s3 + $0x18] sm:$0xff]
        %v1487 = vld [vmem:[%s3 + $0x20] sm:$0xff]
        %v1488 = vld [vmem:[%s3 + $0x28] sm:$0xff]
        %v1489 = vld [vmem:[%s3 + $0x30] sm:$0xff]
        %v1490 = vld [vmem:[%s3 + $0x38] sm:$0xff]
        %v1491 = vld [vmem:[%s3 + $0x40] sm:$0xff]
        %v1492 = vld [vmem:[%s3 + $0x48] sm:$0xff]
        %v1493 = vld [vmem:[%s3 + $0x50] sm:$0xff]
        %v1494 = vld [vmem:[%s3 + $0x58] sm:$0xff]
        %v1495 = vld [vmem:[%s3 + $0x60] sm:$0xff]
        %v1496 = vld [vmem:[%s3 + $0x68] sm:$0xff]
        %v1497 = vld [vmem:[%s3 + $0x70] sm:$0xff]
        %v1498 = vld [vmem:[%s3 + $0x78] sm:$0xff]
        %v1499 = vld [vmem:[%s4] sm:$0x1]
        %1500 = vmatpush.msra.mxu0 %v1498
        %1501 = vmatpush.msra.mxu0 %v1497
        %1502 = vmatpush.msra.mxu0 %v1496
        %1503 = vmatpush.msra.mxu0 %v1495
        %1504 = vmatpush.msra.mxu0 %v1494
        %1505 = vmatpush.msra.mxu0 %v1493
        %1506 = vmatpush.msra.mxu0 %v1492
        %1507 = vmatpush.msra.mxu0 %v1491
        %1508 = vmatpush.msra.mxu0 %v1490
        %1509 = vmatpush.msra.mxu0 %v1489
        %1510 = vmatpush.msra.mxu0 %v1488
        %1511 = vmatpush.msra.mxu0 %v1487
        %1512 = vmatpush.msra.mxu0 %v1486
        %1513 = vmatpush.msra.mxu0 %v1485
        %1514 = vmatpush.msra.mxu0 %v1484
        %1515 = vmatpush.msra.mxu0 %v1483
        %1516 = vmatmul.f32.gmra.mxu0 %v1482
        %v1517 = vpop.f32.mrf.mxu0
        %v1518 = vadd.f32 %v1499, %v1517
        %1519 = vdwg.mxu0
        %v1520 = vmax.f32 %v1518, 0.0
        %v1521 = vld [vmem:[%s5] sm:$0xff]
        %v1522 = vld [vmem:[%s5 + $0x8] sm:$0xff]
        %v1523 = vld [vmem:[%s5 + $0x10] sm:$0xff]
        %v1524 = vld [vmem:[%s5 + $0x18] sm:$0xff]
        %v1525 = vld [vmem:[%s5 + $0x20] sm:$0xff]
        %v1526 = vld [vmem:[%s5 + $0x28] sm:$0xff]
        %v1527 = vld [vmem:[%s5 + $0x30] sm:$0xff]
        %v1528 = vld [vmem:[%s5 + $0x38] sm:$0xff]
        %v1529 = vld [vmem:[%s5 + $0x40] sm:$0xff]
        %v1530 = vld [vmem:[%s5 + $0x48] sm:$0xff]
        %v1531 = vld [vmem:[%s5 + $0x50] sm:$0xff]
        %v1532 = vld [vmem:[%s5 + $0x58] sm:$0xff]
        %v1533 = vld [vmem:[%s5 + $0x60] sm:$0xff]
        %v1534 = vld [vmem:[%s5 + $0x68] sm:$0xff]
        %v1535 = vld [vmem:[%s5 + $0x70] sm:$0xff]
        %v1536 = vld [vmem:[%s5 + $0x78] sm:$0xff]
        %v1537 = vld [vmem:[%s6] sm:$0x1]
        %1538 = vmatpush.msra.mxu0 %v1536
        %1539 = vmatpush.msra.mxu0 %v1535
        %1540 = vmatpush.msra.mxu0 %v1534
        %1541 = vmatpush.msra.mxu0 %v1533
        %1542 = vmatpush.msra.mxu0 %v1532
        %1543 = vmatpush.msra.mxu0 %v1531
        %1544 = vmatpush.msra.mxu0 %v1530
        %1545 = vmatpush.msra.mxu0 %v1529
        %1546 = vmatpush.msra.mxu0 %v1528
        %1547 = vmatpush.msra.mxu0 %v1527
        %1548 = vmatpush.msra.mxu0 %v1526
        %1549 = vmatpush.msra.mxu0 %v1525
        %1550 = vmatpush.msra.mxu0 %v1524
        %1551 = vmatpush.msra.mxu0 %v1523
        %1552 = vmatpush.msra.mxu0 %v1522
        %1553 = vmatpush.msra.mxu0 %v1521
        %1554 = vmatmul.f32.gmra.mxu0 %v1520
        %v1555 = vpop.f32.mrf.mxu0
        %v1556 = vadd.f32 %v1537, %v1555
        %1557 = vdwg.mxu0
        %v1558 = vmul.f32 %v1556, %v1556
        %vm1559 = vcmask 1040384
        %v1560 = vsel %vm1559, %v1558, 0.0
        %1561 = vadd.xlane.f32.xlu0 %v1560
        %v1562 = vpop.xlane.xlu0 %1561
        %v1563 = vrsqrt.pop %v1562
        %v1564 = vmul.f32 %v1563, %v1562
        %v1565 = vmul.f32 %v1564, %v1563
        %v1566 = vmul.f32 0.5, %v1565
        %v1567 = vsub.f32 1.5, %v1566
        %v1568 = vmul.f32 %v1563, %v1567
        %v1569 = vmul.f32 %v1562, %v1568
        %vm1570 = vcmp.eq.f32.partialorder %v1562, inf
        %v1571 = vsel %vm1570, %v1562, %v1569
        %vm1572 = vcmp.eq.f32.partialorder %v1562, 0.0
        %v1573 = vand.u32 %v1562, 2147483648
        %v1574 = vsel %vm1572, %v1573, %v1571
        %v1575 = vmax.f32 %v1574, 1e-12
        %v1576 = vrcp.pop %v1575
        %v1577 = vmul.f32 %v1575, %v1576
        %v1578 = vsub.f32 1.0, %v1577
        %v1579 = vmul.f32 %v1576, %v1578
        %v1580 = vadd.f32 %v1576, %v1579
        %vm1581 = vweird.f32 %v1575
        %vm1582 = vweird.f32 %v1576
        %vm1583 = vmor %vm1581, %vm1582
        %v1584 = vsel %vm1583, %v1576, %v1580
        %v1585 = vand.u32 2147483647, %v1575
        %vm1586 = vcmp.eq.f32.partialorder %v1585, 8.507059e+37
        %v1587 = vand.u32 %v1575, 2147483648
        %v1588 = vor.u32 1.1754944e-38, %v1587
        %v1589 = vsel %vm1586, %v1588, %v1584
        %v1590 = vmul.f32 %v1556, %v1589
        %1591 = vst [vmem:[%s270] sm:$0x1] %v1590
        %s1592 = sand.u32 %s181, 1
        %s1593 = scalar_lea.sflag [#allocation4], %s1592
        %s1594 = sand.u32 %s181, 1
        %s1595 = scalar_lea.vmem [#allocation3], %s1594
        // Predicated region
        $region49: #{contrastive_encoder_forward.3} parent=47 // pred_check
          %p1596 = pneg %p191
        $region50: #{contrastive_encoder_forward.3} parent=47 // pred_check_branch
          %1598 = sbr.rel (%p1596) target = $region52
        $region51: #{contrastive_encoder_forward.3} parent=47 // pred_region
          %1600 = vsyncadd %s1593, 0
          %s1601 = scalar_lea.hbm %s7, %s21
          %s1603 = sshll.u32 %s1595, 4
          %s1604 = int_to_ptr.vmem [resolvable:$true] %s1603
          %s1605 = sshll.u32 %s1601, 4
          %s1606 = int_to_ptr.hbm [resolvable:$true] %s1605
          %1608 = dma.vmem_to_hbm [thread:$0]  %s1604, 16, %s1606, %s1593
        $region52: #{contrastive_encoder_forward.3} parent=47 // pred_fallthru
          _
      $region48: #{contrastive_encoder_forward.3} parent=5 // pred_fallthru
        _
      %p1609 = scmp.le.s32.totalorder 2, %s16
      // Predicated region
      $region53: #{contrastive_encoder_forward.3} parent=5 // pred_check
        %p1610 = pneg %p1609
      $region54: #{contrastive_encoder_forward.3} parent=5 // pred_check_branch
        %1612 = sbr.rel (%p1610) target = $region56
      $region55: #{contrastive_encoder_forward.3} parent=5 // pred_region
        %s1613 = ssub.s32 %s16, 2
        // Predicated region
        $region57: #{contrastive_encoder_forward.3} parent=55 // pred_check
          %p1614 = pneg %p197
        $region58: #{contrastive_encoder_forward.3} parent=55 // pred_check_branch
          %1616 = sbr.rel (%p1614) target = $region60
        $region59: #{contrastive_encoder_forward.3} parent=55 // pred_region
          %s1617 = sand.u32 %s182, 1
          %s1618 = scalar_lea.sflag [#allocation4], %s1617
          %s1619 = sand.u32 %s182, 1
          %s1620 = scalar_lea.vmem [#allocation3], %s1619
          %1622 = dma.done %s1618, 16
        $region60: #{contrastive_encoder_forward.3} parent=55 // pred_fallthru
          _
      $region56: #{contrastive_encoder_forward.3} parent=5 // pred_fallthru
        _
    $region6: #{contrastive_encoder_forward.3} parent=1 // loop_footer
      %s20 = sadd.s32 1, %s16
    $region7: #{contrastive_encoder_forward.3} parent=1 // loop_footer_branch
      %15 = sbr.rel target = $region3
    $region8: #{contrastive_encoder_forward.3} parent=1 // loop_exit
      _
    %1623 = vsyncpa [#allocation4], 1
    %s1624 = scalar_lea.sflag [#allocation4], 1
    %1625 = vsyncpa %s1624, 1

</llo_original>
